<compile_context>
chip_gen: v5e
topology: v5e:2x2
jax: 0.10.0
libtpu: 0.0.40
codegen_flags: <defaults>
</compile_context>

<pallas_src>
import functools

import jax
import jax.numpy as jnp
from jax.experimental import pallas as pl
from jax.experimental.pallas import tpu as pltpu

IMAGE_DIM = 28 * 28          # 784
HIDDEN_DIM = 128
K_PAD = 896                  # 784 rounded up to a multiple of 128 (lane-aligned K)
DEFAULT_TILE_B = 512         # batch rows per grid step (multiple of 128)


def _round_up(x, m):
    return (x + m - 1) // m * m


def _leaky_relu(x, slope=0.2):
    return jnp.where(x > 0, x, slope * x)


def discriminator_kernel(x_ref,
                         w1_ref, b1_ref,
                         w2_ref, b2_ref,
                         w3_ref, b3_ref,
                         w4_ref, b4_ref,
                         out_ref):
    """One batch tile of the fused 4-layer MLP.

    Layers 1-3: MXU matmuls (bf16 operands, f32 accumulation), f32 bias +
    LeakyReLU on the VPU. Layer 4 (128 -> 1): VPU multiply + XLU lane
    reduction, keeping the MXU free of a 1-lane-wide result.
    """
    def linear_bf16(h_bf16, w_ref, b_ref):
        return jnp.dot(h_bf16, w_ref[...],
                       preferred_element_type=jnp.float32) + b_ref[...]

    h = x_ref[...]                                              # [TILE_B, K_PAD] bf16
    h = _leaky_relu(linear_bf16(h, w1_ref, b1_ref))             # [TILE_B, 512] f32
    h = _leaky_relu(linear_bf16(h.astype(jnp.bfloat16), w2_ref, b2_ref))   # [TILE_B, 256]
    h = _leaky_relu(linear_bf16(h.astype(jnp.bfloat16), w3_ref, b3_ref))   # [TILE_B, 128]
    # Final Linear(128 -> 1): broadcast the [1, 128] weight row, reduce lanes.
    logit = jnp.sum(h * w4_ref[...], axis=-1, keepdims=True) + b4_ref[...]
    out_ref[...] = logit.astype(out_ref.dtype)


@functools.partial(jax.jit, static_argnames=("tile_b",))
def discriminator_forward(x, params, tile_b=None):
    """x: [B, IMAGE_DIM] float32; params: flat tuple (w1, b1, ..., w4, b4)."""
    B = x.shape[0]
    if tile_b is None:
        # Multiple of 128 (fills MXU rows / bf16 sublane packing); capped for VMEM.
        tile_b = min(DEFAULT_TILE_B, _round_up(max(B, 8), 128))
    b_pad = _round_up(B, tile_b)

    w1, b1, w2, b2, w3, b3, w4, b4 = params

    # Pre-cast MXU weights to bf16 once; zero-pad w1's contraction dim 784 -> 896.
    w1p = jnp.zeros((K_PAD, w1.shape[1]), jnp.bfloat16).at[:IMAGE_DIM].set(
        w1.astype(jnp.bfloat16))
    w2p = w2.astype(jnp.bfloat16)
    w3p = w3.astype(jnp.bfloat16)
    # Final layer stays f32 (VPU path); expose it as a [1, 128] row.
    w4p = w4.reshape(1, HIDDEN_DIM).astype(jnp.float32)
    b4p = b4.reshape(1, 1).astype(jnp.float32)
    b1p = b1.astype(jnp.float32)
    b2p = b2.astype(jnp.float32)
    b3p = b3.astype(jnp.float32)

    # Single padding pass: batch rows -> tile multiple, features -> aligned K,
    # and cast to bf16 so the per-tile DMA moves half the bytes.
    xp = jnp.zeros((b_pad, K_PAD), jnp.bfloat16).at[:B, :IMAGE_DIM].set(
        x.astype(jnp.bfloat16))

    grid = (b_pad // tile_b,)

    def resident(arr):
        # Full-extent block, constant block index -> fetched once, stays in VMEM.
        return pl.BlockSpec(arr.shape, lambda i: (0, 0))

    flops = 2 * b_pad * (K_PAD * 512 + 512 * 256 + 256 * 128) + 2 * b_pad * 128
    bytes_accessed = (xp.size * 2
                      + (w1p.size + w2p.size + w3p.size) * 2
                      + (b1p.size + b2p.size + b3p.size) * 4
                      + (w4p.size + b4p.size) * 4
                      + b_pad * 4)

    out = pl.pallas_call(
        discriminator_kernel,
        out_shape=jax.ShapeDtypeStruct((b_pad, 1), jnp.float32),
        grid_spec=pltpu.PrefetchScalarGridSpec(
            num_scalar_prefetch=0,
            grid=grid,
            in_specs=[
                pl.BlockSpec((tile_b, K_PAD), lambda i: (i, 0)),   # x batch tile
                resident(w1p), resident(b1p),
                resident(w2p), resident(b2p),
                resident(w3p), resident(b3p),
                resident(w4p), resident(b4p),
            ],
            out_specs=pl.BlockSpec((tile_b, 1), lambda i: (i, 0)),
        ),
        compiler_params=pltpu.CompilerParams(
            dimension_semantics=("parallel",),   # shard batch grid across TCs (v7x)
            vmem_limit_bytes=48 << 20,
        ),
        cost_estimate=pl.CostEstimate(
            flops=flops, transcendentals=0, bytes_accessed=bytes_accessed),
    )(xp, w1p, b1p, w2p, b2p, w3p, b3p, w4p, b4p)

    return out[:B]


def init_params(key):
    """Deterministic init mimicking nn.Linear's U(-1/sqrt(fan_in), 1/sqrt(fan_in))."""
    dims = [IMAGE_DIM, 4 * HIDDEN_DIM, 2 * HIDDEN_DIM, HIDDEN_DIM, 1]
    params = []
    for i in range(4):
        fan_in, fan_out = dims[i], dims[i + 1]
        key, kw, kb = jax.random.split(key, 3)
        bound = 1.0 / jnp.sqrt(fan_in)
        w = jax.random.uniform(kw, (fan_in, fan_out), jnp.float32, -bound, bound)
        b = jax.random.uniform(kb, (1, fan_out), jnp.float32, -bound, bound)
        params.extend([w, b])
    return tuple(params)


def reference_forward(x, params, matmul_dtype=jnp.float32):
    """Pure-JAX reference. matmul_dtype=bf16 mimics the kernel's MXU path
    (layers 1-3 in bf16 with f32 accumulation; final layer always f32)."""
    h = x
    for i in range(4):
        w, b = params[2 * i], params[2 * i + 1]
        dt = matmul_dtype if i < 3 else jnp.float32
        h = jnp.dot(h.astype(dt), w.astype(dt),
                    preferred_element_type=jnp.float32) + b
        if i < 3:
            h = jnp.where(h > 0, h, 0.2 * h)
    return h


if __name__ == "__main__":
    key = jax.random.PRNGKey(0)
    key_p, key_x = jax.random.split(key)

    params = init_params(key_p)
    B = 8
    x = jax.random.normal(key_x, (B, IMAGE_DIM), jnp.float32)

    out = jax.block_until_ready(discriminator_forward(x, params))
    assert out.shape == (B, 1), out.shape

    ref_bf16 = reference_forward(x, params, matmul_dtype=jnp.bfloat16)
    ref_f32 = reference_forward(x, params, matmul_dtype=jnp.float32)
    assert jnp.allclose(out, ref_bf16, atol=5e-3, rtol=5e-3), (
        "mismatch vs bf16-emulated reference")
    assert jnp.allclose(out, ref_f32, atol=5e-2, rtol=5e-2), (
        "mismatch vs f32 reference")

    print("KERNEL_OK")
</pallas_src>

<mosaic_0001>
module attributes {stable_mosaic.version = 11 : i64} {
  func.func @discriminator_kernel(%arg0: i32, %arg1: memref<128x896xbf16, #tpu.memory_space<vmem>>, %arg2: memref<896x512xbf16, #tpu.memory_space<vmem>>, %arg3: memref<1x512xf32, #tpu.memory_space<vmem>>, %arg4: memref<512x256xbf16, #tpu.memory_space<vmem>>, %arg5: memref<1x256xf32, #tpu.memory_space<vmem>>, %arg6: memref<256x128xbf16, #tpu.memory_space<vmem>>, %arg7: memref<1x128xf32, #tpu.memory_space<vmem>>, %arg8: memref<1x128xf32, #tpu.memory_space<vmem>>, %arg9: memref<1x1xf32, #tpu.memory_space<vmem>>, %arg10: memref<128x1xf32, #tpu.memory_space<vmem>>) attributes {dimension_semantics = [#tpu.dimension_semantics<parallel>], iteration_bounds = array<i64: 1>, scalar_prefetch = 0 : i64, scratch_operands = 0 : i64, tpu.core_type = #tpu.core_type<tc>, window_params = [{transform_indices = @transform_0, window_bounds = array<i64: 128, 896>}, {pipeline_mode = #tpu.pipeline_mode<synchronous>, transform_indices = @transform_1, window_bounds = array<i64: 896, 512>}, {pipeline_mode = #tpu.pipeline_mode<synchronous>, transform_indices = @transform_2, window_bounds = array<i64: 1, 512>}, {pipeline_mode = #tpu.pipeline_mode<synchronous>, transform_indices = @transform_3, window_bounds = array<i64: 512, 256>}, {pipeline_mode = #tpu.pipeline_mode<synchronous>, transform_indices = @transform_4, window_bounds = array<i64: 1, 256>}, {pipeline_mode = #tpu.pipeline_mode<synchronous>, transform_indices = @transform_5, window_bounds = array<i64: 256, 128>}, {pipeline_mode = #tpu.pipeline_mode<synchronous>, transform_indices = @transform_6, window_bounds = array<i64: 1, 128>}, {pipeline_mode = #tpu.pipeline_mode<synchronous>, transform_indices = @transform_7, window_bounds = array<i64: 1, 128>}, {pipeline_mode = #tpu.pipeline_mode<synchronous>, transform_indices = @transform_8, window_bounds = array<i64: 1, 1>}, {transform_indices = @transform_9, window_bounds = array<i64: 128, 1>}]} {
    %c0 = arith.constant 0 : index
    %c0_0 = arith.constant 0 : index
    %0 = vector.load %arg1[%c0, %c0_0] : memref<128x896xbf16, #tpu.memory_space<vmem>>, vector<128x896xbf16>
    %c0_1 = arith.constant 0 : index
    %c0_2 = arith.constant 0 : index
    %1 = vector.load %arg2[%c0_1, %c0_2] : memref<896x512xbf16, #tpu.memory_space<vmem>>, vector<896x512xbf16>
    %cst = arith.constant dense<0.000000e+00> : vector<128x512xf32>
    %2 = tpu.matmul %0, %1, %cst {dimension_numbers = #tpu.dot_dimension_numbers<[1], [0], [0], [1], [0, 0, 1, 1], [], []>} : vector<128x896xbf16>, vector<896x512xbf16>, vector<128x512xf32> -> vector<128x512xf32>
    %c0_3 = arith.constant 0 : index
    %c0_4 = arith.constant 0 : index
    %3 = vector.load %arg3[%c0_3, %c0_4] : memref<1x512xf32, #tpu.memory_space<vmem>>, vector<1x512xf32>
    %4 = vector.broadcast %3 : vector<1x512xf32> to vector<128x512xf32>
    %5 = arith.addf %2, %4 : vector<128x512xf32>
    %cst_5 = arith.constant 0.000000e+00 : f32
    %6 = vector.broadcast %cst_5 : f32 to vector<128x512xf32>
    %7 = arith.cmpf ogt, %5, %6 : vector<128x512xf32>
    %cst_6 = arith.constant 2.000000e-01 : f32
    %8 = vector.broadcast %cst_6 : f32 to vector<128x512xf32>
    %9 = arith.mulf %8, %5 : vector<128x512xf32>
    %10 = arith.select %7, %5, %9 : vector<128x512xi1>, vector<128x512xf32>
    %11 = arith.truncf %10 : vector<128x512xf32> to vector<128x512xbf16>
    %c0_7 = arith.constant 0 : index
    %c0_8 = arith.constant 0 : index
    %12 = vector.load %arg4[%c0_7, %c0_8] : memref<512x256xbf16, #tpu.memory_space<vmem>>, vector<512x256xbf16>
    %cst_9 = arith.constant dense<0.000000e+00> : vector<128x256xf32>
    %13 = tpu.matmul %11, %12, %cst_9 {dimension_numbers = #tpu.dot_dimension_numbers<[1], [0], [0], [1], [0, 0, 1, 1], [], []>} : vector<128x512xbf16>, vector<512x256xbf16>, vector<128x256xf32> -> vector<128x256xf32>
    %c0_10 = arith.constant 0 : index
    %c0_11 = arith.constant 0 : index
    %14 = vector.load %arg5[%c0_10, %c0_11] : memref<1x256xf32, #tpu.memory_space<vmem>>, vector<1x256xf32>
    %15 = vector.broadcast %14 : vector<1x256xf32> to vector<128x256xf32>
    %16 = arith.addf %13, %15 : vector<128x256xf32>
    %cst_12 = arith.constant 0.000000e+00 : f32
    %17 = vector.broadcast %cst_12 : f32 to vector<128x256xf32>
    %18 = arith.cmpf ogt, %16, %17 : vector<128x256xf32>
    %cst_13 = arith.constant 2.000000e-01 : f32
    %19 = vector.broadcast %cst_13 : f32 to vector<128x256xf32>
    %20 = arith.mulf %19, %16 : vector<128x256xf32>
    %21 = arith.select %18, %16, %20 : vector<128x256xi1>, vector<128x256xf32>
    %22 = arith.truncf %21 : vector<128x256xf32> to vector<128x256xbf16>
    %c0_14 = arith.constant 0 : index
    %c0_15 = arith.constant 0 : index
    %23 = vector.load %arg6[%c0_14, %c0_15] : memref<256x128xbf16, #tpu.memory_space<vmem>>, vector<256x128xbf16>
    %cst_16 = arith.constant dense<0.000000e+00> : vector<128x128xf32>
    %24 = tpu.matmul %22, %23, %cst_16 {dimension_numbers = #tpu.dot_dimension_numbers<[1], [0], [0], [1], [0, 0, 1, 1], [], []>} : vector<128x256xbf16>, vector<256x128xbf16>, vector<128x128xf32> -> vector<128x128xf32>
    %c0_17 = arith.constant 0 : index
    %c0_18 = arith.constant 0 : index
    %25 = vector.load %arg7[%c0_17, %c0_18] : memref<1x128xf32, #tpu.memory_space<vmem>>, vector<1x128xf32>
    %26 = vector.broadcast %25 : vector<1x128xf32> to vector<128x128xf32>
    %27 = arith.addf %24, %26 : vector<128x128xf32>
    %cst_19 = arith.constant 0.000000e+00 : f32
    %28 = vector.broadcast %cst_19 : f32 to vector<128x128xf32>
    %29 = arith.cmpf ogt, %27, %28 : vector<128x128xf32>
    %cst_20 = arith.constant 2.000000e-01 : f32
    %30 = vector.broadcast %cst_20 : f32 to vector<128x128xf32>
    %31 = arith.mulf %30, %27 : vector<128x128xf32>
    %32 = arith.select %29, %27, %31 : vector<128x128xi1>, vector<128x128xf32>
    %c0_21 = arith.constant 0 : index
    %c0_22 = arith.constant 0 : index
    %33 = vector.load %arg8[%c0_21, %c0_22] : memref<1x128xf32, #tpu.memory_space<vmem>>, vector<1x128xf32>
    %34 = vector.broadcast %33 : vector<1x128xf32> to vector<128x128xf32>
    %35 = arith.mulf %32, %34 : vector<128x128xf32>
    %cst_23 = arith.constant dense<0.000000e+00> : vector<128xf32>
    %36 = vector.multi_reduction <add>, %35, %cst_23 [1] : vector<128x128xf32> to vector<128xf32>
    %37 = vector.shape_cast %36 : vector<128xf32> to vector<128x1xf32>
    %c0_24 = arith.constant 0 : index
    %c0_25 = arith.constant 0 : index
    %38 = vector.load %arg9[%c0_24, %c0_25] : memref<1x1xf32, #tpu.memory_space<vmem>>, vector<1x1xf32>
    %39 = vector.broadcast %38 : vector<1x1xf32> to vector<128x1xf32>
    %40 = arith.addf %37, %39 : vector<128x1xf32>
    %c0_26 = arith.constant 0 : index
    %c0_27 = arith.constant 0 : index
    %41 = vector.load %arg10[%c0_26, %c0_27] : memref<128x1xf32, #tpu.memory_space<vmem>>, vector<128x1xf32>
    tpu.vector_store %arg10[%c0_26, %c0_27], %40 {strides = array<i32>} : memref<128x1xf32, #tpu.memory_space<vmem>>, vector<128x1xf32>,
    return
  }
  func.func @transform_0(%arg0: i32) -> (i32, i32) {
    %c0_i32 = arith.constant 0 : i32
    %c0_i32_0 = arith.constant 0 : i32
    return %arg0, %c0_i32 : i32, i32
  }
  func.func @transform_1(%arg0: i32) -> (i32, i32) {
    %c0_i32 = arith.constant 0 : i32
    %c0_i32_0 = arith.constant 0 : i32
    %c0_i32_1 = arith.constant 0 : i32
    return %c0_i32, %c0_i32_0 : i32, i32
  }
  func.func @transform_2(%arg0: i32) -> (i32, i32) {
    %c0_i32 = arith.constant 0 : i32
    %c0_i32_0 = arith.constant 0 : i32
    %c0_i32_1 = arith.constant 0 : i32
    return %c0_i32, %c0_i32_0 : i32, i32
  }
  func.func @transform_3(%arg0: i32) -> (i32, i32) {
    %c0_i32 = arith.constant 0 : i32
    %c0_i32_0 = arith.constant 0 : i32
    %c0_i32_1 = arith.constant 0 : i32
    return %c0_i32, %c0_i32_0 : i32, i32
  }
  func.func @transform_4(%arg0: i32) -> (i32, i32) {
    %c0_i32 = arith.constant 0 : i32
    %c0_i32_0 = arith.constant 0 : i32
    %c0_i32_1 = arith.constant 0 : i32
    return %c0_i32, %c0_i32_0 : i32, i32
  }
  func.func @transform_5(%arg0: i32) -> (i32, i32) {
    %c0_i32 = arith.constant 0 : i32
    %c0_i32_0 = arith.constant 0 : i32
    %c0_i32_1 = arith.constant 0 : i32
    return %c0_i32, %c0_i32_0 : i32, i32
  }
  func.func @transform_6(%arg0: i32) -> (i32, i32) {
    %c0_i32 = arith.constant 0 : i32
    %c0_i32_0 = arith.constant 0 : i32
    %c0_i32_1 = arith.constant 0 : i32
    return %c0_i32, %c0_i32_0 : i32, i32
  }
  func.func @transform_7(%arg0: i32) -> (i32, i32) {
    %c0_i32 = arith.constant 0 : i32
    %c0_i32_0 = arith.constant 0 : i32
    %c0_i32_1 = arith.constant 0 : i32
    return %c0_i32, %c0_i32_0 : i32, i32
  }
  func.func @transform_8(%arg0: i32) -> (i32, i32) {
    %c0_i32 = arith.constant 0 : i32
    %c0_i32_0 = arith.constant 0 : i32
    %c0_i32_1 = arith.constant 0 : i32
    return %c0_i32, %c0_i32_0 : i32, i32
  }
  func.func @transform_9(%arg0: i32) -> (i32, i32) {
    %c0_i32 = arith.constant 0 : i32
    %c0_i32_0 = arith.constant 0 : i32
    return %arg0, %c0_i32 : i32, i32
  }
}

</mosaic_0001>

<llo_original>
// kernel: discriminator_forward.1
$region0: #{discriminator_forward.1}
  #allocation0 [shape = 'u32[]', space=smem, size = 0x4, offset = 0x4, fixed_abs, tag = 'smem constant byte address 0x4 - core index']
  #allocation1 [shape = 'u32[72,128]{1,0:T(1,128)}', space=vmem, size = 0x9000, scoped, tag = 'internal scratch']
  #allocation2 [shape = 'f32[1,1]{1,0:T(1,128)S(1)}', space=vmem, size = 0x200, scoped, tag = 'scoped memory for discriminator_forward.1']
  %s0 = inlined_call_operand.vmem [shape: bf16[128,896], index: 0, kind: input, shape index: {}]
  %s1 = inlined_call_operand.vmem [shape: bf16[896,512], index: 1, kind: input, shape index: {}]
  %s2 = inlined_call_operand.vmem [shape: f32[1,512], index: 2, kind: input, shape index: {}]
  %s3 = inlined_call_operand.vmem [shape: bf16[512,256], index: 3, kind: input, shape index: {}]
  %s4 = inlined_call_operand.vmem [shape: f32[1,256], index: 4, kind: input, shape index: {}]
  %s5 = inlined_call_operand.vmem [shape: bf16[256,128], index: 5, kind: input, shape index: {}]
  %s6 = inlined_call_operand.vmem [shape: f32[1,128], index: 6, kind: input, shape index: {}]
  %s7 = inlined_call_operand.vmem [shape: f32[1,128], index: 7, kind: input, shape index: {}]
  %s8 = inlined_call_operand.<no memory space> [shape: f32[1,1], index: 8, kind: input, shape index: {}]
  %s9 = inlined_call_operand.vmem [shape: f32[128,1], index: 9, kind: output, shape index: {}]
  %s10 = sld [smem:[#allocation0]]
  $region46: #{discriminator_forward.1} parent=0
    _
  %s12 = ssub.s32 1, %s10
  %s13 = scalar_select 0, %s12, %s10
  %v14 = vstv %s8
  %15 = vst [vmem:[#allocation2] sm:$0x1] %v14
  // Predicated region
  $region2: #{discriminator_forward.1} parent=0 // pred_check
    _
  $region3: #{discriminator_forward.1} parent=0 // pred_check_branch
    %17 = sbr.rel (0) target = $region5
  $region4: #{discriminator_forward.1} parent=0 // pred_region
    _
  $region5: #{discriminator_forward.1} parent=0 // pred_fallthru
    _
  // Predicated region
  $region6: #{discriminator_forward.1} parent=0 // pred_check
    _
  $region7: #{discriminator_forward.1} parent=0 // pred_check_branch
    %19 = sbr.rel (0) target = $region9
  $region8: #{discriminator_forward.1} parent=0 // pred_region
    _
  $region9: #{discriminator_forward.1} parent=0 // pred_fallthru
    _
  // Predicated region
  $region10: #{discriminator_forward.1} parent=0 // pred_check
    _
  $region11: #{discriminator_forward.1} parent=0 // pred_check_branch
    %21 = sbr.rel (0) target = $region13
  $region12: #{discriminator_forward.1} parent=0 // pred_region
    _
  $region13: #{discriminator_forward.1} parent=0 // pred_fallthru
    _
  // Predicated region
  $region14: #{discriminator_forward.1} parent=0 // pred_check
    _
  $region15: #{discriminator_forward.1} parent=0 // pred_check_branch
    %23 = sbr.rel (0) target = $region17
  $region16: #{discriminator_forward.1} parent=0 // pred_region
    _
  $region17: #{discriminator_forward.1} parent=0 // pred_fallthru
    _
  // Predicated region
  $region18: #{discriminator_forward.1} parent=0 // pred_check
    _
  $region19: #{discriminator_forward.1} parent=0 // pred_check_branch
    %25 = sbr.rel (0) target = $region21
  $region20: #{discriminator_forward.1} parent=0 // pred_region
    _
  $region21: #{discriminator_forward.1} parent=0 // pred_fallthru
    _
  // Predicated region
  $region22: #{discriminator_forward.1} parent=0 // pred_check
    _
  $region23: #{discriminator_forward.1} parent=0 // pred_check_branch
    %27 = sbr.rel (0) target = $region25
  $region24: #{discriminator_forward.1} parent=0 // pred_region
    _
  $region25: #{discriminator_forward.1} parent=0 // pred_fallthru
    _
  // Predicated region
  $region26: #{discriminator_forward.1} parent=0 // pred_check
    _
  $region27: #{discriminator_forward.1} parent=0 // pred_check_branch
    %29 = sbr.rel (0) target = $region29
  $region28: #{discriminator_forward.1} parent=0 // pred_region
    _
  $region29: #{discriminator_forward.1} parent=0 // pred_fallthru
    _
  // Predicated region
  $region30: #{discriminator_forward.1} parent=0 // pred_check
    _
  $region31: #{discriminator_forward.1} parent=0 // pred_check_branch
    %31 = sbr.rel (0) target = $region33
  $region32: #{discriminator_forward.1} parent=0 // pred_region
    _
  $region33: #{discriminator_forward.1} parent=0 // pred_fallthru
    _
  // Predicated region
  $region34: #{discriminator_forward.1} parent=0 // pred_check
    _
  $region35: #{discriminator_forward.1} parent=0 // pred_check_branch
    %33 = sbr.rel (0) target = $region37
  $region36: #{discriminator_forward.1} parent=0 // pred_region
    _
  $region37: #{discriminator_forward.1} parent=0 // pred_fallthru
    _
  %v34 = vld [vmem:[%s0] sm:$0xff]
  %v35 = vld [vmem:[%s0 + $0x8] sm:$0xff]
  %v36 = vld [vmem:[%s0 + $0x10] sm:$0xff]
  %v37 = vld [vmem:[%s0 + $0x18] sm:$0xf]
  %v38 = vld [vmem:[%s0 + $0x1c] sm:$0xff]
  %v39 = vld [vmem:[%s0 + $0x24] sm:$0xff]
  %v40 = vld [vmem:[%s0 + $0x2c] sm:$0xff]
  %v41 = vld [vmem:[%s0 + $0x34] sm:$0xf]
  %v42 = vld [vmem:[%s0 + $0x38] sm:$0xff]
  %v43 = vld [vmem:[%s0 + $0x40] sm:$0xff]
  %v44 = vld [vmem:[%s0 + $0x48] sm:$0xff]
  %v45 = vld [vmem:[%s0 + $0x50] sm:$0xf]
  %v46 = vld [vmem:[%s0 + $0x54] sm:$0xff]
  %v47 = vld [vmem:[%s0 + $0x5c] sm:$0xff]
  %v48 = vld [vmem:[%s0 + $0x64] sm:$0xff]
  %v49 = vld [vmem:[%s0 + $0x6c] sm:$0xf]
  %v50 = vld [vmem:[%s0 + $0x70] sm:$0xff]
  %v51 = vld [vmem:[%s0 + $0x78] sm:$0xff]
  %v52 = vld [vmem:[%s0 + $0x80] sm:$0xff]
  %v53 = vld [vmem:[%s0 + $0x88] sm:$0xf]
  %v54 = vld [vmem:[%s0 + $0x8c] sm:$0xff]
  %v55 = vld [vmem:[%s0 + $0x94] sm:$0xff]
  %v56 = vld [vmem:[%s0 + $0x9c] sm:$0xff]
  %v57 = vld [vmem:[%s0 + $0xa4] sm:$0xf]
  %v58 = vld [vmem:[%s0 + $0xa8] sm:$0xff]
  %v59 = vld [vmem:[%s0 + $0xb0] sm:$0xff]
  %v60 = vld [vmem:[%s0 + $0xb8] sm:$0xff]
  %v61 = vld [vmem:[%s0 + $0xc0] sm:$0xf]
  %v62 = vld [vmem:[%s0 + $0xc4] sm:$0xff]
  %v63 = vld [vmem:[%s0 + $0xcc] sm:$0xff]
  %v64 = vld [vmem:[%s0 + $0xd4] sm:$0xff]
  %v65 = vld [vmem:[%s0 + $0xdc] sm:$0xf]
  %v66 = vld [vmem:[%s0 + $0xe0] sm:$0xff]
  %v67 = vld [vmem:[%s0 + $0xe8] sm:$0xff]
  %v68 = vld [vmem:[%s0 + $0xf0] sm:$0xff]
  %v69 = vld [vmem:[%s0 + $0xf8] sm:$0xf]
  %v70 = vld [vmem:[%s0 + $0xfc] sm:$0xff]
  %v71 = vld [vmem:[%s0 + $0x104] sm:$0xff]
  %v72 = vld [vmem:[%s0 + $0x10c] sm:$0xff]
  %v73 = vld [vmem:[%s0 + $0x114] sm:$0xf]
  %v74 = vld [vmem:[%s0 + $0x118] sm:$0xff]
  %v75 = vld [vmem:[%s0 + $0x120] sm:$0xff]
  %v76 = vld [vmem:[%s0 + $0x128] sm:$0xff]
  %v77 = vld [vmem:[%s0 + $0x130] sm:$0xf]
  %v78 = vld [vmem:[%s0 + $0x134] sm:$0xff]
  %v79 = vld [vmem:[%s0 + $0x13c] sm:$0xff]
  %v80 = vld [vmem:[%s0 + $0x144] sm:$0xff]
  %v81 = vld [vmem:[%s0 + $0x14c] sm:$0xf]
  %v82 = vld [vmem:[%s0 + $0x150] sm:$0xff]
  %v83 = vld [vmem:[%s0 + $0x158] sm:$0xff]
  %v84 = vld [vmem:[%s0 + $0x160] sm:$0xff]
  %v85 = vld [vmem:[%s0 + $0x168] sm:$0xf]
  %v86 = vld [vmem:[%s0 + $0x16c] sm:$0xff]
  %v87 = vld [vmem:[%s0 + $0x174] sm:$0xff]
  %v88 = vld [vmem:[%s0 + $0x17c] sm:$0xff]
  %v89 = vld [vmem:[%s0 + $0x184] sm:$0xf]
  %v90 = vld [vmem:[%s0 + $0x188] sm:$0xff]
  %v91 = vld [vmem:[%s0 + $0x190] sm:$0xff]
  %v92 = vld [vmem:[%s0 + $0x198] sm:$0xff]
  %v93 = vld [vmem:[%s0 + $0x1a0] sm:$0xf]
  %v94 = vld [vmem:[%s0 + $0x1a4] sm:$0xff]
  %v95 = vld [vmem:[%s0 + $0x1ac] sm:$0xff]
  %v96 = vld [vmem:[%s0 + $0x1b4] sm:$0xff]
  %v97 = vld [vmem:[%s0 + $0x1bc] sm:$0xf]
  %v98 = vld [vmem:[%s1] sm:$0xff]
  %v99 = vld [vmem:[%s1 + $0x8] sm:$0xff]
  %v100 = vld [vmem:[%s1 + $0x10] sm:$0xff]
  %v101 = vld [vmem:[%s1 + $0x18] sm:$0xff]
  %v102 = vld [vmem:[%s1 + $0x20] sm:$0xff]
  %v103 = vld [vmem:[%s1 + $0x28] sm:$0xff]
  %v104 = vld [vmem:[%s1 + $0x30] sm:$0xff]
  %v105 = vld [vmem:[%s1 + $0x38] sm:$0xff]
  %v106 = vld [vmem:[%s1 + $0x40] sm:$0xff]
  %v107 = vld [vmem:[%s1 + $0x48] sm:$0xff]
  %v108 = vld [vmem:[%s1 + $0x50] sm:$0xff]
  %v109 = vld [vmem:[%s1 + $0x58] sm:$0xff]
  %v110 = vld [vmem:[%s1 + $0x60] sm:$0xff]
  %v111 = vld [vmem:[%s1 + $0x68] sm:$0xff]
  %v112 = vld [vmem:[%s1 + $0x70] sm:$0xff]
  %v113 = vld [vmem:[%s1 + $0x78] sm:$0xff]
  %v114 = vld [vmem:[%s1 + $0x80] sm:$0xff]
  %v115 = vld [vmem:[%s1 + $0x88] sm:$0xff]
  %v116 = vld [vmem:[%s1 + $0x90] sm:$0xff]
  %v117 = vld [vmem:[%s1 + $0x98] sm:$0xff]
  %v118 = vld [vmem:[%s1 + $0xa0] sm:$0xff]
  %v119 = vld [vmem:[%s1 + $0xa8] sm:$0xff]
  %v120 = vld [vmem:[%s1 + $0xb0] sm:$0xff]
  %v121 = vld [vmem:[%s1 + $0xb8] sm:$0xff]
  %v122 = vld [vmem:[%s1 + $0xc0] sm:$0xff]
  %v123 = vld [vmem:[%s1 + $0xc8] sm:$0xff]
  %v124 = vld [vmem:[%s1 + $0xd0] sm:$0xff]
  %v125 = vld [vmem:[%s1 + $0xd8] sm:$0xff]
  %v126 = vld [vmem:[%s1 + $0xe0] sm:$0xff]
  %v127 = vld [vmem:[%s1 + $0xe8] sm:$0xff]
  %v128 = vld [vmem:[%s1 + $0xf0] sm:$0xff]
  %v129 = vld [vmem:[%s1 + $0xf8] sm:$0xff]
  %v130 = vld [vmem:[%s1 + $0x100] sm:$0xff]
  %v131 = vld [vmem:[%s1 + $0x108] sm:$0xff]
  %v132 = vld [vmem:[%s1 + $0x110] sm:$0xff]
  %v133 = vld [vmem:[%s1 + $0x118] sm:$0xff]
  %v134 = vld [vmem:[%s1 + $0x120] sm:$0xff]
  %v135 = vld [vmem:[%s1 + $0x128] sm:$0xff]
  %v136 = vld [vmem:[%s1 + $0x130] sm:$0xff]
  %v137 = vld [vmem:[%s1 + $0x138] sm:$0xff]
  %v138 = vld [vmem:[%s1 + $0x140] sm:$0xff]
  %v139 = vld [vmem:[%s1 + $0x148] sm:$0xff]
  %v140 = vld [vmem:[%s1 + $0x150] sm:$0xff]
  %v141 = vld [vmem:[%s1 + $0x158] sm:$0xff]
  %v142 = vld [vmem:[%s1 + $0x160] sm:$0xff]
  %v143 = vld [vmem:[%s1 + $0x168] sm:$0xff]
  %v144 = vld [vmem:[%s1 + $0x170] sm:$0xff]
  %v145 = vld [vmem:[%s1 + $0x178] sm:$0xff]
  %v146 = vld [vmem:[%s1 + $0x180] sm:$0xff]
  %v147 = vld [vmem:[%s1 + $0x188] sm:$0xff]
  %v148 = vld [vmem:[%s1 + $0x190] sm:$0xff]
  %v149 = vld [vmem:[%s1 + $0x198] sm:$0xff]
  %v150 = vld [vmem:[%s1 + $0x1a0] sm:$0xff]
  %v151 = vld [vmem:[%s1 + $0x1a8] sm:$0xff]
  %v152 = vld [vmem:[%s1 + $0x1b0] sm:$0xff]
  %v153 = vld [vmem:[%s1 + $0x1b8] sm:$0xff]
  %v154 = vld [vmem:[%s1 + $0x1c0] sm:$0xff]
  %v155 = vld [vmem:[%s1 + $0x1c8] sm:$0xff]
  %v156 = vld [vmem:[%s1 + $0x1d0] sm:$0xff]
  %v157 = vld [vmem:[%s1 + $0x1d8] sm:$0xff]
  %v158 = vld [vmem:[%s1 + $0x1e0] sm:$0xff]
  %v159 = vld [vmem:[%s1 + $0x1e8] sm:$0xff]
  %v160 = vld [vmem:[%s1 + $0x1f0] sm:$0xff]
  %v161 = vld [vmem:[%s1 + $0x1f8] sm:$0xff]
  %v162 = vld [vmem:[%s1 + $0x200] sm:$0xff]
  %v163 = vld [vmem:[%s1 + $0x208] sm:$0xff]
  %v164 = vld [vmem:[%s1 + $0x210] sm:$0xff]
  %v165 = vld [vmem:[%s1 + $0x218] sm:$0xff]
  %v166 = vld [vmem:[%s1 + $0x220] sm:$0xff]
  %v167 = vld [vmem:[%s1 + $0x228] sm:$0xff]
  %v168 = vld [vmem:[%s1 + $0x230] sm:$0xff]
  %v169 = vld [vmem:[%s1 + $0x238] sm:$0xff]
  %v170 = vld [vmem:[%s1 + $0x240] sm:$0xff]
  %v171 = vld [vmem:[%s1 + $0x248] sm:$0xff]
  %v172 = vld [vmem:[%s1 + $0x250] sm:$0xff]
  %v173 = vld [vmem:[%s1 + $0x258] sm:$0xff]
  %v174 = vld [vmem:[%s1 + $0x260] sm:$0xff]
  %v175 = vld [vmem:[%s1 + $0x268] sm:$0xff]
  %v176 = vld [vmem:[%s1 + $0x270] sm:$0xff]
  %v177 = vld [vmem:[%s1 + $0x278] sm:$0xff]
  %v178 = vld [vmem:[%s1 + $0x280] sm:$0xff]
  %v179 = vld [vmem:[%s1 + $0x288] sm:$0xff]
  %v180 = vld [vmem:[%s1 + $0x290] sm:$0xff]
  %v181 = vld [vmem:[%s1 + $0x298] sm:$0xff]
  %v182 = vld [vmem:[%s1 + $0x2a0] sm:$0xff]
  %v183 = vld [vmem:[%s1 + $0x2a8] sm:$0xff]
  %v184 = vld [vmem:[%s1 + $0x2b0] sm:$0xff]
  %v185 = vld [vmem:[%s1 + $0x2b8] sm:$0xff]
  %v186 = vld [vmem:[%s1 + $0x2c0] sm:$0xff]
  %v187 = vld [vmem:[%s1 + $0x2c8] sm:$0xff]
  %v188 = vld [vmem:[%s1 + $0x2d0] sm:$0xff]
  %v189 = vld [vmem:[%s1 + $0x2d8] sm:$0xff]
  %v190 = vld [vmem:[%s1 + $0x2e0] sm:$0xff]
  %v191 = vld [vmem:[%s1 + $0x2e8] sm:$0xff]
  %v192 = vld [vmem:[%s1 + $0x2f0] sm:$0xff]
  %v193 = vld [vmem:[%s1 + $0x2f8] sm:$0xff]
  %v194 = vld [vmem:[%s1 + $0x300] sm:$0xff]
  %v195 = vld [vmem:[%s1 + $0x308] sm:$0xff]
  %v196 = vld [vmem:[%s1 + $0x310] sm:$0xff]
  %v197 = vld [vmem:[%s1 + $0x318] sm:$0xff]
  %v198 = vld [vmem:[%s1 + $0x320] sm:$0xff]
  %v199 = vld [vmem:[%s1 + $0x328] sm:$0xff]
  %v200 = vld [vmem:[%s1 + $0x330] sm:$0xff]
  %v201 = vld [vmem:[%s1 + $0x338] sm:$0xff]
  %v202 = vld [vmem:[%s1 + $0x340] sm:$0xff]
  %v203 = vld [vmem:[%s1 + $0x348] sm:$0xff]
  %v204 = vld [vmem:[%s1 + $0x350] sm:$0xff]
  %v205 = vld [vmem:[%s1 + $0x358] sm:$0xff]
  %v206 = vld [vmem:[%s1 + $0x360] sm:$0xff]
  %v207 = vld [vmem:[%s1 + $0x368] sm:$0xff]
  %v208 = vld [vmem:[%s1 + $0x370] sm:$0xff]
  %v209 = vld [vmem:[%s1 + $0x378] sm:$0xff]
  %v210 = vld [vmem:[%s1 + $0x380] sm:$0xff]
  %v211 = vld [vmem:[%s1 + $0x388] sm:$0xff]
  %v212 = vld [vmem:[%s1 + $0x390] sm:$0xff]
  %v213 = vld [vmem:[%s1 + $0x398] sm:$0xff]
  %v214 = vld [vmem:[%s1 + $0x3a0] sm:$0xff]
  %v215 = vld [vmem:[%s1 + $0x3a8] sm:$0xff]
  %v216 = vld [vmem:[%s1 + $0x3b0] sm:$0xff]
  %v217 = vld [vmem:[%s1 + $0x3b8] sm:$0xff]
  %v218 = vld [vmem:[%s1 + $0x3c0] sm:$0xff]
  %v219 = vld [vmem:[%s1 + $0x3c8] sm:$0xff]
  %v220 = vld [vmem:[%s1 + $0x3d0] sm:$0xff]
  %v221 = vld [vmem:[%s1 + $0x3d8] sm:$0xff]
  %v222 = vld [vmem:[%s1 + $0x3e0] sm:$0xff]
  %v223 = vld [vmem:[%s1 + $0x3e8] sm:$0xff]
  %v224 = vld [vmem:[%s1 + $0x3f0] sm:$0xff]
  %v225 = vld [vmem:[%s1 + $0x3f8] sm:$0xff]
  %v226 = vld [vmem:[%s1 + $0x400] sm:$0xff]
  %v227 = vld [vmem:[%s1 + $0x408] sm:$0xff]
  %v228 = vld [vmem:[%s1 + $0x410] sm:$0xff]
  %v229 = vld [vmem:[%s1 + $0x418] sm:$0xff]
  %v230 = vld [vmem:[%s1 + $0x420] sm:$0xff]
  %v231 = vld [vmem:[%s1 + $0x428] sm:$0xff]
  %v232 = vld [vmem:[%s1 + $0x430] sm:$0xff]
  %v233 = vld [vmem:[%s1 + $0x438] sm:$0xff]
  %v234 = vld [vmem:[%s1 + $0x440] sm:$0xff]
  %v235 = vld [vmem:[%s1 + $0x448] sm:$0xff]
  %v236 = vld [vmem:[%s1 + $0x450] sm:$0xff]
  %v237 = vld [vmem:[%s1 + $0x458] sm:$0xff]
  %v238 = vld [vmem:[%s1 + $0x460] sm:$0xff]
  %v239 = vld [vmem:[%s1 + $0x468] sm:$0xff]
  %v240 = vld [vmem:[%s1 + $0x470] sm:$0xff]
  %v241 = vld [vmem:[%s1 + $0x478] sm:$0xff]
  %v242 = vld [vmem:[%s1 + $0x480] sm:$0xff]
  %v243 = vld [vmem:[%s1 + $0x488] sm:$0xff]
  %v244 = vld [vmem:[%s1 + $0x490] sm:$0xff]
  %v245 = vld [vmem:[%s1 + $0x498] sm:$0xff]
  %v246 = vld [vmem:[%s1 + $0x4a0] sm:$0xff]
  %v247 = vld [vmem:[%s1 + $0x4a8] sm:$0xff]
  %v248 = vld [vmem:[%s1 + $0x4b0] sm:$0xff]
  %v249 = vld [vmem:[%s1 + $0x4b8] sm:$0xff]
  %v250 = vld [vmem:[%s1 + $0x4c0] sm:$0xff]
  %v251 = vld [vmem:[%s1 + $0x4c8] sm:$0xff]
  %v252 = vld [vmem:[%s1 + $0x4d0] sm:$0xff]
  %v253 = vld [vmem:[%s1 + $0x4d8] sm:$0xff]
  %v254 = vld [vmem:[%s1 + $0x4e0] sm:$0xff]
  %v255 = vld [vmem:[%s1 + $0x4e8] sm:$0xff]
  %v256 = vld [vmem:[%s1 + $0x4f0] sm:$0xff]
  %v257 = vld [vmem:[%s1 + $0x4f8] sm:$0xff]
  %v258 = vld [vmem:[%s1 + $0x500] sm:$0xff]
  %v259 = vld [vmem:[%s1 + $0x508] sm:$0xff]
  %v260 = vld [vmem:[%s1 + $0x510] sm:$0xff]
  %v261 = vld [vmem:[%s1 + $0x518] sm:$0xff]
  %v262 = vld [vmem:[%s1 + $0x520] sm:$0xff]
  %v263 = vld [vmem:[%s1 + $0x528] sm:$0xff]
  %v264 = vld [vmem:[%s1 + $0x530] sm:$0xff]
  %v265 = vld [vmem:[%s1 + $0x538] sm:$0xff]
  %v266 = vld [vmem:[%s1 + $0x540] sm:$0xff]
  %v267 = vld [vmem:[%s1 + $0x548] sm:$0xff]
  %v268 = vld [vmem:[%s1 + $0x550] sm:$0xff]
  %v269 = vld [vmem:[%s1 + $0x558] sm:$0xff]
  %v270 = vld [vmem:[%s1 + $0x560] sm:$0xff]
  %v271 = vld [vmem:[%s1 + $0x568] sm:$0xff]
  %v272 = vld [vmem:[%s1 + $0x570] sm:$0xff]
  %v273 = vld [vmem:[%s1 + $0x578] sm:$0xff]
  %v274 = vld [vmem:[%s1 + $0x580] sm:$0xff]
  %v275 = vld [vmem:[%s1 + $0x588] sm:$0xff]
  %v276 = vld [vmem:[%s1 + $0x590] sm:$0xff]
  %v277 = vld [vmem:[%s1 + $0x598] sm:$0xff]
  %v278 = vld [vmem:[%s1 + $0x5a0] sm:$0xff]
  %v279 = vld [vmem:[%s1 + $0x5a8] sm:$0xff]
  %v280 = vld [vmem:[%s1 + $0x5b0] sm:$0xff]
  %v281 = vld [vmem:[%s1 + $0x5b8] sm:$0xff]
  %v282 = vld [vmem:[%s1 + $0x5c0] sm:$0xff]
  %v283 = vld [vmem:[%s1 + $0x5c8] sm:$0xff]
  %v284 = vld [vmem:[%s1 + $0x5d0] sm:$0xff]
  %v285 = vld [vmem:[%s1 + $0x5d8] sm:$0xff]
  %v286 = vld [vmem:[%s1 + $0x5e0] sm:$0xff]
  %v287 = vld [vmem:[%s1 + $0x5e8] sm:$0xff]
  %v288 = vld [vmem:[%s1 + $0x5f0] sm:$0xff]
  %v289 = vld [vmem:[%s1 + $0x5f8] sm:$0xff]
  %v290 = vld [vmem:[%s1 + $0x600] sm:$0xff]
  %v291 = vld [vmem:[%s1 + $0x608] sm:$0xff]
  %v292 = vld [vmem:[%s1 + $0x610] sm:$0xff]
  %v293 = vld [vmem:[%s1 + $0x618] sm:$0xff]
  %v294 = vld [vmem:[%s1 + $0x620] sm:$0xff]
  %v295 = vld [vmem:[%s1 + $0x628] sm:$0xff]
  %v296 = vld [vmem:[%s1 + $0x630] sm:$0xff]
  %v297 = vld [vmem:[%s1 + $0x638] sm:$0xff]
  %v298 = vld [vmem:[%s1 + $0x640] sm:$0xff]
  %v299 = vld [vmem:[%s1 + $0x648] sm:$0xff]
  %v300 = vld [vmem:[%s1 + $0x650] sm:$0xff]
  %v301 = vld [vmem:[%s1 + $0x658] sm:$0xff]
  %v302 = vld [vmem:[%s1 + $0x660] sm:$0xff]
  %v303 = vld [vmem:[%s1 + $0x668] sm:$0xff]
  %v304 = vld [vmem:[%s1 + $0x670] sm:$0xff]
  %v305 = vld [vmem:[%s1 + $0x678] sm:$0xff]
  %v306 = vld [vmem:[%s1 + $0x680] sm:$0xff]
  %v307 = vld [vmem:[%s1 + $0x688] sm:$0xff]
  %v308 = vld [vmem:[%s1 + $0x690] sm:$0xff]
  %v309 = vld [vmem:[%s1 + $0x698] sm:$0xff]
  %v310 = vld [vmem:[%s1 + $0x6a0] sm:$0xff]
  %v311 = vld [vmem:[%s1 + $0x6a8] sm:$0xff]
  %v312 = vld [vmem:[%s1 + $0x6b0] sm:$0xff]
  %v313 = vld [vmem:[%s1 + $0x6b8] sm:$0xff]
  %v314 = vld [vmem:[%s1 + $0x6c0] sm:$0xff]
  %v315 = vld [vmem:[%s1 + $0x6c8] sm:$0xff]
  %v316 = vld [vmem:[%s1 + $0x6d0] sm:$0xff]
  %v317 = vld [vmem:[%s1 + $0x6d8] sm:$0xff]
  %v318 = vld [vmem:[%s1 + $0x6e0] sm:$0xff]
  %v319 = vld [vmem:[%s1 + $0x6e8] sm:$0xff]
  %v320 = vld [vmem:[%s1 + $0x6f0] sm:$0xff]
  %v321 = vld [vmem:[%s1 + $0x6f8] sm:$0xff]
  %v322 = vld [vmem:[%s2] sm:$0xf]
  %v324 = vperm.slane %v322, 0
  %v325 = vperm.slane %v322, 1
  %v326 = vperm.slane %v322, 2
  %v327 = vperm.slane %v322, 3
  %v396 = vunpack.c.l.b16 %v34
  %v397 = vunpack.c.h.b16 %v34
  %v398 = vunpack.c.l.b16 %v35
  %v399 = vunpack.c.h.b16 %v35
  %v400 = vunpack.c.l.b16 %v36
  %v401 = vunpack.c.h.b16 %v36
  %v402 = vunpack.c.l.b16 %v37
  %v403 = vunpack.c.l.b16 %v38
  %v404 = vunpack.c.h.b16 %v38
  %v405 = vunpack.c.l.b16 %v39
  %v406 = vunpack.c.h.b16 %v39
  %v407 = vunpack.c.l.b16 %v40
  %v408 = vunpack.c.h.b16 %v40
  %v409 = vunpack.c.l.b16 %v41
  %v410 = vunpack.c.l.b16 %v42
  %v411 = vunpack.c.h.b16 %v42
  %v412 = vunpack.c.l.b16 %v43
  %v413 = vunpack.c.h.b16 %v43
  %v414 = vunpack.c.l.b16 %v44
  %v415 = vunpack.c.h.b16 %v44
  %v416 = vunpack.c.l.b16 %v45
  %v417 = vunpack.c.l.b16 %v46
  %v418 = vunpack.c.h.b16 %v46
  %v419 = vunpack.c.l.b16 %v47
  %v420 = vunpack.c.h.b16 %v47
  %v421 = vunpack.c.l.b16 %v48
  %v422 = vunpack.c.h.b16 %v48
  %v423 = vunpack.c.l.b16 %v49
  %v424 = vunpack.c.l.b16 %v50
  %v425 = vunpack.c.h.b16 %v50
  %v426 = vunpack.c.l.b16 %v51
  %v427 = vunpack.c.h.b16 %v51
  %v428 = vunpack.c.l.b16 %v52
  %v429 = vunpack.c.h.b16 %v52
  %v430 = vunpack.c.l.b16 %v53
  %v431 = vunpack.c.l.b16 %v54
  %v432 = vunpack.c.h.b16 %v54
  %v433 = vunpack.c.l.b16 %v55
  %v434 = vunpack.c.h.b16 %v55
  %v435 = vunpack.c.l.b16 %v56
  %v436 = vunpack.c.h.b16 %v56
  %v437 = vunpack.c.l.b16 %v57
  %v438 = vunpack.c.l.b16 %v58
  %v439 = vunpack.c.h.b16 %v58
  %v440 = vunpack.c.l.b16 %v59
  %v441 = vunpack.c.h.b16 %v59
  %v442 = vunpack.c.l.b16 %v60
  %v443 = vunpack.c.h.b16 %v60
  %v444 = vunpack.c.l.b16 %v61
  %v445 = vunpack.c.l.b16 %v62
  %v446 = vunpack.c.h.b16 %v62
  %v447 = vunpack.c.l.b16 %v63
  %v448 = vunpack.c.h.b16 %v63
  %v449 = vunpack.c.l.b16 %v64
  %v450 = vunpack.c.h.b16 %v64
  %v451 = vunpack.c.l.b16 %v65
  %v452 = vunpack.c.l.b16 %v66
  %v453 = vunpack.c.h.b16 %v66
  %v454 = vunpack.c.l.b16 %v67
  %v455 = vunpack.c.h.b16 %v67
  %v456 = vunpack.c.l.b16 %v68
  %v457 = vunpack.c.h.b16 %v68
  %v458 = vunpack.c.l.b16 %v69
  %v459 = vunpack.c.l.b16 %v70
  %v460 = vunpack.c.h.b16 %v70
  %v461 = vunpack.c.l.b16 %v71
  %v462 = vunpack.c.h.b16 %v71
  %v463 = vunpack.c.l.b16 %v72
  %v464 = vunpack.c.h.b16 %v72
  %v465 = vunpack.c.l.b16 %v73
  %v466 = vunpack.c.l.b16 %v74
  %v467 = vunpack.c.h.b16 %v74
  %v468 = vunpack.c.l.b16 %v75
  %v469 = vunpack.c.h.b16 %v75
  %v470 = vunpack.c.l.b16 %v76
  %v471 = vunpack.c.h.b16 %v76
  %v472 = vunpack.c.l.b16 %v77
  %v473 = vunpack.c.l.b16 %v78
  %v474 = vunpack.c.h.b16 %v78
  %v475 = vunpack.c.l.b16 %v79
  %v476 = vunpack.c.h.b16 %v79
  %v477 = vunpack.c.l.b16 %v80
  %v478 = vunpack.c.h.b16 %v80
  %v479 = vunpack.c.l.b16 %v81
  %v480 = vunpack.c.l.b16 %v82
  %v481 = vunpack.c.h.b16 %v82
  %v482 = vunpack.c.l.b16 %v83
  %v483 = vunpack.c.h.b16 %v83
  %v484 = vunpack.c.l.b16 %v84
  %v485 = vunpack.c.h.b16 %v84
  %v486 = vunpack.c.l.b16 %v85
  %v487 = vunpack.c.l.b16 %v86
  %v488 = vunpack.c.h.b16 %v86
  %v489 = vunpack.c.l.b16 %v87
  %v490 = vunpack.c.h.b16 %v87
  %v491 = vunpack.c.l.b16 %v88
  %v492 = vunpack.c.h.b16 %v88
  %v493 = vunpack.c.l.b16 %v89
  %v494 = vunpack.c.l.b16 %v90
  %v495 = vunpack.c.h.b16 %v90
  %v496 = vunpack.c.l.b16 %v91
  %v497 = vunpack.c.h.b16 %v91
  %v498 = vunpack.c.l.b16 %v92
  %v499 = vunpack.c.h.b16 %v92
  %v500 = vunpack.c.l.b16 %v93
  %v501 = vunpack.c.l.b16 %v94
  %v502 = vunpack.c.h.b16 %v94
  %v503 = vunpack.c.l.b16 %v95
  %v504 = vunpack.c.h.b16 %v95
  %v505 = vunpack.c.l.b16 %v96
  %v506 = vunpack.c.h.b16 %v96
  %v507 = vunpack.c.l.b16 %v97
  %v508 = vpack.c.b16 %v403, %v396
  %v509 = vpack.c.b16 %v404, %v397
  %v510 = vpack.c.b16 %v405, %v398
  %v511 = vpack.c.b16 %v406, %v399
  %v512 = vpack.c.b16 %v407, %v400
  %v513 = vpack.c.b16 %v408, %v401
  %v514 = vpack.c.b16 %v409, %v402
  %v515 = vpack.c.b16 %v417, %v410
  %v516 = vpack.c.b16 %v418, %v411
  %v517 = vpack.c.b16 %v419, %v412
  %v518 = vpack.c.b16 %v420, %v413
  %v519 = vpack.c.b16 %v421, %v414
  %v520 = vpack.c.b16 %v422, %v415
  %v521 = vpack.c.b16 %v423, %v416
  %v522 = vpack.c.b16 %v431, %v424
  %v523 = vpack.c.b16 %v432, %v425
  %v524 = vpack.c.b16 %v433, %v426
  %v525 = vpack.c.b16 %v434, %v427
  %v526 = vpack.c.b16 %v435, %v428
  %v527 = vpack.c.b16 %v436, %v429
  %v528 = vpack.c.b16 %v437, %v430
  %v529 = vpack.c.b16 %v445, %v438
  %v530 = vpack.c.b16 %v446, %v439
  %v531 = vpack.c.b16 %v447, %v440
  %v532 = vpack.c.b16 %v448, %v441
  %v533 = vpack.c.b16 %v449, %v442
  %v534 = vpack.c.b16 %v450, %v443
  %v535 = vpack.c.b16 %v451, %v444
  %v536 = vpack.c.b16 %v459, %v452
  %v537 = vpack.c.b16 %v460, %v453
  %v538 = vpack.c.b16 %v461, %v454
  %v539 = vpack.c.b16 %v462, %v455
  %v540 = vpack.c.b16 %v463, %v456
  %v541 = vpack.c.b16 %v464, %v457
  %v542 = vpack.c.b16 %v465, %v458
  %v543 = vpack.c.b16 %v473, %v466
  %v544 = vpack.c.b16 %v474, %v467
  %v545 = vpack.c.b16 %v475, %v468
  %v546 = vpack.c.b16 %v476, %v469
  %v547 = vpack.c.b16 %v477, %v470
  %v548 = vpack.c.b16 %v478, %v471
  %v549 = vpack.c.b16 %v479, %v472
  %v550 = vpack.c.b16 %v487, %v480
  %v551 = vpack.c.b16 %v488, %v481
  %v552 = vpack.c.b16 %v489, %v482
  %v553 = vpack.c.b16 %v490, %v483
  %v554 = vpack.c.b16 %v491, %v484
  %v555 = vpack.c.b16 %v492, %v485
  %v556 = vpack.c.b16 %v493, %v486
  %v557 = vpack.c.b16 %v501, %v494
  %v558 = vpack.c.b16 %v502, %v495
  %v559 = vpack.c.b16 %v503, %v496
  %v560 = vpack.c.b16 %v504, %v497
  %v561 = vpack.c.b16 %v505, %v498
  %v562 = vpack.c.b16 %v506, %v499
  %v563 = vpack.c.b16 %v507, %v500
  %v844 = vunpack.c.l.b16 %v98
  %v845 = vunpack.c.h.b16 %v98
  %v846 = vunpack.c.l.b16 %v99
  %v847 = vunpack.c.h.b16 %v99
  %v848 = vunpack.c.l.b16 %v100
  %v849 = vunpack.c.h.b16 %v100
  %v850 = vunpack.c.l.b16 %v101
  %v851 = vunpack.c.h.b16 %v101
  %v852 = vunpack.c.l.b16 %v102
  %v853 = vunpack.c.h.b16 %v102
  %v854 = vunpack.c.l.b16 %v103
  %v855 = vunpack.c.h.b16 %v103
  %v856 = vunpack.c.l.b16 %v104
  %v857 = vunpack.c.h.b16 %v104
  %v858 = vunpack.c.l.b16 %v105
  %v859 = vunpack.c.h.b16 %v105
  %v860 = vunpack.c.l.b16 %v106
  %v861 = vunpack.c.h.b16 %v106
  %v862 = vunpack.c.l.b16 %v107
  %v863 = vunpack.c.h.b16 %v107
  %v864 = vunpack.c.l.b16 %v108
  %v865 = vunpack.c.h.b16 %v108
  %v866 = vunpack.c.l.b16 %v109
  %v867 = vunpack.c.h.b16 %v109
  %v868 = vunpack.c.l.b16 %v110
  %v869 = vunpack.c.h.b16 %v110
  %v870 = vunpack.c.l.b16 %v111
  %v871 = vunpack.c.h.b16 %v111
  %v872 = vunpack.c.l.b16 %v112
  %v873 = vunpack.c.h.b16 %v112
  %v874 = vunpack.c.l.b16 %v113
  %v875 = vunpack.c.h.b16 %v113
  %v876 = vunpack.c.l.b16 %v114
  %v877 = vunpack.c.h.b16 %v114
  %v878 = vunpack.c.l.b16 %v115
  %v879 = vunpack.c.h.b16 %v115
  %v880 = vunpack.c.l.b16 %v116
  %v881 = vunpack.c.h.b16 %v116
  %v882 = vunpack.c.l.b16 %v117
  %v883 = vunpack.c.h.b16 %v117
  %v884 = vunpack.c.l.b16 %v118
  %v885 = vunpack.c.h.b16 %v118
  %v886 = vunpack.c.l.b16 %v119
  %v887 = vunpack.c.h.b16 %v119
  %v888 = vunpack.c.l.b16 %v120
  %v889 = vunpack.c.h.b16 %v120
  %v890 = vunpack.c.l.b16 %v121
  %v891 = vunpack.c.h.b16 %v121
  %v892 = vunpack.c.l.b16 %v122
  %v893 = vunpack.c.h.b16 %v122
  %v894 = vunpack.c.l.b16 %v123
  %v895 = vunpack.c.h.b16 %v123
  %v896 = vunpack.c.l.b16 %v124
  %v897 = vunpack.c.h.b16 %v124
  %v898 = vunpack.c.l.b16 %v125
  %v899 = vunpack.c.h.b16 %v125
  %v900 = vunpack.c.l.b16 %v126
  %v901 = vunpack.c.h.b16 %v126
  %v902 = vunpack.c.l.b16 %v127
  %v903 = vunpack.c.h.b16 %v127
  %v904 = vunpack.c.l.b16 %v128
  %v905 = vunpack.c.h.b16 %v128
  %v906 = vunpack.c.l.b16 %v129
  %v907 = vunpack.c.h.b16 %v129
  %v908 = vunpack.c.l.b16 %v130
  %v909 = vunpack.c.h.b16 %v130
  %v910 = vunpack.c.l.b16 %v131
  %v911 = vunpack.c.h.b16 %v131
  %v912 = vunpack.c.l.b16 %v132
  %v913 = vunpack.c.h.b16 %v132
  %v914 = vunpack.c.l.b16 %v133
  %v915 = vunpack.c.h.b16 %v133
  %v916 = vunpack.c.l.b16 %v134
  %v917 = vunpack.c.h.b16 %v134
  %v918 = vunpack.c.l.b16 %v135
  %v919 = vunpack.c.h.b16 %v135
  %v920 = vunpack.c.l.b16 %v136
  %v921 = vunpack.c.h.b16 %v136
  %v922 = vunpack.c.l.b16 %v137
  %v923 = vunpack.c.h.b16 %v137
  %v924 = vunpack.c.l.b16 %v138
  %v925 = vunpack.c.h.b16 %v138
  %v926 = vunpack.c.l.b16 %v139
  %v927 = vunpack.c.h.b16 %v139
  %v928 = vunpack.c.l.b16 %v140
  %v929 = vunpack.c.h.b16 %v140
  %v930 = vunpack.c.l.b16 %v141
  %v931 = vunpack.c.h.b16 %v141
  %v932 = vunpack.c.l.b16 %v142
  %v933 = vunpack.c.h.b16 %v142
  %v934 = vunpack.c.l.b16 %v143
  %v935 = vunpack.c.h.b16 %v143
  %v936 = vunpack.c.l.b16 %v144
  %v937 = vunpack.c.h.b16 %v144
  %v938 = vunpack.c.l.b16 %v145
  %v939 = vunpack.c.h.b16 %v145
  %v940 = vunpack.c.l.b16 %v146
  %v941 = vunpack.c.h.b16 %v146
  %v942 = vunpack.c.l.b16 %v147
  %v943 = vunpack.c.h.b16 %v147
  %v944 = vunpack.c.l.b16 %v148
  %v945 = vunpack.c.h.b16 %v148
  %v946 = vunpack.c.l.b16 %v149
  %v947 = vunpack.c.h.b16 %v149
  %v948 = vunpack.c.l.b16 %v150
  %v949 = vunpack.c.h.b16 %v150
  %v950 = vunpack.c.l.b16 %v151
  %v951 = vunpack.c.h.b16 %v151
  %v952 = vunpack.c.l.b16 %v152
  %v953 = vunpack.c.h.b16 %v152
  %v954 = vunpack.c.l.b16 %v153
  %v955 = vunpack.c.h.b16 %v153
  %v956 = vunpack.c.l.b16 %v154
  %v957 = vunpack.c.h.b16 %v154
  %v958 = vunpack.c.l.b16 %v155
  %v959 = vunpack.c.h.b16 %v155
  %v960 = vunpack.c.l.b16 %v156
  %v961 = vunpack.c.h.b16 %v156
  %v962 = vunpack.c.l.b16 %v157
  %v963 = vunpack.c.h.b16 %v157
  %v964 = vunpack.c.l.b16 %v158
  %v965 = vunpack.c.h.b16 %v158
  %v966 = vunpack.c.l.b16 %v159
  %v967 = vunpack.c.h.b16 %v159
  %v968 = vunpack.c.l.b16 %v160
  %v969 = vunpack.c.h.b16 %v160
  %v970 = vunpack.c.l.b16 %v161
  %v971 = vunpack.c.h.b16 %v161
  %v972 = vunpack.c.l.b16 %v162
  %v973 = vunpack.c.h.b16 %v162
  %v974 = vunpack.c.l.b16 %v163
  %v975 = vunpack.c.h.b16 %v163
  %v976 = vunpack.c.l.b16 %v164
  %v977 = vunpack.c.h.b16 %v164
  %v978 = vunpack.c.l.b16 %v165
  %v979 = vunpack.c.h.b16 %v165
  %v980 = vunpack.c.l.b16 %v166
  %v981 = vunpack.c.h.b16 %v166
  %v982 = vunpack.c.l.b16 %v167
  %v983 = vunpack.c.h.b16 %v167
  %v984 = vunpack.c.l.b16 %v168
  %v985 = vunpack.c.h.b16 %v168
  %v986 = vunpack.c.l.b16 %v169
  %v987 = vunpack.c.h.b16 %v169
  %v988 = vunpack.c.l.b16 %v170
  %v989 = vunpack.c.h.b16 %v170
  %v990 = vunpack.c.l.b16 %v171
  %v991 = vunpack.c.h.b16 %v171
  %v992 = vunpack.c.l.b16 %v172
  %v993 = vunpack.c.h.b16 %v172
  %v994 = vunpack.c.l.b16 %v173
  %v995 = vunpack.c.h.b16 %v173
  %v996 = vunpack.c.l.b16 %v174
  %v997 = vunpack.c.h.b16 %v174
  %v998 = vunpack.c.l.b16 %v175
  %v999 = vunpack.c.h.b16 %v175
  %v1000 = vunpack.c.l.b16 %v176
  %v1001 = vunpack.c.h.b16 %v176
  %v1002 = vunpack.c.l.b16 %v177
  %v1003 = vunpack.c.h.b16 %v177
  %v1004 = vunpack.c.l.b16 %v178
  %v1005 = vunpack.c.h.b16 %v178
  %v1006 = vunpack.c.l.b16 %v179
  %v1007 = vunpack.c.h.b16 %v179
  %v1008 = vunpack.c.l.b16 %v180
  %v1009 = vunpack.c.h.b16 %v180
  %v1010 = vunpack.c.l.b16 %v181
  %v1011 = vunpack.c.h.b16 %v181
  %v1012 = vunpack.c.l.b16 %v182
  %v1013 = vunpack.c.h.b16 %v182
  %v1014 = vunpack.c.l.b16 %v183
  %v1015 = vunpack.c.h.b16 %v183
  %v1016 = vunpack.c.l.b16 %v184
  %v1017 = vunpack.c.h.b16 %v184
  %v1018 = vunpack.c.l.b16 %v185
  %v1019 = vunpack.c.h.b16 %v185
  %v1020 = vunpack.c.l.b16 %v186
  %v1021 = vunpack.c.h.b16 %v186
  %v1022 = vunpack.c.l.b16 %v187
  %v1023 = vunpack.c.h.b16 %v187
  %v1024 = vunpack.c.l.b16 %v188
  %v1025 = vunpack.c.h.b16 %v188
  %v1026 = vunpack.c.l.b16 %v189
  %v1027 = vunpack.c.h.b16 %v189
  %v1028 = vunpack.c.l.b16 %v190
  %v1029 = vunpack.c.h.b16 %v190
  %v1030 = vunpack.c.l.b16 %v191
  %v1031 = vunpack.c.h.b16 %v191
  %v1032 = vunpack.c.l.b16 %v192
  %v1033 = vunpack.c.h.b16 %v192
  %v1034 = vunpack.c.l.b16 %v193
  %v1035 = vunpack.c.h.b16 %v193
  %v1036 = vunpack.c.l.b16 %v194
  %v1037 = vunpack.c.h.b16 %v194
  %v1038 = vunpack.c.l.b16 %v195
  %v1039 = vunpack.c.h.b16 %v195
  %v1040 = vunpack.c.l.b16 %v196
  %v1041 = vunpack.c.h.b16 %v196
  %v1042 = vunpack.c.l.b16 %v197
  %v1043 = vunpack.c.h.b16 %v197
  %v1044 = vunpack.c.l.b16 %v198
  %v1045 = vunpack.c.h.b16 %v198
  %v1046 = vunpack.c.l.b16 %v199
  %v1047 = vunpack.c.h.b16 %v199
  %v1048 = vunpack.c.l.b16 %v200
  %v1049 = vunpack.c.h.b16 %v200
  %v1050 = vunpack.c.l.b16 %v201
  %v1051 = vunpack.c.h.b16 %v201
  %v1052 = vunpack.c.l.b16 %v202
  %v1053 = vunpack.c.h.b16 %v202
  %v1054 = vunpack.c.l.b16 %v203
  %v1055 = vunpack.c.h.b16 %v203
  %v1056 = vunpack.c.l.b16 %v204
  %v1057 = vunpack.c.h.b16 %v204
  %v1058 = vunpack.c.l.b16 %v205
  %v1059 = vunpack.c.h.b16 %v205
  %v1060 = vunpack.c.l.b16 %v206
  %v1061 = vunpack.c.h.b16 %v206
  %v1062 = vunpack.c.l.b16 %v207
  %v1063 = vunpack.c.h.b16 %v207
  %v1064 = vunpack.c.l.b16 %v208
  %v1065 = vunpack.c.h.b16 %v208
  %v1066 = vunpack.c.l.b16 %v209
  %v1067 = vunpack.c.h.b16 %v209
  %v1068 = vunpack.c.l.b16 %v210
  %v1069 = vunpack.c.h.b16 %v210
  %v1070 = vunpack.c.l.b16 %v211
  %v1071 = vunpack.c.h.b16 %v211
  %v1072 = vunpack.c.l.b16 %v212
  %v1073 = vunpack.c.h.b16 %v212
  %v1074 = vunpack.c.l.b16 %v213
  %v1075 = vunpack.c.h.b16 %v213
  %v1076 = vunpack.c.l.b16 %v214
  %v1077 = vunpack.c.h.b16 %v214
  %v1078 = vunpack.c.l.b16 %v215
  %v1079 = vunpack.c.h.b16 %v215
  %v1080 = vunpack.c.l.b16 %v216
  %v1081 = vunpack.c.h.b16 %v216
  %v1082 = vunpack.c.l.b16 %v217
  %v1083 = vunpack.c.h.b16 %v217
  %v1084 = vunpack.c.l.b16 %v218
  %v1085 = vunpack.c.h.b16 %v218
  %v1086 = vunpack.c.l.b16 %v219
  %v1087 = vunpack.c.h.b16 %v219
  %v1088 = vunpack.c.l.b16 %v220
  %v1089 = vunpack.c.h.b16 %v220
  %v1090 = vunpack.c.l.b16 %v221
  %v1091 = vunpack.c.h.b16 %v221
  %v1092 = vunpack.c.l.b16 %v222
  %v1093 = vunpack.c.h.b16 %v222
  %v1094 = vunpack.c.l.b16 %v223
  %v1095 = vunpack.c.h.b16 %v223
  %v1096 = vunpack.c.l.b16 %v224
  %v1097 = vunpack.c.h.b16 %v224
  %v1098 = vunpack.c.l.b16 %v225
  %v1099 = vunpack.c.h.b16 %v225
  %v1100 = vunpack.c.l.b16 %v226
  %v1101 = vunpack.c.h.b16 %v226
  %v1102 = vunpack.c.l.b16 %v227
  %v1103 = vunpack.c.h.b16 %v227
  %v1104 = vunpack.c.l.b16 %v228
  %v1105 = vunpack.c.h.b16 %v228
  %v1106 = vunpack.c.l.b16 %v229
  %v1107 = vunpack.c.h.b16 %v229
  %v1108 = vunpack.c.l.b16 %v230
  %v1109 = vunpack.c.h.b16 %v230
  %v1110 = vunpack.c.l.b16 %v231
  %v1111 = vunpack.c.h.b16 %v231
  %v1112 = vunpack.c.l.b16 %v232
  %v1113 = vunpack.c.h.b16 %v232
  %v1114 = vunpack.c.l.b16 %v233
  %v1115 = vunpack.c.h.b16 %v233
  %v1116 = vunpack.c.l.b16 %v234
  %v1117 = vunpack.c.h.b16 %v234
  %v1118 = vunpack.c.l.b16 %v235
  %v1119 = vunpack.c.h.b16 %v235
  %v1120 = vunpack.c.l.b16 %v236
  %v1121 = vunpack.c.h.b16 %v236
  %v1122 = vunpack.c.l.b16 %v237
  %v1123 = vunpack.c.h.b16 %v237
  %v1124 = vunpack.c.l.b16 %v238
  %v1125 = vunpack.c.h.b16 %v238
  %v1126 = vunpack.c.l.b16 %v239
  %v1127 = vunpack.c.h.b16 %v239
  %v1128 = vunpack.c.l.b16 %v240
  %v1129 = vunpack.c.h.b16 %v240
  %v1130 = vunpack.c.l.b16 %v241
  %v1131 = vunpack.c.h.b16 %v241
  %v1132 = vunpack.c.l.b16 %v242
  %v1133 = vunpack.c.h.b16 %v242
  %v1134 = vunpack.c.l.b16 %v243
  %v1135 = vunpack.c.h.b16 %v243
  %v1136 = vunpack.c.l.b16 %v244
  %v1137 = vunpack.c.h.b16 %v244
  %v1138 = vunpack.c.l.b16 %v245
  %v1139 = vunpack.c.h.b16 %v245
  %v1140 = vunpack.c.l.b16 %v246
  %v1141 = vunpack.c.h.b16 %v246
  %v1142 = vunpack.c.l.b16 %v247
  %v1143 = vunpack.c.h.b16 %v247
  %v1144 = vunpack.c.l.b16 %v248
  %v1145 = vunpack.c.h.b16 %v248
  %v1146 = vunpack.c.l.b16 %v249
  %v1147 = vunpack.c.h.b16 %v249
  %v1148 = vunpack.c.l.b16 %v250
  %v1149 = vunpack.c.h.b16 %v250
  %v1150 = vunpack.c.l.b16 %v251
  %v1151 = vunpack.c.h.b16 %v251
  %v1152 = vunpack.c.l.b16 %v252
  %v1153 = vunpack.c.h.b16 %v252
  %v1154 = vunpack.c.l.b16 %v253
  %v1155 = vunpack.c.h.b16 %v253
  %v1156 = vunpack.c.l.b16 %v254
  %v1157 = vunpack.c.h.b16 %v254
  %v1158 = vunpack.c.l.b16 %v255
  %v1159 = vunpack.c.h.b16 %v255
  %v1160 = vunpack.c.l.b16 %v256
  %v1161 = vunpack.c.h.b16 %v256
  %v1162 = vunpack.c.l.b16 %v257
  %v1163 = vunpack.c.h.b16 %v257
  %v1164 = vunpack.c.l.b16 %v258
  %v1165 = vunpack.c.h.b16 %v258
  %v1166 = vunpack.c.l.b16 %v259
  %v1167 = vunpack.c.h.b16 %v259
  %v1168 = vunpack.c.l.b16 %v260
  %v1169 = vunpack.c.h.b16 %v260
  %v1170 = vunpack.c.l.b16 %v261
  %v1171 = vunpack.c.h.b16 %v261
  %v1172 = vunpack.c.l.b16 %v262
  %v1173 = vunpack.c.h.b16 %v262
  %v1174 = vunpack.c.l.b16 %v263
  %v1175 = vunpack.c.h.b16 %v263
  %v1176 = vunpack.c.l.b16 %v264
  %v1177 = vunpack.c.h.b16 %v264
  %v1178 = vunpack.c.l.b16 %v265
  %v1179 = vunpack.c.h.b16 %v265
  %v1180 = vunpack.c.l.b16 %v266
  %v1181 = vunpack.c.h.b16 %v266
  %v1182 = vunpack.c.l.b16 %v267
  %v1183 = vunpack.c.h.b16 %v267
  %v1184 = vunpack.c.l.b16 %v268
  %v1185 = vunpack.c.h.b16 %v268
  %v1186 = vunpack.c.l.b16 %v269
  %v1187 = vunpack.c.h.b16 %v269
  %v1188 = vunpack.c.l.b16 %v270
  %v1189 = vunpack.c.h.b16 %v270
  %v1190 = vunpack.c.l.b16 %v271
  %v1191 = vunpack.c.h.b16 %v271
  %v1192 = vunpack.c.l.b16 %v272
  %v1193 = vunpack.c.h.b16 %v272
  %v1194 = vunpack.c.l.b16 %v273
  %v1195 = vunpack.c.h.b16 %v273
  %v1196 = vunpack.c.l.b16 %v274
  %v1197 = vunpack.c.h.b16 %v274
  %v1198 = vunpack.c.l.b16 %v275
  %v1199 = vunpack.c.h.b16 %v275
  %v1200 = vunpack.c.l.b16 %v276
  %v1201 = vunpack.c.h.b16 %v276
  %v1202 = vunpack.c.l.b16 %v277
  %v1203 = vunpack.c.h.b16 %v277
  %v1204 = vunpack.c.l.b16 %v278
  %v1205 = vunpack.c.h.b16 %v278
  %v1206 = vunpack.c.l.b16 %v279
  %v1207 = vunpack.c.h.b16 %v279
  %v1208 = vunpack.c.l.b16 %v280
  %v1209 = vunpack.c.h.b16 %v280
  %v1210 = vunpack.c.l.b16 %v281
  %v1211 = vunpack.c.h.b16 %v281
  %v1212 = vunpack.c.l.b16 %v282
  %v1213 = vunpack.c.h.b16 %v282
  %v1214 = vunpack.c.l.b16 %v283
  %v1215 = vunpack.c.h.b16 %v283
  %v1216 = vunpack.c.l.b16 %v284
  %v1217 = vunpack.c.h.b16 %v284
  %v1218 = vunpack.c.l.b16 %v285
  %v1219 = vunpack.c.h.b16 %v285
  %v1220 = vunpack.c.l.b16 %v286
  %v1221 = vunpack.c.h.b16 %v286
  %v1222 = vunpack.c.l.b16 %v287
  %v1223 = vunpack.c.h.b16 %v287
  %v1224 = vunpack.c.l.b16 %v288
  %v1225 = vunpack.c.h.b16 %v288
  %v1226 = vunpack.c.l.b16 %v289
  %v1227 = vunpack.c.h.b16 %v289
  %v1228 = vunpack.c.l.b16 %v290
  %v1229 = vunpack.c.h.b16 %v290
  %v1230 = vunpack.c.l.b16 %v291
  %v1231 = vunpack.c.h.b16 %v291
  %v1232 = vunpack.c.l.b16 %v292
  %v1233 = vunpack.c.h.b16 %v292
  %v1234 = vunpack.c.l.b16 %v293
  %v1235 = vunpack.c.h.b16 %v293
  %v1236 = vunpack.c.l.b16 %v294
  %v1237 = vunpack.c.h.b16 %v294
  %v1238 = vunpack.c.l.b16 %v295
  %v1239 = vunpack.c.h.b16 %v295
  %v1240 = vunpack.c.l.b16 %v296
  %v1241 = vunpack.c.h.b16 %v296
  %v1242 = vunpack.c.l.b16 %v297
  %v1243 = vunpack.c.h.b16 %v297
  %v1244 = vunpack.c.l.b16 %v298
  %v1245 = vunpack.c.h.b16 %v298
  %v1246 = vunpack.c.l.b16 %v299
  %v1247 = vunpack.c.h.b16 %v299
  %v1248 = vunpack.c.l.b16 %v300
  %v1249 = vunpack.c.h.b16 %v300
  %v1250 = vunpack.c.l.b16 %v301
  %v1251 = vunpack.c.h.b16 %v301
  %v1252 = vunpack.c.l.b16 %v302
  %v1253 = vunpack.c.h.b16 %v302
  %v1254 = vunpack.c.l.b16 %v303
  %v1255 = vunpack.c.h.b16 %v303
  %v1256 = vunpack.c.l.b16 %v304
  %v1257 = vunpack.c.h.b16 %v304
  %v1258 = vunpack.c.l.b16 %v305
  %v1259 = vunpack.c.h.b16 %v305
  %v1260 = vunpack.c.l.b16 %v306
  %v1261 = vunpack.c.h.b16 %v306
  %v1262 = vunpack.c.l.b16 %v307
  %v1263 = vunpack.c.h.b16 %v307
  %v1264 = vunpack.c.l.b16 %v308
  %v1265 = vunpack.c.h.b16 %v308
  %v1266 = vunpack.c.l.b16 %v309
  %v1267 = vunpack.c.h.b16 %v309
  %v1268 = vunpack.c.l.b16 %v310
  %v1269 = vunpack.c.h.b16 %v310
  %v1270 = vunpack.c.l.b16 %v311
  %v1271 = vunpack.c.h.b16 %v311
  %v1272 = vunpack.c.l.b16 %v312
  %v1273 = vunpack.c.h.b16 %v312
  %v1274 = vunpack.c.l.b16 %v313
  %v1275 = vunpack.c.h.b16 %v313
  %v1276 = vunpack.c.l.b16 %v314
  %v1277 = vunpack.c.h.b16 %v314
  %v1278 = vunpack.c.l.b16 %v315
  %v1279 = vunpack.c.h.b16 %v315
  %v1280 = vunpack.c.l.b16 %v316
  %v1281 = vunpack.c.h.b16 %v316
  %v1282 = vunpack.c.l.b16 %v317
  %v1283 = vunpack.c.h.b16 %v317
  %v1284 = vunpack.c.l.b16 %v318
  %v1285 = vunpack.c.h.b16 %v318
  %v1286 = vunpack.c.l.b16 %v319
  %v1287 = vunpack.c.h.b16 %v319
  %v1288 = vunpack.c.l.b16 %v320
  %v1289 = vunpack.c.h.b16 %v320
  %v1290 = vunpack.c.l.b16 %v321
  %v1291 = vunpack.c.h.b16 %v321
  %v1292 = vpack.c.b16 %v848, %v844
  %v1293 = vpack.c.b16 %v849, %v845
  %v1294 = vpack.c.b16 %v850, %v846
  %v1295 = vpack.c.b16 %v851, %v847
  %v1296 = vpack.c.b16 %v856, %v852
  %v1297 = vpack.c.b16 %v857, %v853
  %v1298 = vpack.c.b16 %v858, %v854
  %v1299 = vpack.c.b16 %v859, %v855
  %v1300 = vpack.c.b16 %v864, %v860
  %v1301 = vpack.c.b16 %v865, %v861
  %v1302 = vpack.c.b16 %v866, %v862
  %v1303 = vpack.c.b16 %v867, %v863
  %v1304 = vpack.c.b16 %v872, %v868
  %v1305 = vpack.c.b16 %v873, %v869
  %v1306 = vpack.c.b16 %v874, %v870
  %v1307 = vpack.c.b16 %v875, %v871
  %v1308 = vpack.c.b16 %v880, %v876
  %v1309 = vpack.c.b16 %v881, %v877
  %v1310 = vpack.c.b16 %v882, %v878
  %v1311 = vpack.c.b16 %v883, %v879
  %v1312 = vpack.c.b16 %v888, %v884
  %v1313 = vpack.c.b16 %v889, %v885
  %v1314 = vpack.c.b16 %v890, %v886
  %v1315 = vpack.c.b16 %v891, %v887
  %v1316 = vpack.c.b16 %v896, %v892
  %v1317 = vpack.c.b16 %v897, %v893
  %v1318 = vpack.c.b16 %v898, %v894
  %v1319 = vpack.c.b16 %v899, %v895
  %v1320 = vpack.c.b16 %v904, %v900
  %v1321 = vpack.c.b16 %v905, %v901
  %v1322 = vpack.c.b16 %v906, %v902
  %v1323 = vpack.c.b16 %v907, %v903
  %v1324 = vpack.c.b16 %v912, %v908
  %v1325 = vpack.c.b16 %v913, %v909
  %v1326 = vpack.c.b16 %v914, %v910
  %v1327 = vpack.c.b16 %v915, %v911
  %v1328 = vpack.c.b16 %v920, %v916
  %v1329 = vpack.c.b16 %v921, %v917
  %v1330 = vpack.c.b16 %v922, %v918
  %v1331 = vpack.c.b16 %v923, %v919
  %v1332 = vpack.c.b16 %v928, %v924
  %v1333 = vpack.c.b16 %v929, %v925
  %v1334 = vpack.c.b16 %v930, %v926
  %v1335 = vpack.c.b16 %v931, %v927
  %v1336 = vpack.c.b16 %v936, %v932
  %v1337 = vpack.c.b16 %v937, %v933
  %v1338 = vpack.c.b16 %v938, %v934
  %v1339 = vpack.c.b16 %v939, %v935
  %v1340 = vpack.c.b16 %v944, %v940
  %v1341 = vpack.c.b16 %v945, %v941
  %v1342 = vpack.c.b16 %v946, %v942
  %v1343 = vpack.c.b16 %v947, %v943
  %v1344 = vpack.c.b16 %v952, %v948
  %v1345 = vpack.c.b16 %v953, %v949
  %v1346 = vpack.c.b16 %v954, %v950
  %v1347 = vpack.c.b16 %v955, %v951
  %v1348 = vpack.c.b16 %v960, %v956
  %v1349 = vpack.c.b16 %v961, %v957
  %v1350 = vpack.c.b16 %v962, %v958
  %v1351 = vpack.c.b16 %v963, %v959
  %v1352 = vpack.c.b16 %v968, %v964
  %v1353 = vpack.c.b16 %v969, %v965
  %v1354 = vpack.c.b16 %v970, %v966
  %v1355 = vpack.c.b16 %v971, %v967
  %v1356 = vpack.c.b16 %v976, %v972
  %v1357 = vpack.c.b16 %v977, %v973
  %v1358 = vpack.c.b16 %v978, %v974
  %v1359 = vpack.c.b16 %v979, %v975
  %v1360 = vpack.c.b16 %v984, %v980
  %v1361 = vpack.c.b16 %v985, %v981
  %v1362 = vpack.c.b16 %v986, %v982
  %v1363 = vpack.c.b16 %v987, %v983
  %v1364 = vpack.c.b16 %v992, %v988
  %v1365 = vpack.c.b16 %v993, %v989
  %v1366 = vpack.c.b16 %v994, %v990
  %v1367 = vpack.c.b16 %v995, %v991
  %v1368 = vpack.c.b16 %v1000, %v996
  %v1369 = vpack.c.b16 %v1001, %v997
  %v1370 = vpack.c.b16 %v1002, %v998
  %v1371 = vpack.c.b16 %v1003, %v999
  %v1372 = vpack.c.b16 %v1008, %v1004
  %v1373 = vpack.c.b16 %v1009, %v1005
  %v1374 = vpack.c.b16 %v1010, %v1006
  %v1375 = vpack.c.b16 %v1011, %v1007
  %v1376 = vpack.c.b16 %v1016, %v1012
  %v1377 = vpack.c.b16 %v1017, %v1013
  %v1378 = vpack.c.b16 %v1018, %v1014
  %v1379 = vpack.c.b16 %v1019, %v1015
  %v1380 = vpack.c.b16 %v1024, %v1020
  %v1381 = vpack.c.b16 %v1025, %v1021
  %v1382 = vpack.c.b16 %v1026, %v1022
  %v1383 = vpack.c.b16 %v1027, %v1023
  %v1384 = vpack.c.b16 %v1032, %v1028
  %v1385 = vpack.c.b16 %v1033, %v1029
  %v1386 = vpack.c.b16 %v1034, %v1030
  %v1387 = vpack.c.b16 %v1035, %v1031
  %v1388 = vpack.c.b16 %v1040, %v1036
  %v1389 = vpack.c.b16 %v1041, %v1037
  %v1390 = vpack.c.b16 %v1042, %v1038
  %v1391 = vpack.c.b16 %v1043, %v1039
  %v1392 = vpack.c.b16 %v1048, %v1044
  %v1393 = vpack.c.b16 %v1049, %v1045
  %v1394 = vpack.c.b16 %v1050, %v1046
  %v1395 = vpack.c.b16 %v1051, %v1047
  %v1396 = vpack.c.b16 %v1056, %v1052
  %v1397 = vpack.c.b16 %v1057, %v1053
  %v1398 = vpack.c.b16 %v1058, %v1054
  %v1399 = vpack.c.b16 %v1059, %v1055
  %v1400 = vpack.c.b16 %v1064, %v1060
  %v1401 = vpack.c.b16 %v1065, %v1061
  %v1402 = vpack.c.b16 %v1066, %v1062
  %v1403 = vpack.c.b16 %v1067, %v1063
  %v1404 = vpack.c.b16 %v1072, %v1068
  %v1405 = vpack.c.b16 %v1073, %v1069
  %v1406 = vpack.c.b16 %v1074, %v1070
  %v1407 = vpack.c.b16 %v1075, %v1071
  %v1408 = vpack.c.b16 %v1080, %v1076
  %v1409 = vpack.c.b16 %v1081, %v1077
  %v1410 = vpack.c.b16 %v1082, %v1078
  %v1411 = vpack.c.b16 %v1083, %v1079
  %v1412 = vpack.c.b16 %v1088, %v1084
  %v1413 = vpack.c.b16 %v1089, %v1085
  %v1414 = vpack.c.b16 %v1090, %v1086
  %v1415 = vpack.c.b16 %v1091, %v1087
  %v1416 = vpack.c.b16 %v1096, %v1092
  %v1417 = vpack.c.b16 %v1097, %v1093
  %v1418 = vpack.c.b16 %v1098, %v1094
  %v1419 = vpack.c.b16 %v1099, %v1095
  %v1420 = vpack.c.b16 %v1104, %v1100
  %v1421 = vpack.c.b16 %v1105, %v1101
  %v1422 = vpack.c.b16 %v1106, %v1102
  %v1423 = vpack.c.b16 %v1107, %v1103
  %v1424 = vpack.c.b16 %v1112, %v1108
  %v1425 = vpack.c.b16 %v1113, %v1109
  %v1426 = vpack.c.b16 %v1114, %v1110
  %v1427 = vpack.c.b16 %v1115, %v1111
  %v1428 = vpack.c.b16 %v1120, %v1116
  %v1429 = vpack.c.b16 %v1121, %v1117
  %v1430 = vpack.c.b16 %v1122, %v1118
  %v1431 = vpack.c.b16 %v1123, %v1119
  %v1432 = vpack.c.b16 %v1128, %v1124
  %v1433 = vpack.c.b16 %v1129, %v1125
  %v1434 = vpack.c.b16 %v1130, %v1126
  %v1435 = vpack.c.b16 %v1131, %v1127
  %v1436 = vpack.c.b16 %v1136, %v1132
  %v1437 = vpack.c.b16 %v1137, %v1133
  %v1438 = vpack.c.b16 %v1138, %v1134
  %v1439 = vpack.c.b16 %v1139, %v1135
  %v1440 = vpack.c.b16 %v1144, %v1140
  %v1441 = vpack.c.b16 %v1145, %v1141
  %v1442 = vpack.c.b16 %v1146, %v1142
  %v1443 = vpack.c.b16 %v1147, %v1143
  %v1444 = vpack.c.b16 %v1152, %v1148
  %v1445 = vpack.c.b16 %v1153, %v1149
  %v1446 = vpack.c.b16 %v1154, %v1150
  %v1447 = vpack.c.b16 %v1155, %v1151
  %v1448 = vpack.c.b16 %v1160, %v1156
  %v1449 = vpack.c.b16 %v1161, %v1157
  %v1450 = vpack.c.b16 %v1162, %v1158
  %v1451 = vpack.c.b16 %v1163, %v1159
  %v1452 = vpack.c.b16 %v1168, %v1164
  %v1453 = vpack.c.b16 %v1169, %v1165
  %v1454 = vpack.c.b16 %v1170, %v1166
  %v1455 = vpack.c.b16 %v1171, %v1167
  %v1456 = vpack.c.b16 %v1176, %v1172
  %v1457 = vpack.c.b16 %v1177, %v1173
  %v1458 = vpack.c.b16 %v1178, %v1174
  %v1459 = vpack.c.b16 %v1179, %v1175
  %v1460 = vpack.c.b16 %v1184, %v1180
  %v1461 = vpack.c.b16 %v1185, %v1181
  %v1462 = vpack.c.b16 %v1186, %v1182
  %v1463 = vpack.c.b16 %v1187, %v1183
  %v1464 = vpack.c.b16 %v1192, %v1188
  %v1465 = vpack.c.b16 %v1193, %v1189
  %v1466 = vpack.c.b16 %v1194, %v1190
  %v1467 = vpack.c.b16 %v1195, %v1191
  %v1468 = vpack.c.b16 %v1200, %v1196
  %v1469 = vpack.c.b16 %v1201, %v1197
  %v1470 = vpack.c.b16 %v1202, %v1198
  %v1471 = vpack.c.b16 %v1203, %v1199
  %v1472 = vpack.c.b16 %v1208, %v1204
  %v1473 = vpack.c.b16 %v1209, %v1205
  %v1474 = vpack.c.b16 %v1210, %v1206
  %v1475 = vpack.c.b16 %v1211, %v1207
  %v1476 = vpack.c.b16 %v1216, %v1212
  %v1477 = vpack.c.b16 %v1217, %v1213
  %v1478 = vpack.c.b16 %v1218, %v1214
  %v1479 = vpack.c.b16 %v1219, %v1215
  %v1480 = vpack.c.b16 %v1224, %v1220
  %v1481 = vpack.c.b16 %v1225, %v1221
  %v1482 = vpack.c.b16 %v1226, %v1222
  %v1483 = vpack.c.b16 %v1227, %v1223
  %v1484 = vpack.c.b16 %v1232, %v1228
  %v1485 = vpack.c.b16 %v1233, %v1229
  %v1486 = vpack.c.b16 %v1234, %v1230
  %v1487 = vpack.c.b16 %v1235, %v1231
  %v1488 = vpack.c.b16 %v1240, %v1236
  %v1489 = vpack.c.b16 %v1241, %v1237
  %v1490 = vpack.c.b16 %v1242, %v1238
  %v1491 = vpack.c.b16 %v1243, %v1239
  %v1492 = vpack.c.b16 %v1248, %v1244
  %v1493 = vpack.c.b16 %v1249, %v1245
  %v1494 = vpack.c.b16 %v1250, %v1246
  %v1495 = vpack.c.b16 %v1251, %v1247
  %v1496 = vpack.c.b16 %v1256, %v1252
  %v1497 = vpack.c.b16 %v1257, %v1253
  %v1498 = vpack.c.b16 %v1258, %v1254
  %v1499 = vpack.c.b16 %v1259, %v1255
  %v1500 = vpack.c.b16 %v1264, %v1260
  %v1501 = vpack.c.b16 %v1265, %v1261
  %v1502 = vpack.c.b16 %v1266, %v1262
  %v1503 = vpack.c.b16 %v1267, %v1263
  %v1504 = vpack.c.b16 %v1272, %v1268
  %v1505 = vpack.c.b16 %v1273, %v1269
  %v1506 = vpack.c.b16 %v1274, %v1270
  %v1507 = vpack.c.b16 %v1275, %v1271
  %v1508 = vpack.c.b16 %v1280, %v1276
  %v1509 = vpack.c.b16 %v1281, %v1277
  %v1510 = vpack.c.b16 %v1282, %v1278
  %v1511 = vpack.c.b16 %v1283, %v1279
  %v1512 = vpack.c.b16 %v1288, %v1284
  %v1513 = vpack.c.b16 %v1289, %v1285
  %v1514 = vpack.c.b16 %v1290, %v1286
  %v1515 = vpack.c.b16 %v1291, %v1287
  %1740 = vmatpush.bf16.msra.mxu0 %v1320
  %1741 = vmatpush.bf16.msra.mxu0 %v1316
  %1742 = vmatpush.bf16.msra.mxu0 %v1312
  %1743 = vmatpush.bf16.msra.mxu0 %v1308
  %1744 = vmatpush.bf16.msra.mxu0 %v1304
  %1745 = vmatpush.bf16.msra.mxu0 %v1300
  %1746 = vmatpush.bf16.msra.mxu0 %v1296
  %1747 = vmatpush.bf16.msra.mxu0 %v1292
  %1748 = vmatmul.bf16.gmra.mxu0 %v508
  %v1749 = vpop.f32.mrf.mxu0
  %v1750 = vadd.f32 %v324, %v1749
  %v1751 = vpop.f32.mrf.mxu0
  %v1752 = vadd.f32 %v324, %v1751
  %1753 = vmatmul.bf16.gmra.mxu0 %v515
  %v1754 = vpop.f32.mrf.mxu0
  %v1755 = vadd.f32 %v324, %v1754
  %v1756 = vpop.f32.mrf.mxu0
  %v1757 = vadd.f32 %v324, %v1756
  %1758 = vmatmul.bf16.gmra.mxu0 %v522
  %v1759 = vpop.f32.mrf.mxu0
  %v1760 = vadd.f32 %v324, %v1759
  %v1761 = vpop.f32.mrf.mxu0
  %v1762 = vadd.f32 %v324, %v1761
  %1763 = vmatmul.bf16.gmra.mxu0 %v529
  %v1764 = vpop.f32.mrf.mxu0
  %v1765 = vadd.f32 %v324, %v1764
  %v1766 = vpop.f32.mrf.mxu0
  %v1767 = vadd.f32 %v324, %v1766
  %1768 = vmatmul.bf16.gmra.mxu0 %v536
  %v1769 = vpop.f32.mrf.mxu0
  %v1770 = vadd.f32 %v324, %v1769
  %v1771 = vpop.f32.mrf.mxu0
  %v1772 = vadd.f32 %v324, %v1771
  %1773 = vmatmul.bf16.gmra.mxu0 %v543
  %v1774 = vpop.f32.mrf.mxu0
  %v1775 = vadd.f32 %v324, %v1774
  %v1776 = vpop.f32.mrf.mxu0
  %v1777 = vadd.f32 %v324, %v1776
  %1778 = vmatmul.bf16.gmra.mxu0 %v550
  %v1779 = vpop.f32.mrf.mxu0
  %v1780 = vadd.f32 %v324, %v1779
  %v1781 = vpop.f32.mrf.mxu0
  %v1782 = vadd.f32 %v324, %v1781
  %1783 = vmatmul.bf16.gmra.mxu0 %v557
  %v1784 = vpop.f32.mrf.mxu0
  %v1785 = vadd.f32 %v324, %v1784
  %v1786 = vpop.f32.mrf.mxu0
  %v1787 = vadd.f32 %v324, %v1786
  %1788 = vdwg.mxu0
  %1789 = vmatpush.bf16.msra.mxu0 %v1352
  %1790 = vmatpush.bf16.msra.mxu0 %v1348
  %1791 = vmatpush.bf16.msra.mxu0 %v1344
  %1792 = vmatpush.bf16.msra.mxu0 %v1340
  %1793 = vmatpush.bf16.msra.mxu0 %v1336
  %1794 = vmatpush.bf16.msra.mxu0 %v1332
  %1795 = vmatpush.bf16.msra.mxu0 %v1328
  %1796 = vmatpush.bf16.msra.mxu0 %v1324
  %1797 = vmatmul.bf16.gmra.mxu0 %v509
  %v1798 = vpop.f32.mrf.mxu0
  %v1799 = vadd.f32 %v1750, %v1798
  %v1800 = vpop.f32.mrf.mxu0
  %v1801 = vadd.f32 %v1752, %v1800
  %1802 = vmatmul.bf16.gmra.mxu0 %v516
  %v1803 = vpop.f32.mrf.mxu0
  %v1804 = vadd.f32 %v1755, %v1803
  %v1805 = vpop.f32.mrf.mxu0
  %v1806 = vadd.f32 %v1757, %v1805
  %1807 = vmatmul.bf16.gmra.mxu0 %v523
  %v1808 = vpop.f32.mrf.mxu0
  %v1809 = vadd.f32 %v1760, %v1808
  %v1810 = vpop.f32.mrf.mxu0
  %v1811 = vadd.f32 %v1762, %v1810
  %1812 = vmatmul.bf16.gmra.mxu0 %v530
  %v1813 = vpop.f32.mrf.mxu0
  %v1814 = vadd.f32 %v1765, %v1813
  %v1815 = vpop.f32.mrf.mxu0
  %v1816 = vadd.f32 %v1767, %v1815
  %1817 = vmatmul.bf16.gmra.mxu0 %v537
  %v1818 = vpop.f32.mrf.mxu0
  %v1819 = vadd.f32 %v1770, %v1818
  %v1820 = vpop.f32.mrf.mxu0
  %v1821 = vadd.f32 %v1772, %v1820
  %1822 = vmatmul.bf16.gmra.mxu0 %v544
  %v1823 = vpop.f32.mrf.mxu0
  %v1824 = vadd.f32 %v1775, %v1823
  %v1825 = vpop.f32.mrf.mxu0
  %v1826 = vadd.f32 %v1777, %v1825
  %1827 = vmatmul.bf16.gmra.mxu0 %v551
  %v1828 = vpop.f32.mrf.mxu0
  %v1829 = vadd.f32 %v1780, %v1828
  %v1830 = vpop.f32.mrf.mxu0
  %v1831 = vadd.f32 %v1782, %v1830
  %1832 = vmatmul.bf16.gmra.mxu0 %v558
  %v1833 = vpop.f32.mrf.mxu0
  %v1834 = vadd.f32 %v1785, %v1833
  %v1835 = vpop.f32.mrf.mxu0
  %v1836 = vadd.f32 %v1787, %v1835
  %1837 = vdwg.mxu0
  %1838 = vmatpush.bf16.msra.mxu0 %v1384
  %1839 = vmatpush.bf16.msra.mxu0 %v1380
  %1840 = vmatpush.bf16.msra.mxu0 %v1376
  %1841 = vmatpush.bf16.msra.mxu0 %v1372
  %1842 = vmatpush.bf16.msra.mxu0 %v1368
  %1843 = vmatpush.bf16.msra.mxu0 %v1364
  %1844 = vmatpush.bf16.msra.mxu0 %v1360
  %1845 = vmatpush.bf16.msra.mxu0 %v1356
  %1846 = vmatmul.bf16.gmra.mxu0 %v510
  %v1847 = vpop.f32.mrf.mxu0
  %v1848 = vadd.f32 %v1799, %v1847
  %v1849 = vpop.f32.mrf.mxu0
  %v1850 = vadd.f32 %v1801, %v1849
  %1851 = vmatmul.bf16.gmra.mxu0 %v517
  %v1852 = vpop.f32.mrf.mxu0
  %v1853 = vadd.f32 %v1804, %v1852
  %v1854 = vpop.f32.mrf.mxu0
  %v1855 = vadd.f32 %v1806, %v1854
  %1856 = vmatmul.bf16.gmra.mxu0 %v524
  %v1857 = vpop.f32.mrf.mxu0
  %v1858 = vadd.f32 %v1809, %v1857
  %v1859 = vpop.f32.mrf.mxu0
  %v1860 = vadd.f32 %v1811, %v1859
  %1861 = vmatmul.bf16.gmra.mxu0 %v531
  %v1862 = vpop.f32.mrf.mxu0
  %v1863 = vadd.f32 %v1814, %v1862
  %v1864 = vpop.f32.mrf.mxu0
  %v1865 = vadd.f32 %v1816, %v1864
  %1866 = vmatmul.bf16.gmra.mxu0 %v538
  %v1867 = vpop.f32.mrf.mxu0
  %v1868 = vadd.f32 %v1819, %v1867
  %v1869 = vpop.f32.mrf.mxu0
  %v1870 = vadd.f32 %v1821, %v1869
  %1871 = vmatmul.bf16.gmra.mxu0 %v545
  %v1872 = vpop.f32.mrf.mxu0
  %v1873 = vadd.f32 %v1824, %v1872
  %v1874 = vpop.f32.mrf.mxu0
  %v1875 = vadd.f32 %v1826, %v1874
  %1876 = vmatmul.bf16.gmra.mxu0 %v552
  %v1877 = vpop.f32.mrf.mxu0
  %v1878 = vadd.f32 %v1829, %v1877
  %v1879 = vpop.f32.mrf.mxu0
  %v1880 = vadd.f32 %v1831, %v1879
  %1881 = vmatmul.bf16.gmra.mxu0 %v559
  %v1882 = vpop.f32.mrf.mxu0
  %v1883 = vadd.f32 %v1834, %v1882
  %v1884 = vpop.f32.mrf.mxu0
  %v1885 = vadd.f32 %v1836, %v1884
  %1886 = vdwg.mxu0
  %1887 = vmatpush.bf16.msra.mxu0 %v1416
  %1888 = vmatpush.bf16.msra.mxu0 %v1412
  %1889 = vmatpush.bf16.msra.mxu0 %v1408
  %1890 = vmatpush.bf16.msra.mxu0 %v1404
  %1891 = vmatpush.bf16.msra.mxu0 %v1400
  %1892 = vmatpush.bf16.msra.mxu0 %v1396
  %1893 = vmatpush.bf16.msra.mxu0 %v1392
  %1894 = vmatpush.bf16.msra.mxu0 %v1388
  %1895 = vmatmul.bf16.gmra.mxu0 %v511
  %v1896 = vpop.f32.mrf.mxu0
  %v1897 = vadd.f32 %v1848, %v1896
  %v1898 = vpop.f32.mrf.mxu0
  %v1899 = vadd.f32 %v1850, %v1898
  %1900 = vmatmul.bf16.gmra.mxu0 %v518
  %v1901 = vpop.f32.mrf.mxu0
  %v1902 = vadd.f32 %v1853, %v1901
  %v1903 = vpop.f32.mrf.mxu0
  %v1904 = vadd.f32 %v1855, %v1903
  %1905 = vmatmul.bf16.gmra.mxu0 %v525
  %v1906 = vpop.f32.mrf.mxu0
  %v1907 = vadd.f32 %v1858, %v1906
  %v1908 = vpop.f32.mrf.mxu0
  %v1909 = vadd.f32 %v1860, %v1908
  %1910 = vmatmul.bf16.gmra.mxu0 %v532
  %v1911 = vpop.f32.mrf.mxu0
  %v1912 = vadd.f32 %v1863, %v1911
  %v1913 = vpop.f32.mrf.mxu0
  %v1914 = vadd.f32 %v1865, %v1913
  %1915 = vmatmul.bf16.gmra.mxu0 %v539
  %v1916 = vpop.f32.mrf.mxu0
  %v1917 = vadd.f32 %v1868, %v1916
  %v1918 = vpop.f32.mrf.mxu0
  %v1919 = vadd.f32 %v1870, %v1918
  %1920 = vmatmul.bf16.gmra.mxu0 %v546
  %v1921 = vpop.f32.mrf.mxu0
  %v1922 = vadd.f32 %v1873, %v1921
  %v1923 = vpop.f32.mrf.mxu0
  %v1924 = vadd.f32 %v1875, %v1923
  %1925 = vmatmul.bf16.gmra.mxu0 %v553
  %v1926 = vpop.f32.mrf.mxu0
  %v1927 = vadd.f32 %v1878, %v1926
  %v1928 = vpop.f32.mrf.mxu0
  %v1929 = vadd.f32 %v1880, %v1928
  %1930 = vmatmul.bf16.gmra.mxu0 %v560
  %v1931 = vpop.f32.mrf.mxu0
  %v1932 = vadd.f32 %v1883, %v1931
  %v1933 = vpop.f32.mrf.mxu0
  %v1934 = vadd.f32 %v1885, %v1933
  %1935 = vdwg.mxu0
  %1936 = vmatpush.bf16.msra.mxu0 %v1448
  %1937 = vmatpush.bf16.msra.mxu0 %v1444
  %1938 = vmatpush.bf16.msra.mxu0 %v1440
  %1939 = vmatpush.bf16.msra.mxu0 %v1436
  %1940 = vmatpush.bf16.msra.mxu0 %v1432
  %1941 = vmatpush.bf16.msra.mxu0 %v1428
  %1942 = vmatpush.bf16.msra.mxu0 %v1424
  %1943 = vmatpush.bf16.msra.mxu0 %v1420
  %1944 = vmatmul.bf16.gmra.mxu0 %v512
  %v1945 = vpop.f32.mrf.mxu0
  %v1946 = vadd.f32 %v1897, %v1945
  %v1947 = vpop.f32.mrf.mxu0
  %v1948 = vadd.f32 %v1899, %v1947
  %1949 = vmatmul.bf16.gmra.mxu0 %v519
  %v1950 = vpop.f32.mrf.mxu0
  %v1951 = vadd.f32 %v1902, %v1950
  %v1952 = vpop.f32.mrf.mxu0
  %v1953 = vadd.f32 %v1904, %v1952
  %1954 = vmatmul.bf16.gmra.mxu0 %v526
  %v1955 = vpop.f32.mrf.mxu0
  %v1956 = vadd.f32 %v1907, %v1955
  %v1957 = vpop.f32.mrf.mxu0
  %v1958 = vadd.f32 %v1909, %v1957
  %1959 = vmatmul.bf16.gmra.mxu0 %v533
  %v1960 = vpop.f32.mrf.mxu0
  %v1961 = vadd.f32 %v1912, %v1960
  %v1962 = vpop.f32.mrf.mxu0
  %v1963 = vadd.f32 %v1914, %v1962
  %1964 = vmatmul.bf16.gmra.mxu0 %v540
  %v1965 = vpop.f32.mrf.mxu0
  %v1966 = vadd.f32 %v1917, %v1965
  %v1967 = vpop.f32.mrf.mxu0
  %v1968 = vadd.f32 %v1919, %v1967
  %1969 = vmatmul.bf16.gmra.mxu0 %v547
  %v1970 = vpop.f32.mrf.mxu0
  %v1971 = vadd.f32 %v1922, %v1970
  %v1972 = vpop.f32.mrf.mxu0
  %v1973 = vadd.f32 %v1924, %v1972
  %1974 = vmatmul.bf16.gmra.mxu0 %v554
  %v1975 = vpop.f32.mrf.mxu0
  %v1976 = vadd.f32 %v1927, %v1975
  %v1977 = vpop.f32.mrf.mxu0
  %v1978 = vadd.f32 %v1929, %v1977
  %1979 = vmatmul.bf16.gmra.mxu0 %v561
  %v1980 = vpop.f32.mrf.mxu0
  %v1981 = vadd.f32 %v1932, %v1980
  %v1982 = vpop.f32.mrf.mxu0
  %v1983 = vadd.f32 %v1934, %v1982
  %1984 = vdwg.mxu0
  %1985 = vmatpush.bf16.msra.mxu0 %v1480
  %1986 = vmatpush.bf16.msra.mxu0 %v1476
  %1987 = vmatpush.bf16.msra.mxu0 %v1472
  %1988 = vmatpush.bf16.msra.mxu0 %v1468
  %1989 = vmatpush.bf16.msra.mxu0 %v1464
  %1990 = vmatpush.bf16.msra.mxu0 %v1460
  %1991 = vmatpush.bf16.msra.mxu0 %v1456
  %1992 = vmatpush.bf16.msra.mxu0 %v1452
  %1993 = vmatmul.bf16.gmra.mxu0 %v513
  %v1994 = vpop.f32.mrf.mxu0
  %v1995 = vadd.f32 %v1946, %v1994
  %v1996 = vpop.f32.mrf.mxu0
  %v1997 = vadd.f32 %v1948, %v1996
  %1998 = vmatmul.bf16.gmra.mxu0 %v520
  %v1999 = vpop.f32.mrf.mxu0
  %v2000 = vadd.f32 %v1951, %v1999
  %v2001 = vpop.f32.mrf.mxu0
  %v2002 = vadd.f32 %v1953, %v2001
  %2003 = vmatmul.bf16.gmra.mxu0 %v527
  %v2004 = vpop.f32.mrf.mxu0
  %v2005 = vadd.f32 %v1956, %v2004
  %v2006 = vpop.f32.mrf.mxu0
  %v2007 = vadd.f32 %v1958, %v2006
  %2008 = vmatmul.bf16.gmra.mxu0 %v534
  %v2009 = vpop.f32.mrf.mxu0
  %v2010 = vadd.f32 %v1961, %v2009
  %v2011 = vpop.f32.mrf.mxu0
  %v2012 = vadd.f32 %v1963, %v2011
  %2013 = vmatmul.bf16.gmra.mxu0 %v541
  %v2014 = vpop.f32.mrf.mxu0
  %v2015 = vadd.f32 %v1966, %v2014
  %v2016 = vpop.f32.mrf.mxu0
  %v2017 = vadd.f32 %v1968, %v2016
  %2018 = vmatmul.bf16.gmra.mxu0 %v548
  %v2019 = vpop.f32.mrf.mxu0
  %v2020 = vadd.f32 %v1971, %v2019
  %v2021 = vpop.f32.mrf.mxu0
  %v2022 = vadd.f32 %v1973, %v2021
  %2023 = vmatmul.bf16.gmra.mxu0 %v555
  %v2024 = vpop.f32.mrf.mxu0
  %v2025 = vadd.f32 %v1976, %v2024
  %v2026 = vpop.f32.mrf.mxu0
  %v2027 = vadd.f32 %v1978, %v2026
  %2028 = vmatmul.bf16.gmra.mxu0 %v562
  %v2029 = vpop.f32.mrf.mxu0
  %v2030 = vadd.f32 %v1981, %v2029
  %v2031 = vpop.f32.mrf.mxu0
  %v2032 = vadd.f32 %v1983, %v2031
  %2033 = vdwg.mxu0
  %2034 = vmatpush.bf16.msra.mxu0 %v1512
  %2035 = vmatpush.bf16.msra.mxu0 %v1508
  %2036 = vmatpush.bf16.msra.mxu0 %v1504
  %2037 = vmatpush.bf16.msra.mxu0 %v1500
  %2038 = vmatpush.bf16.msra.mxu0 %v1496
  %2039 = vmatpush.bf16.msra.mxu0 %v1492
  %2040 = vmatpush.bf16.msra.mxu0 %v1488
  %2041 = vmatpush.bf16.msra.mxu0 %v1484
  %2042 = vmatmul.bf16.gmra.mxu0 %v514
  %v2043 = vpop.f32.mrf.mxu0
  %v2044 = vadd.f32 %v1995, %v2043
  %v2045 = vpop.f32.mrf.mxu0
  %v2046 = vadd.f32 %v1997, %v2045
  %2047 = vmatmul.bf16.gmra.mxu0 %v521
  %v2048 = vpop.f32.mrf.mxu0
  %v2049 = vadd.f32 %v2000, %v2048
  %v2050 = vpop.f32.mrf.mxu0
  %v2051 = vadd.f32 %v2002, %v2050
  %2052 = vmatmul.bf16.gmra.mxu0 %v528
  %v2053 = vpop.f32.mrf.mxu0
  %v2054 = vadd.f32 %v2005, %v2053
  %v2055 = vpop.f32.mrf.mxu0
  %v2056 = vadd.f32 %v2007, %v2055
  %2057 = vmatmul.bf16.gmra.mxu0 %v535
  %v2058 = vpop.f32.mrf.mxu0
  %v2059 = vadd.f32 %v2010, %v2058
  %v2060 = vpop.f32.mrf.mxu0
  %v2061 = vadd.f32 %v2012, %v2060
  %2062 = vmatmul.bf16.gmra.mxu0 %v542
  %v2063 = vpop.f32.mrf.mxu0
  %v2064 = vadd.f32 %v2015, %v2063
  %v2065 = vpop.f32.mrf.mxu0
  %v2066 = vadd.f32 %v2017, %v2065
  %2067 = vmatmul.bf16.gmra.mxu0 %v549
  %v2068 = vpop.f32.mrf.mxu0
  %v2069 = vadd.f32 %v2020, %v2068
  %v2070 = vpop.f32.mrf.mxu0
  %v2071 = vadd.f32 %v2022, %v2070
  %2072 = vmatmul.bf16.gmra.mxu0 %v556
  %v2073 = vpop.f32.mrf.mxu0
  %v2074 = vadd.f32 %v2025, %v2073
  %v2075 = vpop.f32.mrf.mxu0
  %v2076 = vadd.f32 %v2027, %v2075
  %2077 = vmatmul.bf16.gmra.mxu0 %v563
  %v2078 = vpop.f32.mrf.mxu0
  %v2079 = vadd.f32 %v2030, %v2078
  %v2080 = vpop.f32.mrf.mxu0
  %v2081 = vadd.f32 %v2032, %v2080
  %2082 = vdwg.mxu0
  %2083 = vmatpush.bf16.msra.mxu0 %v1321
  %2084 = vmatpush.bf16.msra.mxu0 %v1317
  %2085 = vmatpush.bf16.msra.mxu0 %v1313
  %2086 = vmatpush.bf16.msra.mxu0 %v1309
  %2087 = vmatpush.bf16.msra.mxu0 %v1305
  %2088 = vmatpush.bf16.msra.mxu0 %v1301
  %2089 = vmatpush.bf16.msra.mxu0 %v1297
  %2090 = vmatpush.bf16.msra.mxu0 %v1293
  %2091 = vmatmul.bf16.gmra.mxu0 %v508
  %v2092 = vpop.f32.mrf.mxu0
  %v2093 = vadd.f32 %v325, %v2092
  %v2094 = vpop.f32.mrf.mxu0
  %v2095 = vadd.f32 %v325, %v2094
  %2096 = vmatmul.bf16.gmra.mxu0 %v515
  %v2097 = vpop.f32.mrf.mxu0
  %v2098 = vadd.f32 %v325, %v2097
  %v2099 = vpop.f32.mrf.mxu0
  %v2100 = vadd.f32 %v325, %v2099
  %2101 = vmatmul.bf16.gmra.mxu0 %v522
  %v2102 = vpop.f32.mrf.mxu0
  %v2103 = vadd.f32 %v325, %v2102
  %v2104 = vpop.f32.mrf.mxu0
  %v2105 = vadd.f32 %v325, %v2104
  %2106 = vmatmul.bf16.gmra.mxu0 %v529
  %v2107 = vpop.f32.mrf.mxu0
  %v2108 = vadd.f32 %v325, %v2107
  %v2109 = vpop.f32.mrf.mxu0
  %v2110 = vadd.f32 %v325, %v2109
  %2111 = vmatmul.bf16.gmra.mxu0 %v536
  %v2112 = vpop.f32.mrf.mxu0
  %v2113 = vadd.f32 %v325, %v2112
  %v2114 = vpop.f32.mrf.mxu0
  %v2115 = vadd.f32 %v325, %v2114
  %2116 = vmatmul.bf16.gmra.mxu0 %v543
  %v2117 = vpop.f32.mrf.mxu0
  %v2118 = vadd.f32 %v325, %v2117
  %v2119 = vpop.f32.mrf.mxu0
  %v2120 = vadd.f32 %v325, %v2119
  %2121 = vmatmul.bf16.gmra.mxu0 %v550
  %v2122 = vpop.f32.mrf.mxu0
  %v2123 = vadd.f32 %v325, %v2122
  %v2124 = vpop.f32.mrf.mxu0
  %v2125 = vadd.f32 %v325, %v2124
  %2126 = vmatmul.bf16.gmra.mxu0 %v557
  %v2127 = vpop.f32.mrf.mxu0
  %v2128 = vadd.f32 %v325, %v2127
  %v2129 = vpop.f32.mrf.mxu0
  %v2130 = vadd.f32 %v325, %v2129
  %2131 = vdwg.mxu0
  %2132 = vmatpush.bf16.msra.mxu0 %v1353
  %2133 = vmatpush.bf16.msra.mxu0 %v1349
  %2134 = vmatpush.bf16.msra.mxu0 %v1345
  %2135 = vmatpush.bf16.msra.mxu0 %v1341
  %2136 = vmatpush.bf16.msra.mxu0 %v1337
  %2137 = vmatpush.bf16.msra.mxu0 %v1333
  %2138 = vmatpush.bf16.msra.mxu0 %v1329
  %2139 = vmatpush.bf16.msra.mxu0 %v1325
  %2140 = vmatmul.bf16.gmra.mxu0 %v509
  %v2141 = vpop.f32.mrf.mxu0
  %v2142 = vadd.f32 %v2093, %v2141
  %v2143 = vpop.f32.mrf.mxu0
  %v2144 = vadd.f32 %v2095, %v2143
  %2145 = vmatmul.bf16.gmra.mxu0 %v516
  %v2146 = vpop.f32.mrf.mxu0
  %v2147 = vadd.f32 %v2098, %v2146
  %v2148 = vpop.f32.mrf.mxu0
  %v2149 = vadd.f32 %v2100, %v2148
  %2150 = vmatmul.bf16.gmra.mxu0 %v523
  %v2151 = vpop.f32.mrf.mxu0
  %v2152 = vadd.f32 %v2103, %v2151
  %v2153 = vpop.f32.mrf.mxu0
  %v2154 = vadd.f32 %v2105, %v2153
  %2155 = vmatmul.bf16.gmra.mxu0 %v530
  %v2156 = vpop.f32.mrf.mxu0
  %v2157 = vadd.f32 %v2108, %v2156
  %v2158 = vpop.f32.mrf.mxu0
  %v2159 = vadd.f32 %v2110, %v2158
  %2160 = vmatmul.bf16.gmra.mxu0 %v537
  %v2161 = vpop.f32.mrf.mxu0
  %v2162 = vadd.f32 %v2113, %v2161
  %v2163 = vpop.f32.mrf.mxu0
  %v2164 = vadd.f32 %v2115, %v2163
  %2165 = vmatmul.bf16.gmra.mxu0 %v544
  %v2166 = vpop.f32.mrf.mxu0
  %v2167 = vadd.f32 %v2118, %v2166
  %v2168 = vpop.f32.mrf.mxu0
  %v2169 = vadd.f32 %v2120, %v2168
  %2170 = vmatmul.bf16.gmra.mxu0 %v551
  %v2171 = vpop.f32.mrf.mxu0
  %v2172 = vadd.f32 %v2123, %v2171
  %v2173 = vpop.f32.mrf.mxu0
  %v2174 = vadd.f32 %v2125, %v2173
  %2175 = vmatmul.bf16.gmra.mxu0 %v558
  %v2176 = vpop.f32.mrf.mxu0
  %v2177 = vadd.f32 %v2128, %v2176
  %v2178 = vpop.f32.mrf.mxu0
  %v2179 = vadd.f32 %v2130, %v2178
  %2180 = vdwg.mxu0
  %2181 = vmatpush.bf16.msra.mxu0 %v1385
  %2182 = vmatpush.bf16.msra.mxu0 %v1381
  %2183 = vmatpush.bf16.msra.mxu0 %v1377
  %2184 = vmatpush.bf16.msra.mxu0 %v1373
  %2185 = vmatpush.bf16.msra.mxu0 %v1369
  %2186 = vmatpush.bf16.msra.mxu0 %v1365
  %2187 = vmatpush.bf16.msra.mxu0 %v1361
  %2188 = vmatpush.bf16.msra.mxu0 %v1357
  %2189 = vmatmul.bf16.gmra.mxu0 %v510
  %v2190 = vpop.f32.mrf.mxu0
  %v2191 = vadd.f32 %v2142, %v2190
  %v2192 = vpop.f32.mrf.mxu0
  %v2193 = vadd.f32 %v2144, %v2192
  %2194 = vmatmul.bf16.gmra.mxu0 %v517
  %v2195 = vpop.f32.mrf.mxu0
  %v2196 = vadd.f32 %v2147, %v2195
  %v2197 = vpop.f32.mrf.mxu0
  %v2198 = vadd.f32 %v2149, %v2197
  %2199 = vmatmul.bf16.gmra.mxu0 %v524
  %v2200 = vpop.f32.mrf.mxu0
  %v2201 = vadd.f32 %v2152, %v2200
  %v2202 = vpop.f32.mrf.mxu0
  %v2203 = vadd.f32 %v2154, %v2202
  %2204 = vmatmul.bf16.gmra.mxu0 %v531
  %v2205 = vpop.f32.mrf.mxu0
  %v2206 = vadd.f32 %v2157, %v2205
  %v2207 = vpop.f32.mrf.mxu0
  %v2208 = vadd.f32 %v2159, %v2207
  %2209 = vmatmul.bf16.gmra.mxu0 %v538
  %v2210 = vpop.f32.mrf.mxu0
  %v2211 = vadd.f32 %v2162, %v2210
  %v2212 = vpop.f32.mrf.mxu0
  %v2213 = vadd.f32 %v2164, %v2212
  %2214 = vmatmul.bf16.gmra.mxu0 %v545
  %v2215 = vpop.f32.mrf.mxu0
  %v2216 = vadd.f32 %v2167, %v2215
  %v2217 = vpop.f32.mrf.mxu0
  %v2218 = vadd.f32 %v2169, %v2217
  %2219 = vmatmul.bf16.gmra.mxu0 %v552
  %v2220 = vpop.f32.mrf.mxu0
  %v2221 = vadd.f32 %v2172, %v2220
  %v2222 = vpop.f32.mrf.mxu0
  %v2223 = vadd.f32 %v2174, %v2222
  %2224 = vmatmul.bf16.gmra.mxu0 %v559
  %v2225 = vpop.f32.mrf.mxu0
  %v2226 = vadd.f32 %v2177, %v2225
  %v2227 = vpop.f32.mrf.mxu0
  %v2228 = vadd.f32 %v2179, %v2227
  %2229 = vdwg.mxu0
  %2230 = vmatpush.bf16.msra.mxu0 %v1417
  %2231 = vmatpush.bf16.msra.mxu0 %v1413
  %2232 = vmatpush.bf16.msra.mxu0 %v1409
  %2233 = vmatpush.bf16.msra.mxu0 %v1405
  %2234 = vmatpush.bf16.msra.mxu0 %v1401
  %2235 = vmatpush.bf16.msra.mxu0 %v1397
  %2236 = vmatpush.bf16.msra.mxu0 %v1393
  %2237 = vmatpush.bf16.msra.mxu0 %v1389
  %2238 = vmatmul.bf16.gmra.mxu0 %v511
  %v2239 = vpop.f32.mrf.mxu0
  %v2240 = vadd.f32 %v2191, %v2239
  %v2241 = vpop.f32.mrf.mxu0
  %v2242 = vadd.f32 %v2193, %v2241
  %2243 = vmatmul.bf16.gmra.mxu0 %v518
  %v2244 = vpop.f32.mrf.mxu0
  %v2245 = vadd.f32 %v2196, %v2244
  %v2246 = vpop.f32.mrf.mxu0
  %v2247 = vadd.f32 %v2198, %v2246
  %2248 = vmatmul.bf16.gmra.mxu0 %v525
  %v2249 = vpop.f32.mrf.mxu0
  %v2250 = vadd.f32 %v2201, %v2249
  %v2251 = vpop.f32.mrf.mxu0
  %v2252 = vadd.f32 %v2203, %v2251
  %2253 = vmatmul.bf16.gmra.mxu0 %v532
  %v2254 = vpop.f32.mrf.mxu0
  %v2255 = vadd.f32 %v2206, %v2254
  %v2256 = vpop.f32.mrf.mxu0
  %v2257 = vadd.f32 %v2208, %v2256
  %2258 = vmatmul.bf16.gmra.mxu0 %v539
  %v2259 = vpop.f32.mrf.mxu0
  %v2260 = vadd.f32 %v2211, %v2259
  %v2261 = vpop.f32.mrf.mxu0
  %v2262 = vadd.f32 %v2213, %v2261
  %2263 = vmatmul.bf16.gmra.mxu0 %v546
  %v2264 = vpop.f32.mrf.mxu0
  %v2265 = vadd.f32 %v2216, %v2264
  %v2266 = vpop.f32.mrf.mxu0
  %v2267 = vadd.f32 %v2218, %v2266
  %2268 = vmatmul.bf16.gmra.mxu0 %v553
  %v2269 = vpop.f32.mrf.mxu0
  %v2270 = vadd.f32 %v2221, %v2269
  %v2271 = vpop.f32.mrf.mxu0
  %v2272 = vadd.f32 %v2223, %v2271
  %2273 = vmatmul.bf16.gmra.mxu0 %v560
  %v2274 = vpop.f32.mrf.mxu0
  %v2275 = vadd.f32 %v2226, %v2274
  %v2276 = vpop.f32.mrf.mxu0
  %v2277 = vadd.f32 %v2228, %v2276
  %2278 = vdwg.mxu0
  %2279 = vmatpush.bf16.msra.mxu0 %v1449
  %2280 = vmatpush.bf16.msra.mxu0 %v1445
  %2281 = vmatpush.bf16.msra.mxu0 %v1441
  %2282 = vmatpush.bf16.msra.mxu0 %v1437
  %2283 = vmatpush.bf16.msra.mxu0 %v1433
  %2284 = vmatpush.bf16.msra.mxu0 %v1429
  %2285 = vmatpush.bf16.msra.mxu0 %v1425
  %2286 = vmatpush.bf16.msra.mxu0 %v1421
  %2287 = vmatmul.bf16.gmra.mxu0 %v512
  %v2288 = vpop.f32.mrf.mxu0
  %v2289 = vadd.f32 %v2240, %v2288
  %v2290 = vpop.f32.mrf.mxu0
  %v2291 = vadd.f32 %v2242, %v2290
  %2292 = vmatmul.bf16.gmra.mxu0 %v519
  %v2293 = vpop.f32.mrf.mxu0
  %v2294 = vadd.f32 %v2245, %v2293
  %v2295 = vpop.f32.mrf.mxu0
  %v2296 = vadd.f32 %v2247, %v2295
  %2297 = vmatmul.bf16.gmra.mxu0 %v526
  %v2298 = vpop.f32.mrf.mxu0
  %v2299 = vadd.f32 %v2250, %v2298
  %v2300 = vpop.f32.mrf.mxu0
  %v2301 = vadd.f32 %v2252, %v2300
  %2302 = vmatmul.bf16.gmra.mxu0 %v533
  %v2303 = vpop.f32.mrf.mxu0
  %v2304 = vadd.f32 %v2255, %v2303
  %v2305 = vpop.f32.mrf.mxu0
  %v2306 = vadd.f32 %v2257, %v2305
  %2307 = vmatmul.bf16.gmra.mxu0 %v540
  %v2308 = vpop.f32.mrf.mxu0
  %v2309 = vadd.f32 %v2260, %v2308
  %v2310 = vpop.f32.mrf.mxu0
  %v2311 = vadd.f32 %v2262, %v2310
  %2312 = vmatmul.bf16.gmra.mxu0 %v547
  %v2313 = vpop.f32.mrf.mxu0
  %v2314 = vadd.f32 %v2265, %v2313
  %v2315 = vpop.f32.mrf.mxu0
  %v2316 = vadd.f32 %v2267, %v2315
  %2317 = vmatmul.bf16.gmra.mxu0 %v554
  %v2318 = vpop.f32.mrf.mxu0
  %v2319 = vadd.f32 %v2270, %v2318
  %v2320 = vpop.f32.mrf.mxu0
  %v2321 = vadd.f32 %v2272, %v2320
  %2322 = vmatmul.bf16.gmra.mxu0 %v561
  %v2323 = vpop.f32.mrf.mxu0
  %v2324 = vadd.f32 %v2275, %v2323
  %v2325 = vpop.f32.mrf.mxu0
  %v2326 = vadd.f32 %v2277, %v2325
  %2327 = vdwg.mxu0
  %2328 = vmatpush.bf16.msra.mxu0 %v1481
  %2329 = vmatpush.bf16.msra.mxu0 %v1477
  %2330 = vmatpush.bf16.msra.mxu0 %v1473
  %2331 = vmatpush.bf16.msra.mxu0 %v1469
  %2332 = vmatpush.bf16.msra.mxu0 %v1465
  %2333 = vmatpush.bf16.msra.mxu0 %v1461
  %2334 = vmatpush.bf16.msra.mxu0 %v1457
  %2335 = vmatpush.bf16.msra.mxu0 %v1453
  %2336 = vmatmul.bf16.gmra.mxu0 %v513
  %v2337 = vpop.f32.mrf.mxu0
  %v2338 = vadd.f32 %v2289, %v2337
  %v2339 = vpop.f32.mrf.mxu0
  %v2340 = vadd.f32 %v2291, %v2339
  %2341 = vmatmul.bf16.gmra.mxu0 %v520
  %v2342 = vpop.f32.mrf.mxu0
  %v2343 = vadd.f32 %v2294, %v2342
  %v2344 = vpop.f32.mrf.mxu0
  %v2345 = vadd.f32 %v2296, %v2344
  %2346 = vmatmul.bf16.gmra.mxu0 %v527
  %v2347 = vpop.f32.mrf.mxu0
  %v2348 = vadd.f32 %v2299, %v2347
  %v2349 = vpop.f32.mrf.mxu0
  %v2350 = vadd.f32 %v2301, %v2349
  %2351 = vmatmul.bf16.gmra.mxu0 %v534
  %v2352 = vpop.f32.mrf.mxu0
  %v2353 = vadd.f32 %v2304, %v2352
  %v2354 = vpop.f32.mrf.mxu0
  %v2355 = vadd.f32 %v2306, %v2354
  %2356 = vmatmul.bf16.gmra.mxu0 %v541
  %v2357 = vpop.f32.mrf.mxu0
  %v2358 = vadd.f32 %v2309, %v2357
  %v2359 = vpop.f32.mrf.mxu0
  %v2360 = vadd.f32 %v2311, %v2359
  %2361 = vmatmul.bf16.gmra.mxu0 %v548
  %v2362 = vpop.f32.mrf.mxu0
  %v2363 = vadd.f32 %v2314, %v2362
  %v2364 = vpop.f32.mrf.mxu0
  %v2365 = vadd.f32 %v2316, %v2364
  %2366 = vmatmul.bf16.gmra.mxu0 %v555
  %v2367 = vpop.f32.mrf.mxu0
  %v2368 = vadd.f32 %v2319, %v2367
  %v2369 = vpop.f32.mrf.mxu0
  %v2370 = vadd.f32 %v2321, %v2369
  %2371 = vmatmul.bf16.gmra.mxu0 %v562
  %v2372 = vpop.f32.mrf.mxu0
  %v2373 = vadd.f32 %v2324, %v2372
  %v2374 = vpop.f32.mrf.mxu0
  %v2375 = vadd.f32 %v2326, %v2374
  %2376 = vdwg.mxu0
  %2377 = vmatpush.bf16.msra.mxu0 %v1513
  %2378 = vmatpush.bf16.msra.mxu0 %v1509
  %2379 = vmatpush.bf16.msra.mxu0 %v1505
  %2380 = vmatpush.bf16.msra.mxu0 %v1501
  %2381 = vmatpush.bf16.msra.mxu0 %v1497
  %2382 = vmatpush.bf16.msra.mxu0 %v1493
  %2383 = vmatpush.bf16.msra.mxu0 %v1489
  %2384 = vmatpush.bf16.msra.mxu0 %v1485
  %2385 = vmatmul.bf16.gmra.mxu0 %v514
  %v2386 = vpop.f32.mrf.mxu0
  %v2387 = vadd.f32 %v2338, %v2386
  %v2388 = vpop.f32.mrf.mxu0
  %v2389 = vadd.f32 %v2340, %v2388
  %2390 = vmatmul.bf16.gmra.mxu0 %v521
  %v2391 = vpop.f32.mrf.mxu0
  %v2392 = vadd.f32 %v2343, %v2391
  %v2393 = vpop.f32.mrf.mxu0
  %v2394 = vadd.f32 %v2345, %v2393
  %2395 = vmatmul.bf16.gmra.mxu0 %v528
  %v2396 = vpop.f32.mrf.mxu0
  %v2397 = vadd.f32 %v2348, %v2396
  %v2398 = vpop.f32.mrf.mxu0
  %v2399 = vadd.f32 %v2350, %v2398
  %2400 = vmatmul.bf16.gmra.mxu0 %v535
  %v2401 = vpop.f32.mrf.mxu0
  %v2402 = vadd.f32 %v2353, %v2401
  %v2403 = vpop.f32.mrf.mxu0
  %v2404 = vadd.f32 %v2355, %v2403
  %2405 = vmatmul.bf16.gmra.mxu0 %v542
  %v2406 = vpop.f32.mrf.mxu0
  %v2407 = vadd.f32 %v2358, %v2406
  %v2408 = vpop.f32.mrf.mxu0
  %v2409 = vadd.f32 %v2360, %v2408
  %2410 = vmatmul.bf16.gmra.mxu0 %v549
  %v2411 = vpop.f32.mrf.mxu0
  %v2412 = vadd.f32 %v2363, %v2411
  %v2413 = vpop.f32.mrf.mxu0
  %v2414 = vadd.f32 %v2365, %v2413
  %2415 = vmatmul.bf16.gmra.mxu0 %v556
  %v2416 = vpop.f32.mrf.mxu0
  %v2417 = vadd.f32 %v2368, %v2416
  %v2418 = vpop.f32.mrf.mxu0
  %v2419 = vadd.f32 %v2370, %v2418
  %2420 = vmatmul.bf16.gmra.mxu0 %v563
  %v2421 = vpop.f32.mrf.mxu0
  %v2422 = vadd.f32 %v2373, %v2421
  %v2423 = vpop.f32.mrf.mxu0
  %v2424 = vadd.f32 %v2375, %v2423
  %2425 = vdwg.mxu0
  %2426 = vmatpush.bf16.msra.mxu0 %v1322
  %2427 = vmatpush.bf16.msra.mxu0 %v1318
  %2428 = vmatpush.bf16.msra.mxu0 %v1314
  %2429 = vmatpush.bf16.msra.mxu0 %v1310
  %2430 = vmatpush.bf16.msra.mxu0 %v1306
  %2431 = vmatpush.bf16.msra.mxu0 %v1302
  %2432 = vmatpush.bf16.msra.mxu0 %v1298
  %2433 = vmatpush.bf16.msra.mxu0 %v1294
  %2434 = vmatmul.bf16.gmra.mxu0 %v508
  %v2435 = vpop.f32.mrf.mxu0
  %v2436 = vadd.f32 %v326, %v2435
  %v2437 = vpop.f32.mrf.mxu0
  %v2438 = vadd.f32 %v326, %v2437
  %2439 = vmatmul.bf16.gmra.mxu0 %v515
  %v2440 = vpop.f32.mrf.mxu0
  %v2441 = vadd.f32 %v326, %v2440
  %v2442 = vpop.f32.mrf.mxu0
  %v2443 = vadd.f32 %v326, %v2442
  %2444 = vmatmul.bf16.gmra.mxu0 %v522
  %v2445 = vpop.f32.mrf.mxu0
  %v2446 = vadd.f32 %v326, %v2445
  %v2447 = vpop.f32.mrf.mxu0
  %v2448 = vadd.f32 %v326, %v2447
  %2449 = vmatmul.bf16.gmra.mxu0 %v529
  %v2450 = vpop.f32.mrf.mxu0
  %v2451 = vadd.f32 %v326, %v2450
  %v2452 = vpop.f32.mrf.mxu0
  %v2453 = vadd.f32 %v326, %v2452
  %2454 = vmatmul.bf16.gmra.mxu0 %v536
  %v2455 = vpop.f32.mrf.mxu0
  %v2456 = vadd.f32 %v326, %v2455
  %v2457 = vpop.f32.mrf.mxu0
  %v2458 = vadd.f32 %v326, %v2457
  %2459 = vmatmul.bf16.gmra.mxu0 %v543
  %v2460 = vpop.f32.mrf.mxu0
  %v2461 = vadd.f32 %v326, %v2460
  %v2462 = vpop.f32.mrf.mxu0
  %v2463 = vadd.f32 %v326, %v2462
  %2464 = vmatmul.bf16.gmra.mxu0 %v550
  %v2465 = vpop.f32.mrf.mxu0
  %v2466 = vadd.f32 %v326, %v2465
  %v2467 = vpop.f32.mrf.mxu0
  %v2468 = vadd.f32 %v326, %v2467
  %2469 = vmatmul.bf16.gmra.mxu0 %v557
  %v2470 = vpop.f32.mrf.mxu0
  %v2471 = vadd.f32 %v326, %v2470
  %v2472 = vpop.f32.mrf.mxu0
  %v2473 = vadd.f32 %v326, %v2472
  %2474 = vdwg.mxu0
  %2475 = vmatpush.bf16.msra.mxu0 %v1354
  %2476 = vmatpush.bf16.msra.mxu0 %v1350
  %2477 = vmatpush.bf16.msra.mxu0 %v1346
  %2478 = vmatpush.bf16.msra.mxu0 %v1342
  %2479 = vmatpush.bf16.msra.mxu0 %v1338
  %2480 = vmatpush.bf16.msra.mxu0 %v1334
  %2481 = vmatpush.bf16.msra.mxu0 %v1330
  %2482 = vmatpush.bf16.msra.mxu0 %v1326
  %2483 = vmatmul.bf16.gmra.mxu0 %v509
  %v2484 = vpop.f32.mrf.mxu0
  %v2485 = vadd.f32 %v2436, %v2484
  %v2486 = vpop.f32.mrf.mxu0
  %v2487 = vadd.f32 %v2438, %v2486
  %2488 = vmatmul.bf16.gmra.mxu0 %v516
  %v2489 = vpop.f32.mrf.mxu0
  %v2490 = vadd.f32 %v2441, %v2489
  %v2491 = vpop.f32.mrf.mxu0
  %v2492 = vadd.f32 %v2443, %v2491
  %2493 = vmatmul.bf16.gmra.mxu0 %v523
  %v2494 = vpop.f32.mrf.mxu0
  %v2495 = vadd.f32 %v2446, %v2494
  %v2496 = vpop.f32.mrf.mxu0
  %v2497 = vadd.f32 %v2448, %v2496
  %2498 = vmatmul.bf16.gmra.mxu0 %v530
  %v2499 = vpop.f32.mrf.mxu0
  %v2500 = vadd.f32 %v2451, %v2499
  %v2501 = vpop.f32.mrf.mxu0
  %v2502 = vadd.f32 %v2453, %v2501
  %2503 = vmatmul.bf16.gmra.mxu0 %v537
  %v2504 = vpop.f32.mrf.mxu0
  %v2505 = vadd.f32 %v2456, %v2504
  %v2506 = vpop.f32.mrf.mxu0
  %v2507 = vadd.f32 %v2458, %v2506
  %2508 = vmatmul.bf16.gmra.mxu0 %v544
  %v2509 = vpop.f32.mrf.mxu0
  %v2510 = vadd.f32 %v2461, %v2509
  %v2511 = vpop.f32.mrf.mxu0
  %v2512 = vadd.f32 %v2463, %v2511
  %2513 = vmatmul.bf16.gmra.mxu0 %v551
  %v2514 = vpop.f32.mrf.mxu0
  %v2515 = vadd.f32 %v2466, %v2514
  %v2516 = vpop.f32.mrf.mxu0
  %v2517 = vadd.f32 %v2468, %v2516
  %2518 = vmatmul.bf16.gmra.mxu0 %v558
  %v2519 = vpop.f32.mrf.mxu0
  %v2520 = vadd.f32 %v2471, %v2519
  %v2521 = vpop.f32.mrf.mxu0
  %v2522 = vadd.f32 %v2473, %v2521
  %2523 = vdwg.mxu0
  %2524 = vmatpush.bf16.msra.mxu0 %v1386
  %2525 = vmatpush.bf16.msra.mxu0 %v1382
  %2526 = vmatpush.bf16.msra.mxu0 %v1378
  %2527 = vmatpush.bf16.msra.mxu0 %v1374
  %2528 = vmatpush.bf16.msra.mxu0 %v1370
  %2529 = vmatpush.bf16.msra.mxu0 %v1366
  %2530 = vmatpush.bf16.msra.mxu0 %v1362
  %2531 = vmatpush.bf16.msra.mxu0 %v1358
  %2532 = vmatmul.bf16.gmra.mxu0 %v510
  %v2533 = vpop.f32.mrf.mxu0
  %v2534 = vadd.f32 %v2485, %v2533
  %v2535 = vpop.f32.mrf.mxu0
  %v2536 = vadd.f32 %v2487, %v2535
  %2537 = vmatmul.bf16.gmra.mxu0 %v517
  %v2538 = vpop.f32.mrf.mxu0
  %v2539 = vadd.f32 %v2490, %v2538
  %v2540 = vpop.f32.mrf.mxu0
  %v2541 = vadd.f32 %v2492, %v2540
  %2542 = vmatmul.bf16.gmra.mxu0 %v524
  %v2543 = vpop.f32.mrf.mxu0
  %v2544 = vadd.f32 %v2495, %v2543
  %v2545 = vpop.f32.mrf.mxu0
  %v2546 = vadd.f32 %v2497, %v2545
  %2547 = vmatmul.bf16.gmra.mxu0 %v531
  %v2548 = vpop.f32.mrf.mxu0
  %v2549 = vadd.f32 %v2500, %v2548
  %v2550 = vpop.f32.mrf.mxu0
  %v2551 = vadd.f32 %v2502, %v2550
  %2552 = vmatmul.bf16.gmra.mxu0 %v538
  %v2553 = vpop.f32.mrf.mxu0
  %v2554 = vadd.f32 %v2505, %v2553
  %v2555 = vpop.f32.mrf.mxu0
  %v2556 = vadd.f32 %v2507, %v2555
  %2557 = vmatmul.bf16.gmra.mxu0 %v545
  %v2558 = vpop.f32.mrf.mxu0
  %v2559 = vadd.f32 %v2510, %v2558
  %v2560 = vpop.f32.mrf.mxu0
  %v2561 = vadd.f32 %v2512, %v2560
  %2562 = vmatmul.bf16.gmra.mxu0 %v552
  %v2563 = vpop.f32.mrf.mxu0
  %v2564 = vadd.f32 %v2515, %v2563
  %v2565 = vpop.f32.mrf.mxu0
  %v2566 = vadd.f32 %v2517, %v2565
  %2567 = vmatmul.bf16.gmra.mxu0 %v559
  %v2568 = vpop.f32.mrf.mxu0
  %v2569 = vadd.f32 %v2520, %v2568
  %v2570 = vpop.f32.mrf.mxu0
  %v2571 = vadd.f32 %v2522, %v2570
  %2572 = vdwg.mxu0
  %2573 = vmatpush.bf16.msra.mxu0 %v1418
  %2574 = vmatpush.bf16.msra.mxu0 %v1414
  %2575 = vmatpush.bf16.msra.mxu0 %v1410
  %2576 = vmatpush.bf16.msra.mxu0 %v1406
  %2577 = vmatpush.bf16.msra.mxu0 %v1402
  %2578 = vmatpush.bf16.msra.mxu0 %v1398
  %2579 = vmatpush.bf16.msra.mxu0 %v1394
  %2580 = vmatpush.bf16.msra.mxu0 %v1390
  %2581 = vmatmul.bf16.gmra.mxu0 %v511
  %v2582 = vpop.f32.mrf.mxu0
  %v2583 = vadd.f32 %v2534, %v2582
  %v2584 = vpop.f32.mrf.mxu0
  %v2585 = vadd.f32 %v2536, %v2584
  %2586 = vmatmul.bf16.gmra.mxu0 %v518
  %v2587 = vpop.f32.mrf.mxu0
  %v2588 = vadd.f32 %v2539, %v2587
  %v2589 = vpop.f32.mrf.mxu0
  %v2590 = vadd.f32 %v2541, %v2589
  %2591 = vmatmul.bf16.gmra.mxu0 %v525
  %v2592 = vpop.f32.mrf.mxu0
  %v2593 = vadd.f32 %v2544, %v2592
  %v2594 = vpop.f32.mrf.mxu0
  %v2595 = vadd.f32 %v2546, %v2594
  %2596 = vmatmul.bf16.gmra.mxu0 %v532
  %v2597 = vpop.f32.mrf.mxu0
  %v2598 = vadd.f32 %v2549, %v2597
  %v2599 = vpop.f32.mrf.mxu0
  %v2600 = vadd.f32 %v2551, %v2599
  %2601 = vmatmul.bf16.gmra.mxu0 %v539
  %v2602 = vpop.f32.mrf.mxu0
  %v2603 = vadd.f32 %v2554, %v2602
  %v2604 = vpop.f32.mrf.mxu0
  %v2605 = vadd.f32 %v2556, %v2604
  %2606 = vmatmul.bf16.gmra.mxu0 %v546
  %v2607 = vpop.f32.mrf.mxu0
  %v2608 = vadd.f32 %v2559, %v2607
  %v2609 = vpop.f32.mrf.mxu0
  %v2610 = vadd.f32 %v2561, %v2609
  %2611 = vmatmul.bf16.gmra.mxu0 %v553
  %v2612 = vpop.f32.mrf.mxu0
  %v2613 = vadd.f32 %v2564, %v2612
  %v2614 = vpop.f32.mrf.mxu0
  %v2615 = vadd.f32 %v2566, %v2614
  %2616 = vmatmul.bf16.gmra.mxu0 %v560
  %v2617 = vpop.f32.mrf.mxu0
  %v2618 = vadd.f32 %v2569, %v2617
  %v2619 = vpop.f32.mrf.mxu0
  %v2620 = vadd.f32 %v2571, %v2619
  %2621 = vdwg.mxu0
  %2622 = vmatpush.bf16.msra.mxu0 %v1450
  %2623 = vmatpush.bf16.msra.mxu0 %v1446
  %2624 = vmatpush.bf16.msra.mxu0 %v1442
  %2625 = vmatpush.bf16.msra.mxu0 %v1438
  %2626 = vmatpush.bf16.msra.mxu0 %v1434
  %2627 = vmatpush.bf16.msra.mxu0 %v1430
  %2628 = vmatpush.bf16.msra.mxu0 %v1426
  %2629 = vmatpush.bf16.msra.mxu0 %v1422
  %2630 = vmatmul.bf16.gmra.mxu0 %v512
  %v2631 = vpop.f32.mrf.mxu0
  %v2632 = vadd.f32 %v2583, %v2631
  %v2633 = vpop.f32.mrf.mxu0
  %v2634 = vadd.f32 %v2585, %v2633
  %2635 = vmatmul.bf16.gmra.mxu0 %v519
  %v2636 = vpop.f32.mrf.mxu0
  %v2637 = vadd.f32 %v2588, %v2636
  %v2638 = vpop.f32.mrf.mxu0
  %v2639 = vadd.f32 %v2590, %v2638
  %2640 = vmatmul.bf16.gmra.mxu0 %v526
  %v2641 = vpop.f32.mrf.mxu0
  %v2642 = vadd.f32 %v2593, %v2641
  %v2643 = vpop.f32.mrf.mxu0
  %v2644 = vadd.f32 %v2595, %v2643
  %2645 = vmatmul.bf16.gmra.mxu0 %v533
  %v2646 = vpop.f32.mrf.mxu0
  %v2647 = vadd.f32 %v2598, %v2646
  %v2648 = vpop.f32.mrf.mxu0
  %v2649 = vadd.f32 %v2600, %v2648
  %2650 = vmatmul.bf16.gmra.mxu0 %v540
  %v2651 = vpop.f32.mrf.mxu0
  %v2652 = vadd.f32 %v2603, %v2651
  %v2653 = vpop.f32.mrf.mxu0
  %v2654 = vadd.f32 %v2605, %v2653
  %2655 = vmatmul.bf16.gmra.mxu0 %v547
  %v2656 = vpop.f32.mrf.mxu0
  %v2657 = vadd.f32 %v2608, %v2656
  %v2658 = vpop.f32.mrf.mxu0
  %v2659 = vadd.f32 %v2610, %v2658
  %2660 = vmatmul.bf16.gmra.mxu0 %v554
  %v2661 = vpop.f32.mrf.mxu0
  %v2662 = vadd.f32 %v2613, %v2661
  %v2663 = vpop.f32.mrf.mxu0
  %v2664 = vadd.f32 %v2615, %v2663
  %2665 = vmatmul.bf16.gmra.mxu0 %v561
  %v2666 = vpop.f32.mrf.mxu0
  %v2667 = vadd.f32 %v2618, %v2666
  %v2668 = vpop.f32.mrf.mxu0
  %v2669 = vadd.f32 %v2620, %v2668
  %2670 = vdwg.mxu0
  %2671 = vmatpush.bf16.msra.mxu0 %v1482
  %2672 = vmatpush.bf16.msra.mxu0 %v1478
  %2673 = vmatpush.bf16.msra.mxu0 %v1474
  %2674 = vmatpush.bf16.msra.mxu0 %v1470
  %2675 = vmatpush.bf16.msra.mxu0 %v1466
  %2676 = vmatpush.bf16.msra.mxu0 %v1462
  %2677 = vmatpush.bf16.msra.mxu0 %v1458
  %2678 = vmatpush.bf16.msra.mxu0 %v1454
  %2679 = vmatmul.bf16.gmra.mxu0 %v513
  %v2680 = vpop.f32.mrf.mxu0
  %v2681 = vadd.f32 %v2632, %v2680
  %v2682 = vpop.f32.mrf.mxu0
  %v2683 = vadd.f32 %v2634, %v2682
  %2684 = vmatmul.bf16.gmra.mxu0 %v520
  %v2685 = vpop.f32.mrf.mxu0
  %v2686 = vadd.f32 %v2637, %v2685
  %v2687 = vpop.f32.mrf.mxu0
  %v2688 = vadd.f32 %v2639, %v2687
  %2689 = vmatmul.bf16.gmra.mxu0 %v527
  %v2690 = vpop.f32.mrf.mxu0
  %v2691 = vadd.f32 %v2642, %v2690
  %v2692 = vpop.f32.mrf.mxu0
  %v2693 = vadd.f32 %v2644, %v2692
  %2694 = vmatmul.bf16.gmra.mxu0 %v534
  %v2695 = vpop.f32.mrf.mxu0
  %v2696 = vadd.f32 %v2647, %v2695
  %v2697 = vpop.f32.mrf.mxu0
  %v2698 = vadd.f32 %v2649, %v2697
  %2699 = vmatmul.bf16.gmra.mxu0 %v541
  %v2700 = vpop.f32.mrf.mxu0
  %v2701 = vadd.f32 %v2652, %v2700
  %v2702 = vpop.f32.mrf.mxu0
  %v2703 = vadd.f32 %v2654, %v2702
  %2704 = vmatmul.bf16.gmra.mxu0 %v548
  %v2705 = vpop.f32.mrf.mxu0
  %v2706 = vadd.f32 %v2657, %v2705
  %v2707 = vpop.f32.mrf.mxu0
  %v2708 = vadd.f32 %v2659, %v2707
  %2709 = vmatmul.bf16.gmra.mxu0 %v555
  %v2710 = vpop.f32.mrf.mxu0
  %v2711 = vadd.f32 %v2662, %v2710
  %v2712 = vpop.f32.mrf.mxu0
  %v2713 = vadd.f32 %v2664, %v2712
  %2714 = vmatmul.bf16.gmra.mxu0 %v562
  %v2715 = vpop.f32.mrf.mxu0
  %v2716 = vadd.f32 %v2667, %v2715
  %v2717 = vpop.f32.mrf.mxu0
  %v2718 = vadd.f32 %v2669, %v2717
  %2719 = vdwg.mxu0
  %2720 = vmatpush.bf16.msra.mxu0 %v1514
  %2721 = vmatpush.bf16.msra.mxu0 %v1510
  %2722 = vmatpush.bf16.msra.mxu0 %v1506
  %2723 = vmatpush.bf16.msra.mxu0 %v1502
  %2724 = vmatpush.bf16.msra.mxu0 %v1498
  %2725 = vmatpush.bf16.msra.mxu0 %v1494
  %2726 = vmatpush.bf16.msra.mxu0 %v1490
  %2727 = vmatpush.bf16.msra.mxu0 %v1486
  %2728 = vmatmul.bf16.gmra.mxu0 %v514
  %v2729 = vpop.f32.mrf.mxu0
  %v2730 = vadd.f32 %v2681, %v2729
  %v2731 = vpop.f32.mrf.mxu0
  %v2732 = vadd.f32 %v2683, %v2731
  %2733 = vmatmul.bf16.gmra.mxu0 %v521
  %v2734 = vpop.f32.mrf.mxu0
  %v2735 = vadd.f32 %v2686, %v2734
  %v2736 = vpop.f32.mrf.mxu0
  %v2737 = vadd.f32 %v2688, %v2736
  %2738 = vmatmul.bf16.gmra.mxu0 %v528
  %v2739 = vpop.f32.mrf.mxu0
  %v2740 = vadd.f32 %v2691, %v2739
  %v2741 = vpop.f32.mrf.mxu0
  %v2742 = vadd.f32 %v2693, %v2741
  %2743 = vmatmul.bf16.gmra.mxu0 %v535
  %v2744 = vpop.f32.mrf.mxu0
  %v2745 = vadd.f32 %v2696, %v2744
  %v2746 = vpop.f32.mrf.mxu0
  %v2747 = vadd.f32 %v2698, %v2746
  %2748 = vmatmul.bf16.gmra.mxu0 %v542
  %v2749 = vpop.f32.mrf.mxu0
  %v2750 = vadd.f32 %v2701, %v2749
  %v2751 = vpop.f32.mrf.mxu0
  %v2752 = vadd.f32 %v2703, %v2751
  %2753 = vmatmul.bf16.gmra.mxu0 %v549
  %v2754 = vpop.f32.mrf.mxu0
  %v2755 = vadd.f32 %v2706, %v2754
  %v2756 = vpop.f32.mrf.mxu0
  %v2757 = vadd.f32 %v2708, %v2756
  %2758 = vmatmul.bf16.gmra.mxu0 %v556
  %v2759 = vpop.f32.mrf.mxu0
  %v2760 = vadd.f32 %v2711, %v2759
  %v2761 = vpop.f32.mrf.mxu0
  %v2762 = vadd.f32 %v2713, %v2761
  %2763 = vmatmul.bf16.gmra.mxu0 %v563
  %v2764 = vpop.f32.mrf.mxu0
  %v2765 = vadd.f32 %v2716, %v2764
  %v2766 = vpop.f32.mrf.mxu0
  %v2767 = vadd.f32 %v2718, %v2766
  %2768 = vdwg.mxu0
  %2769 = vmatpush.bf16.msra.mxu0 %v1323
  %2770 = vmatpush.bf16.msra.mxu0 %v1319
  %2771 = vmatpush.bf16.msra.mxu0 %v1315
  %2772 = vmatpush.bf16.msra.mxu0 %v1311
  %2773 = vmatpush.bf16.msra.mxu0 %v1307
  %2774 = vmatpush.bf16.msra.mxu0 %v1303
  %2775 = vmatpush.bf16.msra.mxu0 %v1299
  %2776 = vmatpush.bf16.msra.mxu0 %v1295
  %2777 = vmatmul.bf16.gmra.mxu0 %v508
  %v2778 = vpop.f32.mrf.mxu0
  %v2779 = vadd.f32 %v327, %v2778
  %v2780 = vpop.f32.mrf.mxu0
  %v2781 = vadd.f32 %v327, %v2780
  %2782 = vmatmul.bf16.gmra.mxu0 %v515
  %v2783 = vpop.f32.mrf.mxu0
  %v2784 = vadd.f32 %v327, %v2783
  %v2785 = vpop.f32.mrf.mxu0
  %v2786 = vadd.f32 %v327, %v2785
  %2787 = vmatmul.bf16.gmra.mxu0 %v522
  %v2788 = vpop.f32.mrf.mxu0
  %v2789 = vadd.f32 %v327, %v2788
  %v2790 = vpop.f32.mrf.mxu0
  %v2791 = vadd.f32 %v327, %v2790
  %2792 = vmatmul.bf16.gmra.mxu0 %v529
  %v2793 = vpop.f32.mrf.mxu0
  %v2794 = vadd.f32 %v327, %v2793
  %v2795 = vpop.f32.mrf.mxu0
  %v2796 = vadd.f32 %v327, %v2795
  %2797 = vmatmul.bf16.gmra.mxu0 %v536
  %v2798 = vpop.f32.mrf.mxu0
  %v2799 = vadd.f32 %v327, %v2798
  %v2800 = vpop.f32.mrf.mxu0
  %v2801 = vadd.f32 %v327, %v2800
  %2802 = vmatmul.bf16.gmra.mxu0 %v543
  %v2803 = vpop.f32.mrf.mxu0
  %v2804 = vadd.f32 %v327, %v2803
  %v2805 = vpop.f32.mrf.mxu0
  %v2806 = vadd.f32 %v327, %v2805
  %2807 = vmatmul.bf16.gmra.mxu0 %v550
  %v2808 = vpop.f32.mrf.mxu0
  %v2809 = vadd.f32 %v327, %v2808
  %v2810 = vpop.f32.mrf.mxu0
  %v2811 = vadd.f32 %v327, %v2810
  %2812 = vmatmul.bf16.gmra.mxu0 %v557
  %v2813 = vpop.f32.mrf.mxu0
  %v2814 = vadd.f32 %v327, %v2813
  %v2815 = vpop.f32.mrf.mxu0
  %v2816 = vadd.f32 %v327, %v2815
  %2817 = vdwg.mxu0
  %2818 = vmatpush.bf16.msra.mxu0 %v1355
  %2819 = vmatpush.bf16.msra.mxu0 %v1351
  %2820 = vmatpush.bf16.msra.mxu0 %v1347
  %2821 = vmatpush.bf16.msra.mxu0 %v1343
  %2822 = vmatpush.bf16.msra.mxu0 %v1339
  %2823 = vmatpush.bf16.msra.mxu0 %v1335
  %2824 = vmatpush.bf16.msra.mxu0 %v1331
  %2825 = vmatpush.bf16.msra.mxu0 %v1327
  %2826 = vmatmul.bf16.gmra.mxu0 %v509
  %v2827 = vpop.f32.mrf.mxu0
  %v2828 = vadd.f32 %v2779, %v2827
  %v2829 = vpop.f32.mrf.mxu0
  %v2830 = vadd.f32 %v2781, %v2829
  %2831 = vmatmul.bf16.gmra.mxu0 %v516
  %v2832 = vpop.f32.mrf.mxu0
  %v2833 = vadd.f32 %v2784, %v2832
  %v2834 = vpop.f32.mrf.mxu0
  %v2835 = vadd.f32 %v2786, %v2834
  %2836 = vmatmul.bf16.gmra.mxu0 %v523
  %v2837 = vpop.f32.mrf.mxu0
  %v2838 = vadd.f32 %v2789, %v2837
  %v2839 = vpop.f32.mrf.mxu0
  %v2840 = vadd.f32 %v2791, %v2839
  %2841 = vmatmul.bf16.gmra.mxu0 %v530
  %v2842 = vpop.f32.mrf.mxu0
  %v2843 = vadd.f32 %v2794, %v2842
  %v2844 = vpop.f32.mrf.mxu0
  %v2845 = vadd.f32 %v2796, %v2844
  %2846 = vmatmul.bf16.gmra.mxu0 %v537
  %v2847 = vpop.f32.mrf.mxu0
  %v2848 = vadd.f32 %v2799, %v2847
  %v2849 = vpop.f32.mrf.mxu0
  %v2850 = vadd.f32 %v2801, %v2849
  %2851 = vmatmul.bf16.gmra.mxu0 %v544
  %v2852 = vpop.f32.mrf.mxu0
  %v2853 = vadd.f32 %v2804, %v2852
  %v2854 = vpop.f32.mrf.mxu0
  %v2855 = vadd.f32 %v2806, %v2854
  %2856 = vmatmul.bf16.gmra.mxu0 %v551
  %v2857 = vpop.f32.mrf.mxu0
  %v2858 = vadd.f32 %v2809, %v2857
  %v2859 = vpop.f32.mrf.mxu0
  %v2860 = vadd.f32 %v2811, %v2859
  %2861 = vmatmul.bf16.gmra.mxu0 %v558
  %v2862 = vpop.f32.mrf.mxu0
  %v2863 = vadd.f32 %v2814, %v2862
  %v2864 = vpop.f32.mrf.mxu0
  %v2865 = vadd.f32 %v2816, %v2864
  %2866 = vdwg.mxu0
  %2867 = vmatpush.bf16.msra.mxu0 %v1387
  %2868 = vmatpush.bf16.msra.mxu0 %v1383
  %2869 = vmatpush.bf16.msra.mxu0 %v1379
  %2870 = vmatpush.bf16.msra.mxu0 %v1375
  %2871 = vmatpush.bf16.msra.mxu0 %v1371
  %2872 = vmatpush.bf16.msra.mxu0 %v1367
  %2873 = vmatpush.bf16.msra.mxu0 %v1363
  %2874 = vmatpush.bf16.msra.mxu0 %v1359
  %2875 = vmatmul.bf16.gmra.mxu0 %v510
  %v2876 = vpop.f32.mrf.mxu0
  %v2877 = vadd.f32 %v2828, %v2876
  %v2878 = vpop.f32.mrf.mxu0
  %v2879 = vadd.f32 %v2830, %v2878
  %2880 = vmatmul.bf16.gmra.mxu0 %v517
  %v2881 = vpop.f32.mrf.mxu0
  %v2882 = vadd.f32 %v2833, %v2881
  %v2883 = vpop.f32.mrf.mxu0
  %v2884 = vadd.f32 %v2835, %v2883
  %2885 = vmatmul.bf16.gmra.mxu0 %v524
  %v2886 = vpop.f32.mrf.mxu0
  %v2887 = vadd.f32 %v2838, %v2886
  %v2888 = vpop.f32.mrf.mxu0
  %v2889 = vadd.f32 %v2840, %v2888
  %2890 = vmatmul.bf16.gmra.mxu0 %v531
  %v2891 = vpop.f32.mrf.mxu0
  %v2892 = vadd.f32 %v2843, %v2891
  %v2893 = vpop.f32.mrf.mxu0
  %v2894 = vadd.f32 %v2845, %v2893
  %2895 = vmatmul.bf16.gmra.mxu0 %v538
  %v2896 = vpop.f32.mrf.mxu0
  %v2897 = vadd.f32 %v2848, %v2896
  %v2898 = vpop.f32.mrf.mxu0
  %v2899 = vadd.f32 %v2850, %v2898
  %2900 = vmatmul.bf16.gmra.mxu0 %v545
  %v2901 = vpop.f32.mrf.mxu0
  %v2902 = vadd.f32 %v2853, %v2901
  %v2903 = vpop.f32.mrf.mxu0
  %v2904 = vadd.f32 %v2855, %v2903
  %2905 = vmatmul.bf16.gmra.mxu0 %v552
  %v2906 = vpop.f32.mrf.mxu0
  %v2907 = vadd.f32 %v2858, %v2906
  %v2908 = vpop.f32.mrf.mxu0
  %v2909 = vadd.f32 %v2860, %v2908
  %2910 = vmatmul.bf16.gmra.mxu0 %v559
  %v2911 = vpop.f32.mrf.mxu0
  %v2912 = vadd.f32 %v2863, %v2911
  %v2913 = vpop.f32.mrf.mxu0
  %v2914 = vadd.f32 %v2865, %v2913
  %2915 = vdwg.mxu0
  %2916 = vmatpush.bf16.msra.mxu0 %v1419
  %2917 = vmatpush.bf16.msra.mxu0 %v1415
  %2918 = vmatpush.bf16.msra.mxu0 %v1411
  %2919 = vmatpush.bf16.msra.mxu0 %v1407
  %2920 = vmatpush.bf16.msra.mxu0 %v1403
  %2921 = vmatpush.bf16.msra.mxu0 %v1399
  %2922 = vmatpush.bf16.msra.mxu0 %v1395
  %2923 = vmatpush.bf16.msra.mxu0 %v1391
  %2924 = vmatmul.bf16.gmra.mxu0 %v511
  %v2925 = vpop.f32.mrf.mxu0
  %v2926 = vadd.f32 %v2877, %v2925
  %v2927 = vpop.f32.mrf.mxu0
  %v2928 = vadd.f32 %v2879, %v2927
  %2929 = vmatmul.bf16.gmra.mxu0 %v518
  %v2930 = vpop.f32.mrf.mxu0
  %v2931 = vadd.f32 %v2882, %v2930
  %v2932 = vpop.f32.mrf.mxu0
  %v2933 = vadd.f32 %v2884, %v2932
  %2934 = vmatmul.bf16.gmra.mxu0 %v525
  %v2935 = vpop.f32.mrf.mxu0
  %v2936 = vadd.f32 %v2887, %v2935
  %v2937 = vpop.f32.mrf.mxu0
  %v2938 = vadd.f32 %v2889, %v2937
  %2939 = vmatmul.bf16.gmra.mxu0 %v532
  %v2940 = vpop.f32.mrf.mxu0
  %v2941 = vadd.f32 %v2892, %v2940
  %v2942 = vpop.f32.mrf.mxu0
  %v2943 = vadd.f32 %v2894, %v2942
  %2944 = vmatmul.bf16.gmra.mxu0 %v539
  %v2945 = vpop.f32.mrf.mxu0
  %v2946 = vadd.f32 %v2897, %v2945
  %v2947 = vpop.f32.mrf.mxu0
  %v2948 = vadd.f32 %v2899, %v2947
  %2949 = vmatmul.bf16.gmra.mxu0 %v546
  %v2950 = vpop.f32.mrf.mxu0
  %v2951 = vadd.f32 %v2902, %v2950
  %v2952 = vpop.f32.mrf.mxu0
  %v2953 = vadd.f32 %v2904, %v2952
  %2954 = vmatmul.bf16.gmra.mxu0 %v553
  %v2955 = vpop.f32.mrf.mxu0
  %v2956 = vadd.f32 %v2907, %v2955
  %v2957 = vpop.f32.mrf.mxu0
  %v2958 = vadd.f32 %v2909, %v2957
  %2959 = vmatmul.bf16.gmra.mxu0 %v560
  %v2960 = vpop.f32.mrf.mxu0
  %v2961 = vadd.f32 %v2912, %v2960
  %v2962 = vpop.f32.mrf.mxu0
  %v2963 = vadd.f32 %v2914, %v2962
  %2964 = vdwg.mxu0
  %2965 = vmatpush.bf16.msra.mxu0 %v1451
  %2966 = vmatpush.bf16.msra.mxu0 %v1447
  %2967 = vmatpush.bf16.msra.mxu0 %v1443
  %2968 = vmatpush.bf16.msra.mxu0 %v1439
  %2969 = vmatpush.bf16.msra.mxu0 %v1435
  %2970 = vmatpush.bf16.msra.mxu0 %v1431
  %2971 = vmatpush.bf16.msra.mxu0 %v1427
  %2972 = vmatpush.bf16.msra.mxu0 %v1423
  %2973 = vmatmul.bf16.gmra.mxu0 %v512
  %v2974 = vpop.f32.mrf.mxu0
  %v2975 = vadd.f32 %v2926, %v2974
  %v2976 = vpop.f32.mrf.mxu0
  %v2977 = vadd.f32 %v2928, %v2976
  %2978 = vmatmul.bf16.gmra.mxu0 %v519
  %v2979 = vpop.f32.mrf.mxu0
  %v2980 = vadd.f32 %v2931, %v2979
  %v2981 = vpop.f32.mrf.mxu0
  %v2982 = vadd.f32 %v2933, %v2981
  %2983 = vmatmul.bf16.gmra.mxu0 %v526
  %v2984 = vpop.f32.mrf.mxu0
  %v2985 = vadd.f32 %v2936, %v2984
  %v2986 = vpop.f32.mrf.mxu0
  %v2987 = vadd.f32 %v2938, %v2986
  %2988 = vmatmul.bf16.gmra.mxu0 %v533
  %v2989 = vpop.f32.mrf.mxu0
  %v2990 = vadd.f32 %v2941, %v2989
  %v2991 = vpop.f32.mrf.mxu0
  %v2992 = vadd.f32 %v2943, %v2991
  %2993 = vmatmul.bf16.gmra.mxu0 %v540
  %v2994 = vpop.f32.mrf.mxu0
  %v2995 = vadd.f32 %v2946, %v2994
  %v2996 = vpop.f32.mrf.mxu0
  %v2997 = vadd.f32 %v2948, %v2996
  %2998 = vmatmul.bf16.gmra.mxu0 %v547
  %v2999 = vpop.f32.mrf.mxu0
  %v3000 = vadd.f32 %v2951, %v2999
  %v3001 = vpop.f32.mrf.mxu0
  %v3002 = vadd.f32 %v2953, %v3001
  %3003 = vmatmul.bf16.gmra.mxu0 %v554
  %v3004 = vpop.f32.mrf.mxu0
  %v3005 = vadd.f32 %v2956, %v3004
  %v3006 = vpop.f32.mrf.mxu0
  %v3007 = vadd.f32 %v2958, %v3006
  %3008 = vmatmul.bf16.gmra.mxu0 %v561
  %v3009 = vpop.f32.mrf.mxu0
  %v3010 = vadd.f32 %v2961, %v3009
  %v3011 = vpop.f32.mrf.mxu0
  %v3012 = vadd.f32 %v2963, %v3011
  %3013 = vdwg.mxu0
  %3014 = vmatpush.bf16.msra.mxu0 %v1483
  %3015 = vmatpush.bf16.msra.mxu0 %v1479
  %3016 = vmatpush.bf16.msra.mxu0 %v1475
  %3017 = vmatpush.bf16.msra.mxu0 %v1471
  %3018 = vmatpush.bf16.msra.mxu0 %v1467
  %3019 = vmatpush.bf16.msra.mxu0 %v1463
  %3020 = vmatpush.bf16.msra.mxu0 %v1459
  %3021 = vmatpush.bf16.msra.mxu0 %v1455
  %3022 = vmatmul.bf16.gmra.mxu0 %v513
  %v3023 = vpop.f32.mrf.mxu0
  %v3024 = vadd.f32 %v2975, %v3023
  %v3025 = vpop.f32.mrf.mxu0
  %v3026 = vadd.f32 %v2977, %v3025
  %3027 = vmatmul.bf16.gmra.mxu0 %v520
  %v3028 = vpop.f32.mrf.mxu0
  %v3029 = vadd.f32 %v2980, %v3028
  %v3030 = vpop.f32.mrf.mxu0
  %v3031 = vadd.f32 %v2982, %v3030
  %3032 = vmatmul.bf16.gmra.mxu0 %v527
  %v3033 = vpop.f32.mrf.mxu0
  %v3034 = vadd.f32 %v2985, %v3033
  %v3035 = vpop.f32.mrf.mxu0
  %v3036 = vadd.f32 %v2987, %v3035
  %3037 = vmatmul.bf16.gmra.mxu0 %v534
  %v3038 = vpop.f32.mrf.mxu0
  %v3039 = vadd.f32 %v2990, %v3038
  %v3040 = vpop.f32.mrf.mxu0
  %v3041 = vadd.f32 %v2992, %v3040
  %3042 = vmatmul.bf16.gmra.mxu0 %v541
  %v3043 = vpop.f32.mrf.mxu0
  %v3044 = vadd.f32 %v2995, %v3043
  %v3045 = vpop.f32.mrf.mxu0
  %v3046 = vadd.f32 %v2997, %v3045
  %3047 = vmatmul.bf16.gmra.mxu0 %v548
  %v3048 = vpop.f32.mrf.mxu0
  %v3049 = vadd.f32 %v3000, %v3048
  %v3050 = vpop.f32.mrf.mxu0
  %v3051 = vadd.f32 %v3002, %v3050
  %3052 = vmatmul.bf16.gmra.mxu0 %v555
  %v3053 = vpop.f32.mrf.mxu0
  %v3054 = vadd.f32 %v3005, %v3053
  %v3055 = vpop.f32.mrf.mxu0
  %v3056 = vadd.f32 %v3007, %v3055
  %3057 = vmatmul.bf16.gmra.mxu0 %v562
  %v3058 = vpop.f32.mrf.mxu0
  %v3059 = vadd.f32 %v3010, %v3058
  %v3060 = vpop.f32.mrf.mxu0
  %v3061 = vadd.f32 %v3012, %v3060
  %3062 = vdwg.mxu0
  %3063 = vmatpush.bf16.msra.mxu0 %v1515
  %3064 = vmatpush.bf16.msra.mxu0 %v1511
  %3065 = vmatpush.bf16.msra.mxu0 %v1507
  %3066 = vmatpush.bf16.msra.mxu0 %v1503
  %3067 = vmatpush.bf16.msra.mxu0 %v1499
  %3068 = vmatpush.bf16.msra.mxu0 %v1495
  %3069 = vmatpush.bf16.msra.mxu0 %v1491
  %3070 = vmatpush.bf16.msra.mxu0 %v1487
  %3071 = vmatmul.bf16.gmra.mxu0 %v514
  %v3072 = vpop.f32.mrf.mxu0
  %v3073 = vadd.f32 %v3024, %v3072
  %v3074 = vpop.f32.mrf.mxu0
  %v3075 = vadd.f32 %v3026, %v3074
  %3076 = vmatmul.bf16.gmra.mxu0 %v521
  %v3077 = vpop.f32.mrf.mxu0
  %v3078 = vadd.f32 %v3029, %v3077
  %v3079 = vpop.f32.mrf.mxu0
  %v3080 = vadd.f32 %v3031, %v3079
  %3081 = vmatmul.bf16.gmra.mxu0 %v528
  %v3082 = vpop.f32.mrf.mxu0
  %v3083 = vadd.f32 %v3034, %v3082
  %v3084 = vpop.f32.mrf.mxu0
  %v3085 = vadd.f32 %v3036, %v3084
  %3086 = vmatmul.bf16.gmra.mxu0 %v535
  %v3087 = vpop.f32.mrf.mxu0
  %v3088 = vadd.f32 %v3039, %v3087
  %v3089 = vpop.f32.mrf.mxu0
  %v3090 = vadd.f32 %v3041, %v3089
  %3091 = vmatmul.bf16.gmra.mxu0 %v542
  %v3092 = vpop.f32.mrf.mxu0
  %v3093 = vadd.f32 %v3044, %v3092
  %v3094 = vpop.f32.mrf.mxu0
  %v3095 = vadd.f32 %v3046, %v3094
  %3096 = vmatmul.bf16.gmra.mxu0 %v549
  %v3097 = vpop.f32.mrf.mxu0
  %v3098 = vadd.f32 %v3049, %v3097
  %v3099 = vpop.f32.mrf.mxu0
  %v3100 = vadd.f32 %v3051, %v3099
  %3101 = vmatmul.bf16.gmra.mxu0 %v556
  %v3102 = vpop.f32.mrf.mxu0
  %v3103 = vadd.f32 %v3054, %v3102
  %v3104 = vpop.f32.mrf.mxu0
  %v3105 = vadd.f32 %v3056, %v3104
  %3106 = vmatmul.bf16.gmra.mxu0 %v563
  %v3107 = vpop.f32.mrf.mxu0
  %v3108 = vadd.f32 %v3059, %v3107
  %v3109 = vpop.f32.mrf.mxu0
  %v3110 = vadd.f32 %v3061, %v3109
  %3111 = vdwg.mxu0
  %vm3112 = vcmp.gt.f32.partialorder %v2044, 0.0
  %vm3113 = vcmp.gt.f32.partialorder %v2387, 0.0
  %vm3114 = vcmp.gt.f32.partialorder %v2730, 0.0
  %vm3115 = vcmp.gt.f32.partialorder %v3073, 0.0
  %vm3116 = vcmp.gt.f32.partialorder %v2046, 0.0
  %vm3117 = vcmp.gt.f32.partialorder %v2389, 0.0
  %vm3118 = vcmp.gt.f32.partialorder %v2732, 0.0
  %vm3119 = vcmp.gt.f32.partialorder %v3075, 0.0
  %vm3120 = vcmp.gt.f32.partialorder %v2049, 0.0
  %vm3121 = vcmp.gt.f32.partialorder %v2392, 0.0
  %vm3122 = vcmp.gt.f32.partialorder %v2735, 0.0
  %vm3123 = vcmp.gt.f32.partialorder %v3078, 0.0
  %vm3124 = vcmp.gt.f32.partialorder %v2051, 0.0
  %vm3125 = vcmp.gt.f32.partialorder %v2394, 0.0
  %vm3126 = vcmp.gt.f32.partialorder %v2737, 0.0
  %vm3127 = vcmp.gt.f32.partialorder %v3080, 0.0
  %vm3128 = vcmp.gt.f32.partialorder %v2054, 0.0
  %vm3129 = vcmp.gt.f32.partialorder %v2397, 0.0
  %vm3130 = vcmp.gt.f32.partialorder %v2740, 0.0
  %vm3131 = vcmp.gt.f32.partialorder %v3083, 0.0
  %vm3132 = vcmp.gt.f32.partialorder %v2056, 0.0
  %vm3133 = vcmp.gt.f32.partialorder %v2399, 0.0
  %vm3134 = vcmp.gt.f32.partialorder %v2742, 0.0
  %vm3135 = vcmp.gt.f32.partialorder %v3085, 0.0
  %vm3136 = vcmp.gt.f32.partialorder %v2059, 0.0
  %vm3137 = vcmp.gt.f32.partialorder %v2402, 0.0
  %vm3138 = vcmp.gt.f32.partialorder %v2745, 0.0
  %vm3139 = vcmp.gt.f32.partialorder %v3088, 0.0
  %vm3140 = vcmp.gt.f32.partialorder %v2061, 0.0
  %vm3141 = vcmp.gt.f32.partialorder %v2404, 0.0
  %vm3142 = vcmp.gt.f32.partialorder %v2747, 0.0
  %vm3143 = vcmp.gt.f32.partialorder %v3090, 0.0
  %vm3144 = vcmp.gt.f32.partialorder %v2064, 0.0
  %vm3145 = vcmp.gt.f32.partialorder %v2407, 0.0
  %vm3146 = vcmp.gt.f32.partialorder %v2750, 0.0
  %vm3147 = vcmp.gt.f32.partialorder %v3093, 0.0
  %vm3148 = vcmp.gt.f32.partialorder %v2066, 0.0
  %vm3149 = vcmp.gt.f32.partialorder %v2409, 0.0
  %vm3150 = vcmp.gt.f32.partialorder %v2752, 0.0
  %vm3151 = vcmp.gt.f32.partialorder %v3095, 0.0
  %vm3152 = vcmp.gt.f32.partialorder %v2069, 0.0
  %vm3153 = vcmp.gt.f32.partialorder %v2412, 0.0
  %vm3154 = vcmp.gt.f32.partialorder %v2755, 0.0
  %vm3155 = vcmp.gt.f32.partialorder %v3098, 0.0
  %vm3156 = vcmp.gt.f32.partialorder %v2071, 0.0
  %vm3157 = vcmp.gt.f32.partialorder %v2414, 0.0
  %vm3158 = vcmp.gt.f32.partialorder %v2757, 0.0
  %vm3159 = vcmp.gt.f32.partialorder %v3100, 0.0
  %vm3160 = vcmp.gt.f32.partialorder %v2074, 0.0
  %vm3161 = vcmp.gt.f32.partialorder %v2417, 0.0
  %vm3162 = vcmp.gt.f32.partialorder %v2760, 0.0
  %vm3163 = vcmp.gt.f32.partialorder %v3103, 0.0
  %vm3164 = vcmp.gt.f32.partialorder %v2076, 0.0
  %vm3165 = vcmp.gt.f32.partialorder %v2419, 0.0
  %vm3166 = vcmp.gt.f32.partialorder %v2762, 0.0
  %vm3167 = vcmp.gt.f32.partialorder %v3105, 0.0
  %vm3168 = vcmp.gt.f32.partialorder %v2079, 0.0
  %vm3169 = vcmp.gt.f32.partialorder %v2422, 0.0
  %vm3170 = vcmp.gt.f32.partialorder %v2765, 0.0
  %vm3171 = vcmp.gt.f32.partialorder %v3108, 0.0
  %vm3172 = vcmp.gt.f32.partialorder %v2081, 0.0
  %vm3173 = vcmp.gt.f32.partialorder %v2424, 0.0
  %vm3174 = vcmp.gt.f32.partialorder %v2767, 0.0
  %vm3175 = vcmp.gt.f32.partialorder %v3110, 0.0
  %v3176 = vmul.f32 %v2044, 0.2
  %v3177 = vmul.f32 %v2387, 0.2
  %v3178 = vmul.f32 %v2730, 0.2
  %v3179 = vmul.f32 %v3073, 0.2
  %v3180 = vmul.f32 %v2046, 0.2
  %v3181 = vmul.f32 %v2389, 0.2
  %v3182 = vmul.f32 %v2732, 0.2
  %v3183 = vmul.f32 %v3075, 0.2
  %v3184 = vmul.f32 %v2049, 0.2
  %v3185 = vmul.f32 %v2392, 0.2
  %v3186 = vmul.f32 %v2735, 0.2
  %v3187 = vmul.f32 %v3078, 0.2
  %v3188 = vmul.f32 %v2051, 0.2
  %v3189 = vmul.f32 %v2394, 0.2
  %v3190 = vmul.f32 %v2737, 0.2
  %v3191 = vmul.f32 %v3080, 0.2
  %v3192 = vmul.f32 %v2054, 0.2
  %v3193 = vmul.f32 %v2397, 0.2
  %v3194 = vmul.f32 %v2740, 0.2
  %v3195 = vmul.f32 %v3083, 0.2
  %v3196 = vmul.f32 %v2056, 0.2
  %v3197 = vmul.f32 %v2399, 0.2
  %v3198 = vmul.f32 %v2742, 0.2
  %v3199 = vmul.f32 %v3085, 0.2
  %v3200 = vmul.f32 %v2059, 0.2
  %v3201 = vmul.f32 %v2402, 0.2
  %v3202 = vmul.f32 %v2745, 0.2
  %v3203 = vmul.f32 %v3088, 0.2
  %v3204 = vmul.f32 %v2061, 0.2
  %v3205 = vmul.f32 %v2404, 0.2
  %v3206 = vmul.f32 %v2747, 0.2
  %v3207 = vmul.f32 %v3090, 0.2
  %v3208 = vmul.f32 %v2064, 0.2
  %v3209 = vmul.f32 %v2407, 0.2
  %v3210 = vmul.f32 %v2750, 0.2
  %v3211 = vmul.f32 %v3093, 0.2
  %v3212 = vmul.f32 %v2066, 0.2
  %v3213 = vmul.f32 %v2409, 0.2
  %v3214 = vmul.f32 %v2752, 0.2
  %v3215 = vmul.f32 %v3095, 0.2
  %v3216 = vmul.f32 %v2069, 0.2
  %v3217 = vmul.f32 %v2412, 0.2
  %v3218 = vmul.f32 %v2755, 0.2
  %v3219 = vmul.f32 %v3098, 0.2
  %v3220 = vmul.f32 %v2071, 0.2
  %v3221 = vmul.f32 %v2414, 0.2
  %v3222 = vmul.f32 %v2757, 0.2
  %v3223 = vmul.f32 %v3100, 0.2
  %v3224 = vmul.f32 %v2074, 0.2
  %v3225 = vmul.f32 %v2417, 0.2
  %v3226 = vmul.f32 %v2760, 0.2
  %v3227 = vmul.f32 %v3103, 0.2
  %v3228 = vmul.f32 %v2076, 0.2
  %v3229 = vmul.f32 %v2419, 0.2
  %v3230 = vmul.f32 %v2762, 0.2
  %v3231 = vmul.f32 %v3105, 0.2
  %v3232 = vmul.f32 %v2079, 0.2
  %v3233 = vmul.f32 %v2422, 0.2
  %v3234 = vmul.f32 %v2765, 0.2
  %v3235 = vmul.f32 %v3108, 0.2
  %v3236 = vmul.f32 %v2081, 0.2
  %v3237 = vmul.f32 %v2424, 0.2
  %v3238 = vmul.f32 %v2767, 0.2
  %v3239 = vmul.f32 %v3110, 0.2
  %v3240 = vsel %vm3112, %v2044, %v3176
  %v3241 = vsel %vm3113, %v2387, %v3177
  %v3242 = vsel %vm3114, %v2730, %v3178
  %v3243 = vsel %vm3115, %v3073, %v3179
  %v3244 = vsel %vm3116, %v2046, %v3180
  %v3245 = vsel %vm3117, %v2389, %v3181
  %v3246 = vsel %vm3118, %v2732, %v3182
  %v3247 = vsel %vm3119, %v3075, %v3183
  %v3248 = vsel %vm3120, %v2049, %v3184
  %v3249 = vsel %vm3121, %v2392, %v3185
  %v3250 = vsel %vm3122, %v2735, %v3186
  %v3251 = vsel %vm3123, %v3078, %v3187
  %v3252 = vsel %vm3124, %v2051, %v3188
  %v3253 = vsel %vm3125, %v2394, %v3189
  %v3254 = vsel %vm3126, %v2737, %v3190
  %v3255 = vsel %vm3127, %v3080, %v3191
  %v3256 = vsel %vm3128, %v2054, %v3192
  %v3257 = vsel %vm3129, %v2397, %v3193
  %v3258 = vsel %vm3130, %v2740, %v3194
  %v3259 = vsel %vm3131, %v3083, %v3195
  %v3260 = vsel %vm3132, %v2056, %v3196
  %v3261 = vsel %vm3133, %v2399, %v3197
  %v3262 = vsel %vm3134, %v2742, %v3198
  %v3263 = vsel %vm3135, %v3085, %v3199
  %v3264 = vsel %vm3136, %v2059, %v3200
  %v3265 = vsel %vm3137, %v2402, %v3201
  %v3266 = vsel %vm3138, %v2745, %v3202
  %v3267 = vsel %vm3139, %v3088, %v3203
  %v3268 = vsel %vm3140, %v2061, %v3204
  %v3269 = vsel %vm3141, %v2404, %v3205
  %v3270 = vsel %vm3142, %v2747, %v3206
  %v3271 = vsel %vm3143, %v3090, %v3207
  %v3272 = vsel %vm3144, %v2064, %v3208
  %v3273 = vsel %vm3145, %v2407, %v3209
  %v3274 = vsel %vm3146, %v2750, %v3210
  %v3275 = vsel %vm3147, %v3093, %v3211
  %v3276 = vsel %vm3148, %v2066, %v3212
  %v3277 = vsel %vm3149, %v2409, %v3213
  %v3278 = vsel %vm3150, %v2752, %v3214
  %v3279 = vsel %vm3151, %v3095, %v3215
  %v3280 = vsel %vm3152, %v2069, %v3216
  %v3281 = vsel %vm3153, %v2412, %v3217
  %v3282 = vsel %vm3154, %v2755, %v3218
  %v3283 = vsel %vm3155, %v3098, %v3219
  %v3284 = vsel %vm3156, %v2071, %v3220
  %v3285 = vsel %vm3157, %v2414, %v3221
  %v3286 = vsel %vm3158, %v2757, %v3222
  %v3287 = vsel %vm3159, %v3100, %v3223
  %v3288 = vsel %vm3160, %v2074, %v3224
  %v3289 = vsel %vm3161, %v2417, %v3225
  %v3290 = vsel %vm3162, %v2760, %v3226
  %v3291 = vsel %vm3163, %v3103, %v3227
  %v3292 = vsel %vm3164, %v2076, %v3228
  %v3293 = vsel %vm3165, %v2419, %v3229
  %v3294 = vsel %vm3166, %v2762, %v3230
  %v3295 = vsel %vm3167, %v3105, %v3231
  %v3296 = vsel %vm3168, %v2079, %v3232
  %v3297 = vsel %vm3169, %v2422, %v3233
  %v3298 = vsel %vm3170, %v2765, %v3234
  %v3299 = vsel %vm3171, %v3108, %v3235
  %v3300 = vsel %vm3172, %v2081, %v3236
  %v3301 = vsel %vm3173, %v2424, %v3237
  %v3302 = vsel %vm3174, %v2767, %v3238
  %v3303 = vsel %vm3175, %v3110, %v3239
  %v3304 = vpack.c.bf16 %v3244, %v3240
  %v3305 = vpack.c.bf16 %v3245, %v3241
  %v3306 = vpack.c.bf16 %v3246, %v3242
  %v3307 = vpack.c.bf16 %v3247, %v3243
  %v3308 = vpack.c.bf16 %v3252, %v3248
  %v3309 = vpack.c.bf16 %v3253, %v3249
  %v3310 = vpack.c.bf16 %v3254, %v3250
  %v3311 = vpack.c.bf16 %v3255, %v3251
  %v3312 = vpack.c.bf16 %v3260, %v3256
  %v3313 = vpack.c.bf16 %v3261, %v3257
  %v3314 = vpack.c.bf16 %v3262, %v3258
  %v3315 = vpack.c.bf16 %v3263, %v3259
  %v3316 = vpack.c.bf16 %v3268, %v3264
  %v3317 = vpack.c.bf16 %v3269, %v3265
  %v3318 = vpack.c.bf16 %v3270, %v3266
  %v3319 = vpack.c.bf16 %v3271, %v3267
  %v3320 = vpack.c.bf16 %v3276, %v3272
  %v3321 = vpack.c.bf16 %v3277, %v3273
  %v3322 = vpack.c.bf16 %v3278, %v3274
  %v3323 = vpack.c.bf16 %v3279, %v3275
  %v3324 = vpack.c.bf16 %v3284, %v3280
  %v3325 = vpack.c.bf16 %v3285, %v3281
  %v3326 = vpack.c.bf16 %v3286, %v3282
  %v3327 = vpack.c.bf16 %v3287, %v3283
  %v3328 = vpack.c.bf16 %v3292, %v3288
  %v3329 = vpack.c.bf16 %v3293, %v3289
  %v3330 = vpack.c.bf16 %v3294, %v3290
  %v3331 = vpack.c.bf16 %v3295, %v3291
  %v3332 = vpack.c.bf16 %v3300, %v3296
  %v3333 = vpack.c.bf16 %v3301, %v3297
  %v3334 = vpack.c.bf16 %v3302, %v3298
  %v3335 = vpack.c.bf16 %v3303, %v3299
  %v3336 = vld [vmem:[%s3] sm:$0xff]
  %v3337 = vld [vmem:[%s3 + $0x8] sm:$0xff]
  %v3338 = vld [vmem:[%s3 + $0x10] sm:$0xff]
  %v3339 = vld [vmem:[%s3 + $0x18] sm:$0xff]
  %v3340 = vld [vmem:[%s3 + $0x20] sm:$0xff]
  %v3341 = vld [vmem:[%s3 + $0x28] sm:$0xff]
  %v3342 = vld [vmem:[%s3 + $0x30] sm:$0xff]
  %v3343 = vld [vmem:[%s3 + $0x38] sm:$0xff]
  %v3344 = vld [vmem:[%s3 + $0x40] sm:$0xff]
  %v3345 = vld [vmem:[%s3 + $0x48] sm:$0xff]
  %v3346 = vld [vmem:[%s3 + $0x50] sm:$0xff]
  %v3347 = vld [vmem:[%s3 + $0x58] sm:$0xff]
  %v3348 = vld [vmem:[%s3 + $0x60] sm:$0xff]
  %v3349 = vld [vmem:[%s3 + $0x68] sm:$0xff]
  %v3350 = vld [vmem:[%s3 + $0x70] sm:$0xff]
  %v3351 = vld [vmem:[%s3 + $0x78] sm:$0xff]
  %v3352 = vld [vmem:[%s3 + $0x80] sm:$0xff]
  %v3353 = vld [vmem:[%s3 + $0x88] sm:$0xff]
  %v3354 = vld [vmem:[%s3 + $0x90] sm:$0xff]
  %v3355 = vld [vmem:[%s3 + $0x98] sm:$0xff]
  %v3356 = vld [vmem:[%s3 + $0xa0] sm:$0xff]
  %v3357 = vld [vmem:[%s3 + $0xa8] sm:$0xff]
  %v3358 = vld [vmem:[%s3 + $0xb0] sm:$0xff]
  %v3359 = vld [vmem:[%s3 + $0xb8] sm:$0xff]
  %v3360 = vld [vmem:[%s3 + $0xc0] sm:$0xff]
  %v3361 = vld [vmem:[%s3 + $0xc8] sm:$0xff]
  %v3362 = vld [vmem:[%s3 + $0xd0] sm:$0xff]
  %v3363 = vld [vmem:[%s3 + $0xd8] sm:$0xff]
  %v3364 = vld [vmem:[%s3 + $0xe0] sm:$0xff]
  %v3365 = vld [vmem:[%s3 + $0xe8] sm:$0xff]
  %v3366 = vld [vmem:[%s3 + $0xf0] sm:$0xff]
  %v3367 = vld [vmem:[%s3 + $0xf8] sm:$0xff]
  %v3368 = vld [vmem:[%s3 + $0x100] sm:$0xff]
  %v3369 = vld [vmem:[%s3 + $0x108] sm:$0xff]
  %v3370 = vld [vmem:[%s3 + $0x110] sm:$0xff]
  %v3371 = vld [vmem:[%s3 + $0x118] sm:$0xff]
  %v3372 = vld [vmem:[%s3 + $0x120] sm:$0xff]
  %v3373 = vld [vmem:[%s3 + $0x128] sm:$0xff]
  %v3374 = vld [vmem:[%s3 + $0x130] sm:$0xff]
  %v3375 = vld [vmem:[%s3 + $0x138] sm:$0xff]
  %v3376 = vld [vmem:[%s3 + $0x140] sm:$0xff]
  %v3377 = vld [vmem:[%s3 + $0x148] sm:$0xff]
  %v3378 = vld [vmem:[%s3 + $0x150] sm:$0xff]
  %v3379 = vld [vmem:[%s3 + $0x158] sm:$0xff]
  %v3380 = vld [vmem:[%s3 + $0x160] sm:$0xff]
  %v3381 = vld [vmem:[%s3 + $0x168] sm:$0xff]
  %v3382 = vld [vmem:[%s3 + $0x170] sm:$0xff]
  %v3383 = vld [vmem:[%s3 + $0x178] sm:$0xff]
  %v3384 = vld [vmem:[%s3 + $0x180] sm:$0xff]
  %v3385 = vld [vmem:[%s3 + $0x188] sm:$0xff]
  %v3386 = vld [vmem:[%s3 + $0x190] sm:$0xff]
  %v3387 = vld [vmem:[%s3 + $0x198] sm:$0xff]
  %v3388 = vld [vmem:[%s3 + $0x1a0] sm:$0xff]
  %v3389 = vld [vmem:[%s3 + $0x1a8] sm:$0xff]
  %v3390 = vld [vmem:[%s3 + $0x1b0] sm:$0xff]
  %v3391 = vld [vmem:[%s3 + $0x1b8] sm:$0xff]
  %v3392 = vld [vmem:[%s3 + $0x1c0] sm:$0xff]
  %v3393 = vld [vmem:[%s3 + $0x1c8] sm:$0xff]
  %v3394 = vld [vmem:[%s3 + $0x1d0] sm:$0xff]
  %v3395 = vld [vmem:[%s3 + $0x1d8] sm:$0xff]
  %v3396 = vld [vmem:[%s3 + $0x1e0] sm:$0xff]
  %v3397 = vld [vmem:[%s3 + $0x1e8] sm:$0xff]
  %v3398 = vld [vmem:[%s3 + $0x1f0] sm:$0xff]
  %v3399 = vld [vmem:[%s3 + $0x1f8] sm:$0xff]
  %v3400 = vld [vmem:[%s4] sm:$0x3]
  %v3402 = vperm.slane %v3400, 0
  %v3403 = vperm.slane %v3400, 1
  %v3470 = vunpack.c.l.b16 %v3336
  %v3471 = vunpack.c.h.b16 %v3336
  %v3472 = vunpack.c.l.b16 %v3337
  %v3473 = vunpack.c.h.b16 %v3337
  %v3474 = vunpack.c.l.b16 %v3338
  %v3475 = vunpack.c.h.b16 %v3338
  %v3476 = vunpack.c.l.b16 %v3339
  %v3477 = vunpack.c.h.b16 %v3339
  %v3478 = vunpack.c.l.b16 %v3340
  %v3479 = vunpack.c.h.b16 %v3340
  %v3480 = vunpack.c.l.b16 %v3341
  %v3481 = vunpack.c.h.b16 %v3341
  %v3482 = vunpack.c.l.b16 %v3342
  %v3483 = vunpack.c.h.b16 %v3342
  %v3484 = vunpack.c.l.b16 %v3343
  %v3485 = vunpack.c.h.b16 %v3343
  %v3486 = vunpack.c.l.b16 %v3344
  %v3487 = vunpack.c.h.b16 %v3344
  %v3488 = vunpack.c.l.b16 %v3345
  %v3489 = vunpack.c.h.b16 %v3345
  %v3490 = vunpack.c.l.b16 %v3346
  %v3491 = vunpack.c.h.b16 %v3346
  %v3492 = vunpack.c.l.b16 %v3347
  %v3493 = vunpack.c.h.b16 %v3347
  %v3494 = vunpack.c.l.b16 %v3348
  %v3495 = vunpack.c.h.b16 %v3348
  %v3496 = vunpack.c.l.b16 %v3349
  %v3497 = vunpack.c.h.b16 %v3349
  %v3498 = vunpack.c.l.b16 %v3350
  %v3499 = vunpack.c.h.b16 %v3350
  %v3500 = vunpack.c.l.b16 %v3351
  %v3501 = vunpack.c.h.b16 %v3351
  %v3502 = vunpack.c.l.b16 %v3352
  %v3503 = vunpack.c.h.b16 %v3352
  %v3504 = vunpack.c.l.b16 %v3353
  %v3505 = vunpack.c.h.b16 %v3353
  %v3506 = vunpack.c.l.b16 %v3354
  %v3507 = vunpack.c.h.b16 %v3354
  %v3508 = vunpack.c.l.b16 %v3355
  %v3509 = vunpack.c.h.b16 %v3355
  %v3510 = vunpack.c.l.b16 %v3356
  %v3511 = vunpack.c.h.b16 %v3356
  %v3512 = vunpack.c.l.b16 %v3357
  %v3513 = vunpack.c.h.b16 %v3357
  %v3514 = vunpack.c.l.b16 %v3358
  %v3515 = vunpack.c.h.b16 %v3358
  %v3516 = vunpack.c.l.b16 %v3359
  %v3517 = vunpack.c.h.b16 %v3359
  %v3518 = vunpack.c.l.b16 %v3360
  %v3519 = vunpack.c.h.b16 %v3360
  %v3520 = vunpack.c.l.b16 %v3361
  %v3521 = vunpack.c.h.b16 %v3361
  %v3522 = vunpack.c.l.b16 %v3362
  %v3523 = vunpack.c.h.b16 %v3362
  %v3524 = vunpack.c.l.b16 %v3363
  %v3525 = vunpack.c.h.b16 %v3363
  %v3526 = vunpack.c.l.b16 %v3364
  %v3527 = vunpack.c.h.b16 %v3364
  %v3528 = vunpack.c.l.b16 %v3365
  %v3529 = vunpack.c.h.b16 %v3365
  %v3530 = vunpack.c.l.b16 %v3366
  %v3531 = vunpack.c.h.b16 %v3366
  %v3532 = vunpack.c.l.b16 %v3367
  %v3533 = vunpack.c.h.b16 %v3367
  %v3534 = vunpack.c.l.b16 %v3368
  %v3535 = vunpack.c.h.b16 %v3368
  %v3536 = vunpack.c.l.b16 %v3369
  %v3537 = vunpack.c.h.b16 %v3369
  %v3538 = vunpack.c.l.b16 %v3370
  %v3539 = vunpack.c.h.b16 %v3370
  %v3540 = vunpack.c.l.b16 %v3371
  %v3541 = vunpack.c.h.b16 %v3371
  %v3542 = vunpack.c.l.b16 %v3372
  %v3543 = vunpack.c.h.b16 %v3372
  %v3544 = vunpack.c.l.b16 %v3373
  %v3545 = vunpack.c.h.b16 %v3373
  %v3546 = vunpack.c.l.b16 %v3374
  %v3547 = vunpack.c.h.b16 %v3374
  %v3548 = vunpack.c.l.b16 %v3375
  %v3549 = vunpack.c.h.b16 %v3375
  %v3550 = vunpack.c.l.b16 %v3376
  %v3551 = vunpack.c.h.b16 %v3376
  %v3552 = vunpack.c.l.b16 %v3377
  %v3553 = vunpack.c.h.b16 %v3377
  %v3554 = vunpack.c.l.b16 %v3378
  %v3555 = vunpack.c.h.b16 %v3378
  %v3556 = vunpack.c.l.b16 %v3379
  %v3557 = vunpack.c.h.b16 %v3379
  %v3558 = vunpack.c.l.b16 %v3380
  %v3559 = vunpack.c.h.b16 %v3380
  %v3560 = vunpack.c.l.b16 %v3381
  %v3561 = vunpack.c.h.b16 %v3381
  %v3562 = vunpack.c.l.b16 %v3382
  %v3563 = vunpack.c.h.b16 %v3382
  %v3564 = vunpack.c.l.b16 %v3383
  %v3565 = vunpack.c.h.b16 %v3383
  %v3566 = vunpack.c.l.b16 %v3384
  %v3567 = vunpack.c.h.b16 %v3384
  %v3568 = vunpack.c.l.b16 %v3385
  %v3569 = vunpack.c.h.b16 %v3385
  %v3570 = vunpack.c.l.b16 %v3386
  %v3571 = vunpack.c.h.b16 %v3386
  %v3572 = vunpack.c.l.b16 %v3387
  %v3573 = vunpack.c.h.b16 %v3387
  %v3574 = vunpack.c.l.b16 %v3388
  %v3575 = vunpack.c.h.b16 %v3388
  %v3576 = vunpack.c.l.b16 %v3389
  %v3577 = vunpack.c.h.b16 %v3389
  %v3578 = vunpack.c.l.b16 %v3390
  %v3579 = vunpack.c.h.b16 %v3390
  %v3580 = vunpack.c.l.b16 %v3391
  %v3581 = vunpack.c.h.b16 %v3391
  %v3582 = vunpack.c.l.b16 %v3392
  %v3583 = vunpack.c.h.b16 %v3392
  %v3584 = vunpack.c.l.b16 %v3393
  %v3585 = vunpack.c.h.b16 %v3393
  %v3586 = vunpack.c.l.b16 %v3394
  %v3587 = vunpack.c.h.b16 %v3394
  %v3588 = vunpack.c.l.b16 %v3395
  %v3589 = vunpack.c.h.b16 %v3395
  %v3590 = vunpack.c.l.b16 %v3396
  %v3591 = vunpack.c.h.b16 %v3396
  %v3592 = vunpack.c.l.b16 %v3397
  %v3593 = vunpack.c.h.b16 %v3397
  %v3594 = vunpack.c.l.b16 %v3398
  %v3595 = vunpack.c.h.b16 %v3398
  %v3596 = vunpack.c.l.b16 %v3399
  %v3597 = vunpack.c.h.b16 %v3399
  %v3598 = vpack.c.b16 %v3472, %v3470
  %v3599 = vpack.c.b16 %v3473, %v3471
  %v3600 = vpack.c.b16 %v3476, %v3474
  %v3601 = vpack.c.b16 %v3477, %v3475
  %v3602 = vpack.c.b16 %v3480, %v3478
  %v3603 = vpack.c.b16 %v3481, %v3479
  %v3604 = vpack.c.b16 %v3484, %v3482
  %v3605 = vpack.c.b16 %v3485, %v3483
  %v3606 = vpack.c.b16 %v3488, %v3486
  %v3607 = vpack.c.b16 %v3489, %v3487
  %v3608 = vpack.c.b16 %v3492, %v3490
  %v3609 = vpack.c.b16 %v3493, %v3491
  %v3610 = vpack.c.b16 %v3496, %v3494
  %v3611 = vpack.c.b16 %v3497, %v3495
  %v3612 = vpack.c.b16 %v3500, %v3498
  %v3613 = vpack.c.b16 %v3501, %v3499
  %v3614 = vpack.c.b16 %v3504, %v3502
  %v3615 = vpack.c.b16 %v3505, %v3503
  %v3616 = vpack.c.b16 %v3508, %v3506
  %v3617 = vpack.c.b16 %v3509, %v3507
  %v3618 = vpack.c.b16 %v3512, %v3510
  %v3619 = vpack.c.b16 %v3513, %v3511
  %v3620 = vpack.c.b16 %v3516, %v3514
  %v3621 = vpack.c.b16 %v3517, %v3515
  %v3622 = vpack.c.b16 %v3520, %v3518
  %v3623 = vpack.c.b16 %v3521, %v3519
  %v3624 = vpack.c.b16 %v3524, %v3522
  %v3625 = vpack.c.b16 %v3525, %v3523
  %v3626 = vpack.c.b16 %v3528, %v3526
  %v3627 = vpack.c.b16 %v3529, %v3527
  %v3628 = vpack.c.b16 %v3532, %v3530
  %v3629 = vpack.c.b16 %v3533, %v3531
  %v3630 = vpack.c.b16 %v3536, %v3534
  %v3631 = vpack.c.b16 %v3537, %v3535
  %v3632 = vpack.c.b16 %v3540, %v3538
  %v3633 = vpack.c.b16 %v3541, %v3539
  %v3634 = vpack.c.b16 %v3544, %v3542
  %v3635 = vpack.c.b16 %v3545, %v3543
  %v3636 = vpack.c.b16 %v3548, %v3546
  %v3637 = vpack.c.b16 %v3549, %v3547
  %v3638 = vpack.c.b16 %v3552, %v3550
  %v3639 = vpack.c.b16 %v3553, %v3551
  %v3640 = vpack.c.b16 %v3556, %v3554
  %v3641 = vpack.c.b16 %v3557, %v3555
  %v3642 = vpack.c.b16 %v3560, %v3558
  %v3643 = vpack.c.b16 %v3561, %v3559
  %v3644 = vpack.c.b16 %v3564, %v3562
  %v3645 = vpack.c.b16 %v3565, %v3563
  %v3646 = vpack.c.b16 %v3568, %v3566
  %v3647 = vpack.c.b16 %v3569, %v3567
  %v3648 = vpack.c.b16 %v3572, %v3570
  %v3649 = vpack.c.b16 %v3573, %v3571
  %v3650 = vpack.c.b16 %v3576, %v3574
  %v3651 = vpack.c.b16 %v3577, %v3575
  %v3652 = vpack.c.b16 %v3580, %v3578
  %v3653 = vpack.c.b16 %v3581, %v3579
  %v3654 = vpack.c.b16 %v3584, %v3582
  %v3655 = vpack.c.b16 %v3585, %v3583
  %v3656 = vpack.c.b16 %v3588, %v3586
  %v3657 = vpack.c.b16 %v3589, %v3587
  %v3658 = vpack.c.b16 %v3592, %v3590
  %v3659 = vpack.c.b16 %v3593, %v3591
  %v3660 = vpack.c.b16 %v3596, %v3594
  %v3661 = vpack.c.b16 %v3597, %v3595
  %3726 = vmatpush.bf16.msra.mxu0 %v3612
  %3727 = vmatpush.bf16.msra.mxu0 %v3610
  %3728 = vmatpush.bf16.msra.mxu0 %v3608
  %3729 = vmatpush.bf16.msra.mxu0 %v3606
  %3730 = vmatpush.bf16.msra.mxu0 %v3604
  %3731 = vmatpush.bf16.msra.mxu0 %v3602
  %3732 = vmatpush.bf16.msra.mxu0 %v3600
  %3733 = vmatpush.bf16.msra.mxu0 %v3598
  %3734 = vmatmul.bf16.gmra.mxu0 %v3304
  %v3735 = vpop.f32.mrf.mxu0
  %v3736 = vadd.f32 %v3402, %v3735
  %v3737 = vpop.f32.mrf.mxu0
  %v3738 = vadd.f32 %v3402, %v3737
  %3739 = vmatmul.bf16.gmra.mxu0 %v3308
  %v3740 = vpop.f32.mrf.mxu0
  %v3741 = vadd.f32 %v3402, %v3740
  %v3742 = vpop.f32.mrf.mxu0
  %v3743 = vadd.f32 %v3402, %v3742
  %3744 = vmatmul.bf16.gmra.mxu0 %v3312
  %v3745 = vpop.f32.mrf.mxu0
  %v3746 = vadd.f32 %v3402, %v3745
  %v3747 = vpop.f32.mrf.mxu0
  %v3748 = vadd.f32 %v3402, %v3747
  %3749 = vmatmul.bf16.gmra.mxu0 %v3316
  %v3750 = vpop.f32.mrf.mxu0
  %v3751 = vadd.f32 %v3402, %v3750
  %v3752 = vpop.f32.mrf.mxu0
  %v3753 = vadd.f32 %v3402, %v3752
  %3754 = vmatmul.bf16.gmra.mxu0 %v3320
  %v3755 = vpop.f32.mrf.mxu0
  %v3756 = vadd.f32 %v3402, %v3755
  %v3757 = vpop.f32.mrf.mxu0
  %v3758 = vadd.f32 %v3402, %v3757
  %3759 = vmatmul.bf16.gmra.mxu0 %v3324
  %v3760 = vpop.f32.mrf.mxu0
  %v3761 = vadd.f32 %v3402, %v3760
  %v3762 = vpop.f32.mrf.mxu0
  %v3763 = vadd.f32 %v3402, %v3762
  %3764 = vmatmul.bf16.gmra.mxu0 %v3328
  %v3765 = vpop.f32.mrf.mxu0
  %v3766 = vadd.f32 %v3402, %v3765
  %v3767 = vpop.f32.mrf.mxu0
  %v3768 = vadd.f32 %v3402, %v3767
  %3769 = vmatmul.bf16.gmra.mxu0 %v3332
  %v3770 = vpop.f32.mrf.mxu0
  %v3771 = vadd.f32 %v3402, %v3770
  %v3772 = vpop.f32.mrf.mxu0
  %v3773 = vadd.f32 %v3402, %v3772
  %3774 = vdwg.mxu0
  %3775 = vmatpush.bf16.msra.mxu0 %v3628
  %3776 = vmatpush.bf16.msra.mxu0 %v3626
  %3777 = vmatpush.bf16.msra.mxu0 %v3624
  %3778 = vmatpush.bf16.msra.mxu0 %v3622
  %3779 = vmatpush.bf16.msra.mxu0 %v3620
  %3780 = vmatpush.bf16.msra.mxu0 %v3618
  %3781 = vmatpush.bf16.msra.mxu0 %v3616
  %3782 = vmatpush.bf16.msra.mxu0 %v3614
  %3783 = vmatmul.bf16.gmra.mxu0 %v3305
  %v3784 = vpop.f32.mrf.mxu0
  %v3785 = vadd.f32 %v3736, %v3784
  %v3786 = vpop.f32.mrf.mxu0
  %v3787 = vadd.f32 %v3738, %v3786
  %3788 = vmatmul.bf16.gmra.mxu0 %v3309
  %v3789 = vpop.f32.mrf.mxu0
  %v3790 = vadd.f32 %v3741, %v3789
  %v3791 = vpop.f32.mrf.mxu0
  %v3792 = vadd.f32 %v3743, %v3791
  %3793 = vmatmul.bf16.gmra.mxu0 %v3313
  %v3794 = vpop.f32.mrf.mxu0
  %v3795 = vadd.f32 %v3746, %v3794
  %v3796 = vpop.f32.mrf.mxu0
  %v3797 = vadd.f32 %v3748, %v3796
  %3798 = vmatmul.bf16.gmra.mxu0 %v3317
  %v3799 = vpop.f32.mrf.mxu0
  %v3800 = vadd.f32 %v3751, %v3799
  %v3801 = vpop.f32.mrf.mxu0
  %v3802 = vadd.f32 %v3753, %v3801
  %3803 = vmatmul.bf16.gmra.mxu0 %v3321
  %v3804 = vpop.f32.mrf.mxu0
  %v3805 = vadd.f32 %v3756, %v3804
  %v3806 = vpop.f32.mrf.mxu0
  %v3807 = vadd.f32 %v3758, %v3806
  %3808 = vmatmul.bf16.gmra.mxu0 %v3325
  %v3809 = vpop.f32.mrf.mxu0
  %v3810 = vadd.f32 %v3761, %v3809
  %v3811 = vpop.f32.mrf.mxu0
  %v3812 = vadd.f32 %v3763, %v3811
  %3813 = vmatmul.bf16.gmra.mxu0 %v3329
  %v3814 = vpop.f32.mrf.mxu0
  %v3815 = vadd.f32 %v3766, %v3814
  %v3816 = vpop.f32.mrf.mxu0
  %v3817 = vadd.f32 %v3768, %v3816
  %3818 = vmatmul.bf16.gmra.mxu0 %v3333
  %v3819 = vpop.f32.mrf.mxu0
  %v3820 = vadd.f32 %v3771, %v3819
  %v3821 = vpop.f32.mrf.mxu0
  %v3822 = vadd.f32 %v3773, %v3821
  %3823 = vdwg.mxu0
  %3824 = vmatpush.bf16.msra.mxu0 %v3644
  %3825 = vmatpush.bf16.msra.mxu0 %v3642
  %3826 = vmatpush.bf16.msra.mxu0 %v3640
  %3827 = vmatpush.bf16.msra.mxu0 %v3638
  %3828 = vmatpush.bf16.msra.mxu0 %v3636
  %3829 = vmatpush.bf16.msra.mxu0 %v3634
  %3830 = vmatpush.bf16.msra.mxu0 %v3632
  %3831 = vmatpush.bf16.msra.mxu0 %v3630
  %3832 = vmatmul.bf16.gmra.mxu0 %v3306
  %v3833 = vpop.f32.mrf.mxu0
  %v3834 = vadd.f32 %v3785, %v3833
  %v3835 = vpop.f32.mrf.mxu0
  %v3836 = vadd.f32 %v3787, %v3835
  %3837 = vmatmul.bf16.gmra.mxu0 %v3310
  %v3838 = vpop.f32.mrf.mxu0
  %v3839 = vadd.f32 %v3790, %v3838
  %v3840 = vpop.f32.mrf.mxu0
  %v3841 = vadd.f32 %v3792, %v3840
  %3842 = vmatmul.bf16.gmra.mxu0 %v3314
  %v3843 = vpop.f32.mrf.mxu0
  %v3844 = vadd.f32 %v3795, %v3843
  %v3845 = vpop.f32.mrf.mxu0
  %v3846 = vadd.f32 %v3797, %v3845
  %3847 = vmatmul.bf16.gmra.mxu0 %v3318
  %v3848 = vpop.f32.mrf.mxu0
  %v3849 = vadd.f32 %v3800, %v3848
  %v3850 = vpop.f32.mrf.mxu0
  %v3851 = vadd.f32 %v3802, %v3850
  %3852 = vmatmul.bf16.gmra.mxu0 %v3322
  %v3853 = vpop.f32.mrf.mxu0
  %v3854 = vadd.f32 %v3805, %v3853
  %v3855 = vpop.f32.mrf.mxu0
  %v3856 = vadd.f32 %v3807, %v3855
  %3857 = vmatmul.bf16.gmra.mxu0 %v3326
  %v3858 = vpop.f32.mrf.mxu0
  %v3859 = vadd.f32 %v3810, %v3858
  %v3860 = vpop.f32.mrf.mxu0
  %v3861 = vadd.f32 %v3812, %v3860
  %3862 = vmatmul.bf16.gmra.mxu0 %v3330
  %v3863 = vpop.f32.mrf.mxu0
  %v3864 = vadd.f32 %v3815, %v3863
  %v3865 = vpop.f32.mrf.mxu0
  %v3866 = vadd.f32 %v3817, %v3865
  %3867 = vmatmul.bf16.gmra.mxu0 %v3334
  %v3868 = vpop.f32.mrf.mxu0
  %v3869 = vadd.f32 %v3820, %v3868
  %v3870 = vpop.f32.mrf.mxu0
  %v3871 = vadd.f32 %v3822, %v3870
  %3872 = vdwg.mxu0
  %3873 = vmatpush.bf16.msra.mxu0 %v3660
  %3874 = vmatpush.bf16.msra.mxu0 %v3658
  %3875 = vmatpush.bf16.msra.mxu0 %v3656
  %3876 = vmatpush.bf16.msra.mxu0 %v3654
  %3877 = vmatpush.bf16.msra.mxu0 %v3652
  %3878 = vmatpush.bf16.msra.mxu0 %v3650
  %3879 = vmatpush.bf16.msra.mxu0 %v3648
  %3880 = vmatpush.bf16.msra.mxu0 %v3646
  %3881 = vmatmul.bf16.gmra.mxu0 %v3307
  %v3882 = vpop.f32.mrf.mxu0
  %v3883 = vadd.f32 %v3834, %v3882
  %v3884 = vpop.f32.mrf.mxu0
  %v3885 = vadd.f32 %v3836, %v3884
  %3886 = vmatmul.bf16.gmra.mxu0 %v3311
  %v3887 = vpop.f32.mrf.mxu0
  %v3888 = vadd.f32 %v3839, %v3887
  %v3889 = vpop.f32.mrf.mxu0
  %v3890 = vadd.f32 %v3841, %v3889
  %3891 = vmatmul.bf16.gmra.mxu0 %v3315
  %v3892 = vpop.f32.mrf.mxu0
  %v3893 = vadd.f32 %v3844, %v3892
  %v3894 = vpop.f32.mrf.mxu0
  %v3895 = vadd.f32 %v3846, %v3894
  %3896 = vmatmul.bf16.gmra.mxu0 %v3319
  %v3897 = vpop.f32.mrf.mxu0
  %v3898 = vadd.f32 %v3849, %v3897
  %v3899 = vpop.f32.mrf.mxu0
  %v3900 = vadd.f32 %v3851, %v3899
  %3901 = vmatmul.bf16.gmra.mxu0 %v3323
  %v3902 = vpop.f32.mrf.mxu0
  %v3903 = vadd.f32 %v3854, %v3902
  %v3904 = vpop.f32.mrf.mxu0
  %v3905 = vadd.f32 %v3856, %v3904
  %3906 = vmatmul.bf16.gmra.mxu0 %v3327
  %v3907 = vpop.f32.mrf.mxu0
  %v3908 = vadd.f32 %v3859, %v3907
  %v3909 = vpop.f32.mrf.mxu0
  %v3910 = vadd.f32 %v3861, %v3909
  %3911 = vmatmul.bf16.gmra.mxu0 %v3331
  %v3912 = vpop.f32.mrf.mxu0
  %v3913 = vadd.f32 %v3864, %v3912
  %v3914 = vpop.f32.mrf.mxu0
  %v3915 = vadd.f32 %v3866, %v3914
  %3916 = vmatmul.bf16.gmra.mxu0 %v3335
  %v3917 = vpop.f32.mrf.mxu0
  %v3918 = vadd.f32 %v3869, %v3917
  %v3919 = vpop.f32.mrf.mxu0
  %v3920 = vadd.f32 %v3871, %v3919
  %3921 = vdwg.mxu0
  %3922 = vmatpush.bf16.msra.mxu0 %v3613
  %3923 = vmatpush.bf16.msra.mxu0 %v3611
  %3924 = vmatpush.bf16.msra.mxu0 %v3609
  %3925 = vmatpush.bf16.msra.mxu0 %v3607
  %3926 = vmatpush.bf16.msra.mxu0 %v3605
  %3927 = vmatpush.bf16.msra.mxu0 %v3603
  %3928 = vmatpush.bf16.msra.mxu0 %v3601
  %3929 = vmatpush.bf16.msra.mxu0 %v3599
  %3930 = vmatmul.bf16.gmra.mxu0 %v3304
  %v3931 = vpop.f32.mrf.mxu0
  %v3932 = vadd.f32 %v3403, %v3931
  %v3933 = vpop.f32.mrf.mxu0
  %v3934 = vadd.f32 %v3403, %v3933
  %3935 = vmatmul.bf16.gmra.mxu0 %v3308
  %v3936 = vpop.f32.mrf.mxu0
  %v3937 = vadd.f32 %v3403, %v3936
  %v3938 = vpop.f32.mrf.mxu0
  %v3939 = vadd.f32 %v3403, %v3938
  %3940 = vmatmul.bf16.gmra.mxu0 %v3312
  %v3941 = vpop.f32.mrf.mxu0
  %v3942 = vadd.f32 %v3403, %v3941
  %v3943 = vpop.f32.mrf.mxu0
  %v3944 = vadd.f32 %v3403, %v3943
  %3945 = vmatmul.bf16.gmra.mxu0 %v3316
  %v3946 = vpop.f32.mrf.mxu0
  %v3947 = vadd.f32 %v3403, %v3946
  %v3948 = vpop.f32.mrf.mxu0
  %v3949 = vadd.f32 %v3403, %v3948
  %3950 = vmatmul.bf16.gmra.mxu0 %v3320
  %v3951 = vpop.f32.mrf.mxu0
  %v3952 = vadd.f32 %v3403, %v3951
  %v3953 = vpop.f32.mrf.mxu0
  %v3954 = vadd.f32 %v3403, %v3953
  %3955 = vmatmul.bf16.gmra.mxu0 %v3324
  %v3956 = vpop.f32.mrf.mxu0
  %v3957 = vadd.f32 %v3403, %v3956
  %v3958 = vpop.f32.mrf.mxu0
  %v3959 = vadd.f32 %v3403, %v3958
  %3960 = vmatmul.bf16.gmra.mxu0 %v3328
  %v3961 = vpop.f32.mrf.mxu0
  %v3962 = vadd.f32 %v3403, %v3961
  %v3963 = vpop.f32.mrf.mxu0
  %v3964 = vadd.f32 %v3403, %v3963
  %3965 = vmatmul.bf16.gmra.mxu0 %v3332
  %v3966 = vpop.f32.mrf.mxu0
  %v3967 = vadd.f32 %v3403, %v3966
  %v3968 = vpop.f32.mrf.mxu0
  %v3969 = vadd.f32 %v3403, %v3968
  %3970 = vdwg.mxu0
  %3971 = vmatpush.bf16.msra.mxu0 %v3629
  %3972 = vmatpush.bf16.msra.mxu0 %v3627
  %3973 = vmatpush.bf16.msra.mxu0 %v3625
  %3974 = vmatpush.bf16.msra.mxu0 %v3623
  %3975 = vmatpush.bf16.msra.mxu0 %v3621
  %3976 = vmatpush.bf16.msra.mxu0 %v3619
  %3977 = vmatpush.bf16.msra.mxu0 %v3617
  %3978 = vmatpush.bf16.msra.mxu0 %v3615
  %3979 = vmatmul.bf16.gmra.mxu0 %v3305
  %v3980 = vpop.f32.mrf.mxu0
  %v3981 = vadd.f32 %v3932, %v3980
  %v3982 = vpop.f32.mrf.mxu0
  %v3983 = vadd.f32 %v3934, %v3982
  %3984 = vmatmul.bf16.gmra.mxu0 %v3309
  %v3985 = vpop.f32.mrf.mxu0
  %v3986 = vadd.f32 %v3937, %v3985
  %v3987 = vpop.f32.mrf.mxu0
  %v3988 = vadd.f32 %v3939, %v3987
  %3989 = vmatmul.bf16.gmra.mxu0 %v3313
  %v3990 = vpop.f32.mrf.mxu0
  %v3991 = vadd.f32 %v3942, %v3990
  %v3992 = vpop.f32.mrf.mxu0
  %v3993 = vadd.f32 %v3944, %v3992
  %3994 = vmatmul.bf16.gmra.mxu0 %v3317
  %v3995 = vpop.f32.mrf.mxu0
  %v3996 = vadd.f32 %v3947, %v3995
  %v3997 = vpop.f32.mrf.mxu0
  %v3998 = vadd.f32 %v3949, %v3997
  %3999 = vmatmul.bf16.gmra.mxu0 %v3321
  %v4000 = vpop.f32.mrf.mxu0
  %v4001 = vadd.f32 %v3952, %v4000
  %v4002 = vpop.f32.mrf.mxu0
  %v4003 = vadd.f32 %v3954, %v4002
  %4004 = vmatmul.bf16.gmra.mxu0 %v3325
  %v4005 = vpop.f32.mrf.mxu0
  %v4006 = vadd.f32 %v3957, %v4005
  %v4007 = vpop.f32.mrf.mxu0
  %v4008 = vadd.f32 %v3959, %v4007
  %4009 = vmatmul.bf16.gmra.mxu0 %v3329
  %v4010 = vpop.f32.mrf.mxu0
  %v4011 = vadd.f32 %v3962, %v4010
  %v4012 = vpop.f32.mrf.mxu0
  %v4013 = vadd.f32 %v3964, %v4012
  %4014 = vmatmul.bf16.gmra.mxu0 %v3333
  %v4015 = vpop.f32.mrf.mxu0
  %v4016 = vadd.f32 %v3967, %v4015
  %v4017 = vpop.f32.mrf.mxu0
  %v4018 = vadd.f32 %v3969, %v4017
  %4019 = vdwg.mxu0
  %4020 = vmatpush.bf16.msra.mxu0 %v3645
  %4021 = vmatpush.bf16.msra.mxu0 %v3643
  %4022 = vmatpush.bf16.msra.mxu0 %v3641
  %4023 = vmatpush.bf16.msra.mxu0 %v3639
  %4024 = vmatpush.bf16.msra.mxu0 %v3637
  %4025 = vmatpush.bf16.msra.mxu0 %v3635
  %4026 = vmatpush.bf16.msra.mxu0 %v3633
  %4027 = vmatpush.bf16.msra.mxu0 %v3631
  %4028 = vmatmul.bf16.gmra.mxu0 %v3306
  %v4029 = vpop.f32.mrf.mxu0
  %v4030 = vadd.f32 %v3981, %v4029
  %v4031 = vpop.f32.mrf.mxu0
  %v4032 = vadd.f32 %v3983, %v4031
  %4033 = vmatmul.bf16.gmra.mxu0 %v3310
  %v4034 = vpop.f32.mrf.mxu0
  %v4035 = vadd.f32 %v3986, %v4034
  %v4036 = vpop.f32.mrf.mxu0
  %v4037 = vadd.f32 %v3988, %v4036
  %4038 = vmatmul.bf16.gmra.mxu0 %v3314
  %v4039 = vpop.f32.mrf.mxu0
  %v4040 = vadd.f32 %v3991, %v4039
  %v4041 = vpop.f32.mrf.mxu0
  %v4042 = vadd.f32 %v3993, %v4041
  %4043 = vmatmul.bf16.gmra.mxu0 %v3318
  %v4044 = vpop.f32.mrf.mxu0
  %v4045 = vadd.f32 %v3996, %v4044
  %v4046 = vpop.f32.mrf.mxu0
  %v4047 = vadd.f32 %v3998, %v4046
  %4048 = vmatmul.bf16.gmra.mxu0 %v3322
  %v4049 = vpop.f32.mrf.mxu0
  %v4050 = vadd.f32 %v4001, %v4049
  %v4051 = vpop.f32.mrf.mxu0
  %v4052 = vadd.f32 %v4003, %v4051
  %4053 = vmatmul.bf16.gmra.mxu0 %v3326
  %v4054 = vpop.f32.mrf.mxu0
  %v4055 = vadd.f32 %v4006, %v4054
  %v4056 = vpop.f32.mrf.mxu0
  %v4057 = vadd.f32 %v4008, %v4056
  %4058 = vmatmul.bf16.gmra.mxu0 %v3330
  %v4059 = vpop.f32.mrf.mxu0
  %v4060 = vadd.f32 %v4011, %v4059
  %v4061 = vpop.f32.mrf.mxu0
  %v4062 = vadd.f32 %v4013, %v4061
  %4063 = vmatmul.bf16.gmra.mxu0 %v3334
  %v4064 = vpop.f32.mrf.mxu0
  %v4065 = vadd.f32 %v4016, %v4064
  %v4066 = vpop.f32.mrf.mxu0
  %v4067 = vadd.f32 %v4018, %v4066
  %4068 = vdwg.mxu0
  %4069 = vmatpush.bf16.msra.mxu0 %v3661
  %4070 = vmatpush.bf16.msra.mxu0 %v3659
  %4071 = vmatpush.bf16.msra.mxu0 %v3657
  %4072 = vmatpush.bf16.msra.mxu0 %v3655
  %4073 = vmatpush.bf16.msra.mxu0 %v3653
  %4074 = vmatpush.bf16.msra.mxu0 %v3651
  %4075 = vmatpush.bf16.msra.mxu0 %v3649
  %4076 = vmatpush.bf16.msra.mxu0 %v3647
  %4077 = vmatmul.bf16.gmra.mxu0 %v3307
  %v4078 = vpop.f32.mrf.mxu0
  %v4079 = vadd.f32 %v4030, %v4078
  %v4080 = vpop.f32.mrf.mxu0
  %v4081 = vadd.f32 %v4032, %v4080
  %4082 = vmatmul.bf16.gmra.mxu0 %v3311
  %v4083 = vpop.f32.mrf.mxu0
  %v4084 = vadd.f32 %v4035, %v4083
  %v4085 = vpop.f32.mrf.mxu0
  %v4086 = vadd.f32 %v4037, %v4085
  %4087 = vmatmul.bf16.gmra.mxu0 %v3315
  %v4088 = vpop.f32.mrf.mxu0
  %v4089 = vadd.f32 %v4040, %v4088
  %v4090 = vpop.f32.mrf.mxu0
  %v4091 = vadd.f32 %v4042, %v4090
  %4092 = vmatmul.bf16.gmra.mxu0 %v3319
  %v4093 = vpop.f32.mrf.mxu0
  %v4094 = vadd.f32 %v4045, %v4093
  %v4095 = vpop.f32.mrf.mxu0
  %v4096 = vadd.f32 %v4047, %v4095
  %4097 = vmatmul.bf16.gmra.mxu0 %v3323
  %v4098 = vpop.f32.mrf.mxu0
  %v4099 = vadd.f32 %v4050, %v4098
  %v4100 = vpop.f32.mrf.mxu0
  %v4101 = vadd.f32 %v4052, %v4100
  %4102 = vmatmul.bf16.gmra.mxu0 %v3327
  %v4103 = vpop.f32.mrf.mxu0
  %v4104 = vadd.f32 %v4055, %v4103
  %v4105 = vpop.f32.mrf.mxu0
  %v4106 = vadd.f32 %v4057, %v4105
  %4107 = vmatmul.bf16.gmra.mxu0 %v3331
  %v4108 = vpop.f32.mrf.mxu0
  %v4109 = vadd.f32 %v4060, %v4108
  %v4110 = vpop.f32.mrf.mxu0
  %v4111 = vadd.f32 %v4062, %v4110
  %4112 = vmatmul.bf16.gmra.mxu0 %v3335
  %v4113 = vpop.f32.mrf.mxu0
  %v4114 = vadd.f32 %v4065, %v4113
  %v4115 = vpop.f32.mrf.mxu0
  %v4116 = vadd.f32 %v4067, %v4115
  %4117 = vdwg.mxu0
  %vm4118 = vcmp.gt.f32.partialorder %v3883, 0.0
  %vm4119 = vcmp.gt.f32.partialorder %v4079, 0.0
  %vm4120 = vcmp.gt.f32.partialorder %v3885, 0.0
  %vm4121 = vcmp.gt.f32.partialorder %v4081, 0.0
  %vm4122 = vcmp.gt.f32.partialorder %v3888, 0.0
  %vm4123 = vcmp.gt.f32.partialorder %v4084, 0.0
  %vm4124 = vcmp.gt.f32.partialorder %v3890, 0.0
  %vm4125 = vcmp.gt.f32.partialorder %v4086, 0.0
  %vm4126 = vcmp.gt.f32.partialorder %v3893, 0.0
  %vm4127 = vcmp.gt.f32.partialorder %v4089, 0.0
  %vm4128 = vcmp.gt.f32.partialorder %v3895, 0.0
  %vm4129 = vcmp.gt.f32.partialorder %v4091, 0.0
  %vm4130 = vcmp.gt.f32.partialorder %v3898, 0.0
  %vm4131 = vcmp.gt.f32.partialorder %v4094, 0.0
  %vm4132 = vcmp.gt.f32.partialorder %v3900, 0.0
  %vm4133 = vcmp.gt.f32.partialorder %v4096, 0.0
  %vm4134 = vcmp.gt.f32.partialorder %v3903, 0.0
  %vm4135 = vcmp.gt.f32.partialorder %v4099, 0.0
  %vm4136 = vcmp.gt.f32.partialorder %v3905, 0.0
  %vm4137 = vcmp.gt.f32.partialorder %v4101, 0.0
  %vm4138 = vcmp.gt.f32.partialorder %v3908, 0.0
  %vm4139 = vcmp.gt.f32.partialorder %v4104, 0.0
  %vm4140 = vcmp.gt.f32.partialorder %v3910, 0.0
  %vm4141 = vcmp.gt.f32.partialorder %v4106, 0.0
  %vm4142 = vcmp.gt.f32.partialorder %v3913, 0.0
  %vm4143 = vcmp.gt.f32.partialorder %v4109, 0.0
  %vm4144 = vcmp.gt.f32.partialorder %v3915, 0.0
  %vm4145 = vcmp.gt.f32.partialorder %v4111, 0.0
  %vm4146 = vcmp.gt.f32.partialorder %v3918, 0.0
  %vm4147 = vcmp.gt.f32.partialorder %v4114, 0.0
  %vm4148 = vcmp.gt.f32.partialorder %v3920, 0.0
  %vm4149 = vcmp.gt.f32.partialorder %v4116, 0.0
  %v4150 = vmul.f32 %v3883, 0.2
  %v4151 = vmul.f32 %v4079, 0.2
  %v4152 = vmul.f32 %v3885, 0.2
  %v4153 = vmul.f32 %v4081, 0.2
  %v4154 = vmul.f32 %v3888, 0.2
  %v4155 = vmul.f32 %v4084, 0.2
  %v4156 = vmul.f32 %v3890, 0.2
  %v4157 = vmul.f32 %v4086, 0.2
  %v4158 = vmul.f32 %v3893, 0.2
  %v4159 = vmul.f32 %v4089, 0.2
  %v4160 = vmul.f32 %v3895, 0.2
  %v4161 = vmul.f32 %v4091, 0.2
  %v4162 = vmul.f32 %v3898, 0.2
  %v4163 = vmul.f32 %v4094, 0.2
  %v4164 = vmul.f32 %v3900, 0.2
  %v4165 = vmul.f32 %v4096, 0.2
  %v4166 = vmul.f32 %v3903, 0.2
  %v4167 = vmul.f32 %v4099, 0.2
  %v4168 = vmul.f32 %v3905, 0.2
  %v4169 = vmul.f32 %v4101, 0.2
  %v4170 = vmul.f32 %v3908, 0.2
  %v4171 = vmul.f32 %v4104, 0.2
  %v4172 = vmul.f32 %v3910, 0.2
  %v4173 = vmul.f32 %v4106, 0.2
  %v4174 = vmul.f32 %v3913, 0.2
  %v4175 = vmul.f32 %v4109, 0.2
  %v4176 = vmul.f32 %v3915, 0.2
  %v4177 = vmul.f32 %v4111, 0.2
  %v4178 = vmul.f32 %v3918, 0.2
  %v4179 = vmul.f32 %v4114, 0.2
  %v4180 = vmul.f32 %v3920, 0.2
  %v4181 = vmul.f32 %v4116, 0.2
  %v4182 = vsel %vm4118, %v3883, %v4150
  %v4183 = vsel %vm4119, %v4079, %v4151
  %v4184 = vsel %vm4120, %v3885, %v4152
  %v4185 = vsel %vm4121, %v4081, %v4153
  %v4186 = vsel %vm4122, %v3888, %v4154
  %v4187 = vsel %vm4123, %v4084, %v4155
  %v4188 = vsel %vm4124, %v3890, %v4156
  %v4189 = vsel %vm4125, %v4086, %v4157
  %v4190 = vsel %vm4126, %v3893, %v4158
  %v4191 = vsel %vm4127, %v4089, %v4159
  %v4192 = vsel %vm4128, %v3895, %v4160
  %v4193 = vsel %vm4129, %v4091, %v4161
  %v4194 = vsel %vm4130, %v3898, %v4162
  %v4195 = vsel %vm4131, %v4094, %v4163
  %v4196 = vsel %vm4132, %v3900, %v4164
  %v4197 = vsel %vm4133, %v4096, %v4165
  %v4198 = vsel %vm4134, %v3903, %v4166
  %v4199 = vsel %vm4135, %v4099, %v4167
  %v4200 = vsel %vm4136, %v3905, %v4168
  %v4201 = vsel %vm4137, %v4101, %v4169
  %v4202 = vsel %vm4138, %v3908, %v4170
  %v4203 = vsel %vm4139, %v4104, %v4171
  %v4204 = vsel %vm4140, %v3910, %v4172
  %v4205 = vsel %vm4141, %v4106, %v4173
  %v4206 = vsel %vm4142, %v3913, %v4174
  %v4207 = vsel %vm4143, %v4109, %v4175
  %v4208 = vsel %vm4144, %v3915, %v4176
  %v4209 = vsel %vm4145, %v4111, %v4177
  %v4210 = vsel %vm4146, %v3918, %v4178
  %v4211 = vsel %vm4147, %v4114, %v4179
  %v4212 = vsel %vm4148, %v3920, %v4180
  %v4213 = vsel %vm4149, %v4116, %v4181
  %v4214 = vpack.c.bf16 %v4184, %v4182
  %v4215 = vpack.c.bf16 %v4185, %v4183
  %v4216 = vpack.c.bf16 %v4188, %v4186
  %v4217 = vpack.c.bf16 %v4189, %v4187
  %v4218 = vpack.c.bf16 %v4192, %v4190
  %v4219 = vpack.c.bf16 %v4193, %v4191
  %v4220 = vpack.c.bf16 %v4196, %v4194
  %v4221 = vpack.c.bf16 %v4197, %v4195
  %v4222 = vpack.c.bf16 %v4200, %v4198
  %v4223 = vpack.c.bf16 %v4201, %v4199
  %v4224 = vpack.c.bf16 %v4204, %v4202
  %v4225 = vpack.c.bf16 %v4205, %v4203
  %v4226 = vpack.c.bf16 %v4208, %v4206
  %v4227 = vpack.c.bf16 %v4209, %v4207
  %v4228 = vpack.c.bf16 %v4212, %v4210
  %v4229 = vpack.c.bf16 %v4213, %v4211
  %v4230 = vld [vmem:[%s5] sm:$0xf]
  %v4231 = vld [vmem:[%s5 + $0x4] sm:$0xf]
  %v4232 = vld [vmem:[%s5 + $0x8] sm:$0xf]
  %v4233 = vld [vmem:[%s5 + $0xc] sm:$0xf]
  %v4234 = vld [vmem:[%s5 + $0x10] sm:$0xf]
  %v4235 = vld [vmem:[%s5 + $0x14] sm:$0xf]
  %v4236 = vld [vmem:[%s5 + $0x18] sm:$0xf]
  %v4237 = vld [vmem:[%s5 + $0x1c] sm:$0xf]
  %v4238 = vld [vmem:[%s5 + $0x20] sm:$0xf]
  %v4239 = vld [vmem:[%s5 + $0x24] sm:$0xf]
  %v4240 = vld [vmem:[%s5 + $0x28] sm:$0xf]
  %v4241 = vld [vmem:[%s5 + $0x2c] sm:$0xf]
  %v4242 = vld [vmem:[%s5 + $0x30] sm:$0xf]
  %v4243 = vld [vmem:[%s5 + $0x34] sm:$0xf]
  %v4244 = vld [vmem:[%s5 + $0x38] sm:$0xf]
  %v4245 = vld [vmem:[%s5 + $0x3c] sm:$0xf]
  %v4246 = vld [vmem:[%s5 + $0x40] sm:$0xf]
  %v4247 = vld [vmem:[%s5 + $0x44] sm:$0xf]
  %v4248 = vld [vmem:[%s5 + $0x48] sm:$0xf]
  %v4249 = vld [vmem:[%s5 + $0x4c] sm:$0xf]
  %v4250 = vld [vmem:[%s5 + $0x50] sm:$0xf]
  %v4251 = vld [vmem:[%s5 + $0x54] sm:$0xf]
  %v4252 = vld [vmem:[%s5 + $0x58] sm:$0xf]
  %v4253 = vld [vmem:[%s5 + $0x5c] sm:$0xf]
  %v4254 = vld [vmem:[%s5 + $0x60] sm:$0xf]
  %v4255 = vld [vmem:[%s5 + $0x64] sm:$0xf]
  %v4256 = vld [vmem:[%s5 + $0x68] sm:$0xf]
  %v4257 = vld [vmem:[%s5 + $0x6c] sm:$0xf]
  %v4258 = vld [vmem:[%s5 + $0x70] sm:$0xf]
  %v4259 = vld [vmem:[%s5 + $0x74] sm:$0xf]
  %v4260 = vld [vmem:[%s5 + $0x78] sm:$0xf]
  %v4261 = vld [vmem:[%s5 + $0x7c] sm:$0xf]
  %v4262 = vld [vmem:[%s6] sm:$0x1]
  %v4264 = vperm.slane %v4262, 0
  %v4298 = vunpack.c.l.b16 %v4230
  %v4299 = vunpack.c.l.b16 %v4231
  %v4300 = vunpack.c.l.b16 %v4232
  %v4301 = vunpack.c.l.b16 %v4233
  %v4302 = vunpack.c.l.b16 %v4234
  %v4303 = vunpack.c.l.b16 %v4235
  %v4304 = vunpack.c.l.b16 %v4236
  %v4305 = vunpack.c.l.b16 %v4237
  %v4306 = vunpack.c.l.b16 %v4238
  %v4307 = vunpack.c.l.b16 %v4239
  %v4308 = vunpack.c.l.b16 %v4240
  %v4309 = vunpack.c.l.b16 %v4241
  %v4310 = vunpack.c.l.b16 %v4242
  %v4311 = vunpack.c.l.b16 %v4243
  %v4312 = vunpack.c.l.b16 %v4244
  %v4313 = vunpack.c.l.b16 %v4245
  %v4314 = vunpack.c.l.b16 %v4246
  %v4315 = vunpack.c.l.b16 %v4247
  %v4316 = vunpack.c.l.b16 %v4248
  %v4317 = vunpack.c.l.b16 %v4249
  %v4318 = vunpack.c.l.b16 %v4250
  %v4319 = vunpack.c.l.b16 %v4251
  %v4320 = vunpack.c.l.b16 %v4252
  %v4321 = vunpack.c.l.b16 %v4253
  %v4322 = vunpack.c.l.b16 %v4254
  %v4323 = vunpack.c.l.b16 %v4255
  %v4324 = vunpack.c.l.b16 %v4256
  %v4325 = vunpack.c.l.b16 %v4257
  %v4326 = vunpack.c.l.b16 %v4258
  %v4327 = vunpack.c.l.b16 %v4259
  %v4328 = vunpack.c.l.b16 %v4260
  %v4329 = vunpack.c.l.b16 %v4261
  %v4330 = vpack.c.b16 %v4299, %v4298
  %v4331 = vpack.c.b16 %v4301, %v4300
  %v4332 = vpack.c.b16 %v4303, %v4302
  %v4333 = vpack.c.b16 %v4305, %v4304
  %v4334 = vpack.c.b16 %v4307, %v4306
  %v4335 = vpack.c.b16 %v4309, %v4308
  %v4336 = vpack.c.b16 %v4311, %v4310
  %v4337 = vpack.c.b16 %v4313, %v4312
  %v4338 = vpack.c.b16 %v4315, %v4314
  %v4339 = vpack.c.b16 %v4317, %v4316
  %v4340 = vpack.c.b16 %v4319, %v4318
  %v4341 = vpack.c.b16 %v4321, %v4320
  %v4342 = vpack.c.b16 %v4323, %v4322
  %v4343 = vpack.c.b16 %v4325, %v4324
  %v4344 = vpack.c.b16 %v4327, %v4326
  %v4345 = vpack.c.b16 %v4329, %v4328
  %4362 = vmatpush.bf16.msra.mxu0 %v4337
  %4363 = vmatpush.bf16.msra.mxu0 %v4336
  %4364 = vmatpush.bf16.msra.mxu0 %v4335
  %4365 = vmatpush.bf16.msra.mxu0 %v4334
  %4366 = vmatpush.bf16.msra.mxu0 %v4333
  %4367 = vmatpush.bf16.msra.mxu0 %v4332
  %4368 = vmatpush.bf16.msra.mxu0 %v4331
  %4369 = vmatpush.bf16.msra.mxu0 %v4330
  %4370 = vmatmul.bf16.gmra.mxu0 %v4214
  %v4371 = vpop.f32.mrf.mxu0
  %v4372 = vadd.f32 %v4264, %v4371
  %v4373 = vpop.f32.mrf.mxu0
  %v4374 = vadd.f32 %v4264, %v4373
  %4375 = vmatmul.bf16.gmra.mxu0 %v4216
  %v4376 = vpop.f32.mrf.mxu0
  %v4377 = vadd.f32 %v4264, %v4376
  %v4378 = vpop.f32.mrf.mxu0
  %v4379 = vadd.f32 %v4264, %v4378
  %4380 = vmatmul.bf16.gmra.mxu0 %v4218
  %v4381 = vpop.f32.mrf.mxu0
  %v4382 = vadd.f32 %v4264, %v4381
  %v4383 = vpop.f32.mrf.mxu0
  %v4384 = vadd.f32 %v4264, %v4383
  %4385 = vmatmul.bf16.gmra.mxu0 %v4220
  %v4386 = vpop.f32.mrf.mxu0
  %v4387 = vadd.f32 %v4264, %v4386
  %v4388 = vpop.f32.mrf.mxu0
  %v4389 = vadd.f32 %v4264, %v4388
  %4390 = vmatmul.bf16.gmra.mxu0 %v4222
  %v4391 = vpop.f32.mrf.mxu0
  %v4392 = vadd.f32 %v4264, %v4391
  %v4393 = vpop.f32.mrf.mxu0
  %v4394 = vadd.f32 %v4264, %v4393
  %4395 = vmatmul.bf16.gmra.mxu0 %v4224
  %v4396 = vpop.f32.mrf.mxu0
  %v4397 = vadd.f32 %v4264, %v4396
  %v4398 = vpop.f32.mrf.mxu0
  %v4399 = vadd.f32 %v4264, %v4398
  %4400 = vmatmul.bf16.gmra.mxu0 %v4226
  %v4401 = vpop.f32.mrf.mxu0
  %v4402 = vadd.f32 %v4264, %v4401
  %v4403 = vpop.f32.mrf.mxu0
  %v4404 = vadd.f32 %v4264, %v4403
  %4405 = vmatmul.bf16.gmra.mxu0 %v4228
  %v4406 = vpop.f32.mrf.mxu0
  %v4407 = vadd.f32 %v4264, %v4406
  %v4408 = vpop.f32.mrf.mxu0
  %v4409 = vadd.f32 %v4264, %v4408
  %4410 = vdwg.mxu0
  %4411 = vmatpush.bf16.msra.mxu0 %v4345
  %4412 = vmatpush.bf16.msra.mxu0 %v4344
  %4413 = vmatpush.bf16.msra.mxu0 %v4343
  %4414 = vmatpush.bf16.msra.mxu0 %v4342
  %4415 = vmatpush.bf16.msra.mxu0 %v4341
  %4416 = vmatpush.bf16.msra.mxu0 %v4340
  %4417 = vmatpush.bf16.msra.mxu0 %v4339
  %4418 = vmatpush.bf16.msra.mxu0 %v4338
  %4419 = vmatmul.bf16.gmra.mxu0 %v4215
  %v4420 = vpop.f32.mrf.mxu0
  %v4421 = vadd.f32 %v4372, %v4420
  %v4422 = vpop.f32.mrf.mxu0
  %v4423 = vadd.f32 %v4374, %v4422
  %4424 = vmatmul.bf16.gmra.mxu0 %v4217
  %v4425 = vpop.f32.mrf.mxu0
  %v4426 = vadd.f32 %v4377, %v4425
  %v4427 = vpop.f32.mrf.mxu0
  %v4428 = vadd.f32 %v4379, %v4427
  %4429 = vmatmul.bf16.gmra.mxu0 %v4219
  %v4430 = vpop.f32.mrf.mxu0
  %v4431 = vadd.f32 %v4382, %v4430
  %v4432 = vpop.f32.mrf.mxu0
  %v4433 = vadd.f32 %v4384, %v4432
  %4434 = vmatmul.bf16.gmra.mxu0 %v4221
  %v4435 = vpop.f32.mrf.mxu0
  %v4436 = vadd.f32 %v4387, %v4435
  %v4437 = vpop.f32.mrf.mxu0
  %v4438 = vadd.f32 %v4389, %v4437
  %4439 = vmatmul.bf16.gmra.mxu0 %v4223
  %v4440 = vpop.f32.mrf.mxu0
  %v4441 = vadd.f32 %v4392, %v4440
  %v4442 = vpop.f32.mrf.mxu0
  %v4443 = vadd.f32 %v4394, %v4442
  %4444 = vmatmul.bf16.gmra.mxu0 %v4225
  %v4445 = vpop.f32.mrf.mxu0
  %v4446 = vadd.f32 %v4397, %v4445
  %v4447 = vpop.f32.mrf.mxu0
  %v4448 = vadd.f32 %v4399, %v4447
  %4449 = vmatmul.bf16.gmra.mxu0 %v4227
  %v4450 = vpop.f32.mrf.mxu0
  %v4451 = vadd.f32 %v4402, %v4450
  %v4452 = vpop.f32.mrf.mxu0
  %v4453 = vadd.f32 %v4404, %v4452
  %4454 = vmatmul.bf16.gmra.mxu0 %v4229
  %v4455 = vpop.f32.mrf.mxu0
  %v4456 = vadd.f32 %v4407, %v4455
  %v4457 = vpop.f32.mrf.mxu0
  %v4458 = vadd.f32 %v4409, %v4457
  %4459 = vdwg.mxu0
  %vm4460 = vcmp.gt.f32.partialorder %v4421, 0.0
  %vm4461 = vcmp.gt.f32.partialorder %v4423, 0.0
  %vm4462 = vcmp.gt.f32.partialorder %v4426, 0.0
  %vm4463 = vcmp.gt.f32.partialorder %v4428, 0.0
  %vm4464 = vcmp.gt.f32.partialorder %v4431, 0.0
  %vm4465 = vcmp.gt.f32.partialorder %v4433, 0.0
  %vm4466 = vcmp.gt.f32.partialorder %v4436, 0.0
  %vm4467 = vcmp.gt.f32.partialorder %v4438, 0.0
  %vm4468 = vcmp.gt.f32.partialorder %v4441, 0.0
  %vm4469 = vcmp.gt.f32.partialorder %v4443, 0.0
  %vm4470 = vcmp.gt.f32.partialorder %v4446, 0.0
  %vm4471 = vcmp.gt.f32.partialorder %v4448, 0.0
  %vm4472 = vcmp.gt.f32.partialorder %v4451, 0.0
  %vm4473 = vcmp.gt.f32.partialorder %v4453, 0.0
  %vm4474 = vcmp.gt.f32.partialorder %v4456, 0.0
  %vm4475 = vcmp.gt.f32.partialorder %v4458, 0.0
  %v4476 = vmul.f32 %v4421, 0.2
  %v4477 = vmul.f32 %v4423, 0.2
  %v4478 = vmul.f32 %v4426, 0.2
  %v4479 = vmul.f32 %v4428, 0.2
  %v4480 = vmul.f32 %v4431, 0.2
  %v4481 = vmul.f32 %v4433, 0.2
  %v4482 = vmul.f32 %v4436, 0.2
  %v4483 = vmul.f32 %v4438, 0.2
  %v4484 = vmul.f32 %v4441, 0.2
  %v4485 = vmul.f32 %v4443, 0.2
  %v4486 = vmul.f32 %v4446, 0.2
  %v4487 = vmul.f32 %v4448, 0.2
  %v4488 = vmul.f32 %v4451, 0.2
  %v4489 = vmul.f32 %v4453, 0.2
  %v4490 = vmul.f32 %v4456, 0.2
  %v4491 = vmul.f32 %v4458, 0.2
  %v4492 = vsel %vm4460, %v4421, %v4476
  %v4493 = vsel %vm4461, %v4423, %v4477
  %v4494 = vsel %vm4462, %v4426, %v4478
  %v4495 = vsel %vm4463, %v4428, %v4479
  %v4496 = vsel %vm4464, %v4431, %v4480
  %v4497 = vsel %vm4465, %v4433, %v4481
  %v4498 = vsel %vm4466, %v4436, %v4482
  %v4499 = vsel %vm4467, %v4438, %v4483
  %v4500 = vsel %vm4468, %v4441, %v4484
  %v4501 = vsel %vm4469, %v4443, %v4485
  %v4502 = vsel %vm4470, %v4446, %v4486
  %v4503 = vsel %vm4471, %v4448, %v4487
  %v4504 = vsel %vm4472, %v4451, %v4488
  %v4505 = vsel %vm4473, %v4453, %v4489
  %v4506 = vsel %vm4474, %v4456, %v4490
  %v4507 = vsel %vm4475, %v4458, %v4491
  %v4508 = vld [vmem:[%s7] sm:$0x1]
  %v4510 = vperm.slane %v4508, 0
  %v4512 = vmul.f32 %v4492, %v4510
  %v4513 = vmul.f32 %v4493, %v4510
  %v4514 = vmul.f32 %v4494, %v4510
  %v4515 = vmul.f32 %v4495, %v4510
  %v4516 = vmul.f32 %v4496, %v4510
  %v4517 = vmul.f32 %v4497, %v4510
  %v4518 = vmul.f32 %v4498, %v4510
  %v4519 = vmul.f32 %v4499, %v4510
  %v4520 = vmul.f32 %v4500, %v4510
  %v4521 = vmul.f32 %v4501, %v4510
  %v4522 = vmul.f32 %v4502, %v4510
  %v4523 = vmul.f32 %v4503, %v4510
  %v4524 = vmul.f32 %v4504, %v4510
  %v4525 = vmul.f32 %v4505, %v4510
  %v4526 = vmul.f32 %v4506, %v4510
  %v4527 = vmul.f32 %v4507, %v4510
  %4528 = vadd.xlane.f32.xlu0 %v4512
  %v4529 = vpop.xlane.xlu0 %4528
  %4530 = vadd.xlane.f32.xlu0 %v4513
  %v4531 = vpop.xlane.xlu0 %4530
  %4532 = vadd.xlane.f32.xlu0 %v4514
  %v4533 = vpop.xlane.xlu0 %4532
  %4534 = vadd.xlane.f32.xlu0 %v4515
  %v4535 = vpop.xlane.xlu0 %4534
  %4536 = vadd.xlane.f32.xlu0 %v4516
  %v4537 = vpop.xlane.xlu0 %4536
  %4538 = vadd.xlane.f32.xlu0 %v4517
  %v4539 = vpop.xlane.xlu0 %4538
  %4540 = vadd.xlane.f32.xlu0 %v4518
  %v4541 = vpop.xlane.xlu0 %4540
  %4542 = vadd.xlane.f32.xlu0 %v4519
  %v4543 = vpop.xlane.xlu0 %4542
  %4544 = vadd.xlane.f32.xlu0 %v4520
  %v4545 = vpop.xlane.xlu0 %4544
  %4546 = vadd.xlane.f32.xlu0 %v4521
  %v4547 = vpop.xlane.xlu0 %4546
  %4548 = vadd.xlane.f32.xlu0 %v4522
  %v4549 = vpop.xlane.xlu0 %4548
  %4550 = vadd.xlane.f32.xlu0 %v4523
  %v4551 = vpop.xlane.xlu0 %4550
  %4552 = vadd.xlane.f32.xlu0 %v4524
  %v4553 = vpop.xlane.xlu0 %4552
  %4554 = vadd.xlane.f32.xlu0 %v4525
  %v4555 = vpop.xlane.xlu0 %4554
  %4556 = vadd.xlane.f32.xlu0 %v4526
  %v4557 = vpop.xlane.xlu0 %4556
  %4558 = vadd.xlane.f32.xlu0 %v4527
  %v4559 = vpop.xlane.xlu0 %4558
  %v4560 = vld [vmem:[#allocation2] sm:$0x1]
  %v4562 = vperm.slane %v4560, 0
  %v4564 = vadd.f32 %v4529, %v4562
  %v4565 = vadd.f32 %v4531, %v4562
  %v4566 = vadd.f32 %v4533, %v4562
  %v4567 = vadd.f32 %v4535, %v4562
  %v4568 = vadd.f32 %v4537, %v4562
  %v4569 = vadd.f32 %v4539, %v4562
  %v4570 = vadd.f32 %v4541, %v4562
  %v4571 = vadd.f32 %v4543, %v4562
  %v4572 = vadd.f32 %v4545, %v4562
  %v4573 = vadd.f32 %v4547, %v4562
  %v4574 = vadd.f32 %v4549, %v4562
  %v4575 = vadd.f32 %v4551, %v4562
  %v4576 = vadd.f32 %v4553, %v4562
  %v4577 = vadd.f32 %v4555, %v4562
  %v4578 = vadd.f32 %v4557, %v4562
  %v4579 = vadd.f32 %v4559, %v4562
  %vm4580 = vcmask 7168
  %4581 = vst.msk [vmem:[%s9] sm:$0xff] %vm4580, %v4564
  %4582 = vst.msk [vmem:[%s9 + $0x8] sm:$0xff] %vm4580, %v4565
  %4583 = vst.msk [vmem:[%s9 + $0x10] sm:$0xff] %vm4580, %v4566
  %4584 = vst.msk [vmem:[%s9 + $0x18] sm:$0xff] %vm4580, %v4567
  %4585 = vst.msk [vmem:[%s9 + $0x20] sm:$0xff] %vm4580, %v4568
  %4586 = vst.msk [vmem:[%s9 + $0x28] sm:$0xff] %vm4580, %v4569
  %4587 = vst.msk [vmem:[%s9 + $0x30] sm:$0xff] %vm4580, %v4570
  %4588 = vst.msk [vmem:[%s9 + $0x38] sm:$0xff] %vm4580, %v4571
  %4589 = vst.msk [vmem:[%s9 + $0x40] sm:$0xff] %vm4580, %v4572
  %4590 = vst.msk [vmem:[%s9 + $0x48] sm:$0xff] %vm4580, %v4573
  %4591 = vst.msk [vmem:[%s9 + $0x50] sm:$0xff] %vm4580, %v4574
  %4592 = vst.msk [vmem:[%s9 + $0x58] sm:$0xff] %vm4580, %v4575
  %4593 = vst.msk [vmem:[%s9 + $0x60] sm:$0xff] %vm4580, %v4576
  %4594 = vst.msk [vmem:[%s9 + $0x68] sm:$0xff] %vm4580, %v4577
  %4595 = vst.msk [vmem:[%s9 + $0x70] sm:$0xff] %vm4580, %v4578
  %4596 = vst.msk [vmem:[%s9 + $0x78] sm:$0xff] %vm4580, %v4579
  // Predicated region
  $region38: #{discriminator_forward.1} parent=0 // pred_check
    _
  $region39: #{discriminator_forward.1} parent=0 // pred_check_branch
    %4598 = sbr.rel (0) target = $region41
  $region40: #{discriminator_forward.1} parent=0 // pred_region
    _
  $region41: #{discriminator_forward.1} parent=0 // pred_fallthru
    _
  // Predicated region
  $region42: #{discriminator_forward.1} parent=0 // pred_check
    _
  $region43: #{discriminator_forward.1} parent=0 // pred_check_branch
    %4600 = sbr.rel (0) target = $region45
  $region44: #{discriminator_forward.1} parent=0 // pred_region
    _
  $region45: #{discriminator_forward.1} parent=0 // pred_fallthru
    _

</llo_original>
